<compile_context>
chip_gen: v6e
topology: v6e:2x2x1
jax: 0.10.0
libtpu: 0.0.40
codegen_flags: <defaults>
</compile_context>

<pallas_src>
import jax
import jax.numpy as jnp
from jax.experimental import pallas as pl

# Hyperparameters (consistent with CharTransformer.__init__)
VOCAB = 16            # input_size
HIDDEN = 32           # hidden_size (d_model)
OUTPUT = 16           # output_size
NUM_LAYERS = 2        # num_layers
NHEAD = 4             # nhead
FFN = 2048            # nn.TransformerEncoderLayer default dim_feedforward
HEAD_DIM = HIDDEN // NHEAD
PROJ = 2 * HIDDEN + NHEAD * HIDDEN   # fused [q | k | vo] projection width = 192
LN_EPS = 1e-5
NEG_INF = -1e30


def _layer_norm(x, w, b):
    mu = jnp.mean(x, axis=-1, keepdims=True)
    var = jnp.mean(jnp.square(x - mu), axis=-1, keepdims=True)
    return (x - mu) * jax.lax.rsqrt(var + LN_EPS) * w + b


def char_transformer_kernel(
    x0_ref,     # (T, H)      f32   embedded tokens, s-major rows (t = s*B + b)
    srow_ref,   # (T, 1)      i32   sequence position of each row
    scol_ref,   # (1, T)      i32
    wqkv_ref,   # (L, H, P)   bf16  fused [Wq.T/sqrt(D) | Wk.T | per-head Wv.T@Wout.T]
    bqkv_ref,   # (L, 1, P)   f32   fused [bq/sqrt(D) | bk | 0]
    aob_ref,    # (L, 1, H)   f32   folded attention output bias (bv @ Wout.T + out_b)
    ln1w_ref, ln1b_ref,   # (L, 1, H) f32
    ff1w_ref,   # (L, H, F)   bf16  linear1.T  (FFN on lanes)
    ff1b_ref,   # (L, 1, F)   f32
    ff2w_ref,   # (L, F, H)   bf16  linear2.T
    ff2b_ref,   # (L, 1, H)   f32
    ln2w_ref, ln2b_ref,   # (L, 1, H) f32
    fcw_ref,    # (H, O)      f32
    fcb_ref,    # (1, O)      f32
    o_ref,      # (B, O)      f32
):
    x = x0_ref[...]                                    # (T, H) f32
    T = x.shape[0]
    B = o_ref.shape[0]
    H, D, N = HIDDEN, HEAD_DIM, NHEAD
    bf16, f32 = jnp.bfloat16, jnp.float32

    # Same-position (batch_first=False) attention mask, generated in-kernel.
    # With s-major row ordering this is block-diagonal with BxB blocks.
    mask = jnp.where(srow_ref[...] == scol_ref[...], 0.0, NEG_INF).astype(f32)   # (T, T)

    for l in range(NUM_LAYERS):
        xb = x.astype(bf16)

        # ---- fused lane-dense projection: one (T,H)x(H,P) MXU matmul ----
        proj = jnp.dot(xb, wqkv_ref[l], preferred_element_type=f32) + bqkv_ref[l]   # (T, P)

        # ---- multi-head self-attention (static lane slices per head, bf16 MXU inputs) ----
        attn = jnp.zeros((T, H), f32)
        for n in range(N):
            q = proj[:, n * D:(n + 1) * D].astype(bf16)                 # (T, D) scale folded
            k = proj[:, H + n * D: H + (n + 1) * D].astype(bf16)        # (T, D)
            vo = proj[:, 2 * H + n * H: 2 * H + (n + 1) * H].astype(bf16)   # (T, H) = V@Wout_h

            s = jax.lax.dot_general(q, k, (((1,), (1,)), ((), ())),
                                    preferred_element_type=f32)         # (T, T) = q k^T
            s = s + mask
            m = jnp.max(s, axis=-1, keepdims=True)
            e = jnp.exp(s - m)
            p = e * pl.reciprocal(jnp.sum(e, axis=-1, keepdims=True), approx=True)

            attn = attn + jnp.dot(p.astype(bf16), vo, preferred_element_type=f32)   # (T, H)

        # Folded V/out-proj biases added after the P.V matmul (softmax rows sum to 1).
        x = _layer_norm(x + attn + aob_ref[l], ln1w_ref[l], ln1b_ref[l])

        # ---- feed-forward: two lane-dense 2D MXU matmuls ----
        h1 = jnp.dot(x.astype(bf16), ff1w_ref[l], preferred_element_type=f32) + ff1b_ref[l]
        h1 = jnp.maximum(h1, 0.0)
        h2 = jnp.dot(h1.astype(bf16), ff2w_ref[l], preferred_element_type=f32) + ff2b_ref[l]
        x = _layer_norm(x + h2, ln2w_ref[l], ln2b_ref[l])

    # s-major ordering -> last time step is the contiguous tail block of B rows.
    last = x[T - B:, :]                                                   # (B, H)
    o_ref[...] = jnp.dot(last, fcw_ref[...], preferred_element_type=f32) + fcb_ref[...]


def prepare_params(p):
    """PyTorch-layout params -> kernel layout (fused/pre-transposed, bf16 big weights)."""
    f32, bf16 = jnp.float32, jnp.bfloat16
    L, H, N, D, F, O = NUM_LAYERS, HIDDEN, NHEAD, HEAD_DIM, FFN, OUTPUT
    scale = 1.0 / (D ** 0.5)

    in_w, in_b = p['in_w'], p['in_b']                    # (L, 3H, H), (L, 3H)
    Wq, Wk, Wv = in_w[:, :H], in_w[:, H:2 * H], in_w[:, 2 * H:]
    bq, bk, bv = in_b[:, :H], in_b[:, H:2 * H], in_b[:, 2 * H:]
    Wout, bout = p['out_w'], p['out_b']                  # (L, H, H), (L, H)

    wq_t = jnp.transpose(Wq, (0, 2, 1)) * scale          # (L, H, H)  scale folded
    wk_t = jnp.transpose(Wk, (0, 2, 1))                  # (L, H, H)

    # Fold out_proj into the V projection, per head:
    #   Wvo_n = Wv_n.T @ Wout_n.T   (H, H), so   vo_n = x @ Wvo_n   (no bias here).
    WvT = jnp.transpose(Wv, (0, 2, 1))                   # (L, H, H)
    WoutT = jnp.transpose(Wout, (0, 2, 1))               # (L, H, H)
    WvT_h = jnp.transpose(WvT.reshape(L, H, N, D), (0, 2, 1, 3))   # (L, N, H, D)
    WoutT_h = WoutT.reshape(L, N, D, H)                             # (L, N, D, H)
    Wvo = jnp.einsum('lnhd,lndg->lnhg', WvT_h, WoutT_h)             # (L, N, H, H)
    wvo_flat = jnp.transpose(Wvo, (0, 2, 1, 3)).reshape(L, H, N * H)  # (L, H, N*H)

    w_fused = jnp.concatenate([wq_t, wk_t, wvo_flat], axis=-1).astype(bf16)       # (L, H, P)
    b_fused = jnp.concatenate(
        [bq * scale, bk, jnp.zeros((L, N * H), f32)], axis=-1
    ).reshape(L, 1, PROJ).astype(f32)

    # Folded attention output bias: sum_n (bv_n @ Wout_n.T) + out_b = bv @ Wout.T + out_b.
    aob = (jnp.einsum('lh,lgh->lg', bv, Wout) + bout).reshape(L, 1, H).astype(f32)

    return {
        'emb':  p['emb'].astype(f32),
        'wqkv': w_fused,
        'bqkv': b_fused,
        'aob':  aob,
        'ln1w': p['ln1_w'].reshape(L, 1, H).astype(f32),
        'ln1b': p['ln1_b'].reshape(L, 1, H).astype(f32),
        'ff1w': jnp.transpose(p['ff1_w'], (0, 2, 1)).astype(bf16),   # (L, H, F)
        'ff1b': p['ff1_b'].reshape(L, 1, F).astype(f32),
        'ff2w': jnp.transpose(p['ff2_w'], (0, 2, 1)).astype(bf16),   # (L, F, H)
        'ff2b': p['ff2_b'].reshape(L, 1, H).astype(f32),
        'ln2w': p['ln2_w'].reshape(L, 1, H).astype(f32),
        'ln2b': p['ln2_b'].reshape(L, 1, H).astype(f32),
        'fcw':  p['fc_w'].T.astype(f32),                              # (H, O)
        'fcb':  p['fc_b'].reshape(1, O).astype(f32),
    }


@jax.jit
def char_transformer_forward(x_tokens, kp):
    B, S = x_tokens.shape
    T = B * S

    # Embedding gather is plain-JAX glue; reorder tokens s-major (row t = s*B + b) so the
    # same-position attention is block-diagonal and the last step is a contiguous tail.
    emb = jnp.take(kp['emb'], x_tokens, axis=0)                      # (B, S, H)
    emb = jnp.transpose(emb, (1, 0, 2)).reshape(T, HIDDEN).astype(jnp.float32)

    s_ids = jnp.arange(T, dtype=jnp.int32) // B                      # seq position per row
    srow = s_ids.reshape(T, 1)
    scol = s_ids.reshape(1, T)

    # Single invocation (no grid): total weights < 1 MiB, trivially VMEM-resident on
    # v5e/v6e/v7x. NOTE: if B*S grows, reintroduce a "parallel" grid axis over sequence
    # positions (independent under the same-s mask) and tile the (T,F) FFN intermediate.
    return pl.pallas_call(
        char_transformer_kernel,
        out_shape=jax.ShapeDtypeStruct((B, OUTPUT), jnp.float32),
    )(emb, srow, scol,
      kp['wqkv'], kp['bqkv'], kp['aob'],
      kp['ln1w'], kp['ln1b'],
      kp['ff1w'], kp['ff1b'], kp['ff2w'], kp['ff2b'],
      kp['ln2w'], kp['ln2b'],
      kp['fcw'], kp['fcb'])


# ----------------------------- pure-JAX reference (f32) -----------------------------
def _layer_norm_ref(x, w, b):
    mu = jnp.mean(x, axis=-1, keepdims=True)
    var = jnp.mean(jnp.square(x - mu), axis=-1, keepdims=True)
    return (x - mu) * jax.lax.rsqrt(var + LN_EPS) * w + b


def reference_forward(x_tokens, p):
    B, S = x_tokens.shape
    H, N, D = HIDDEN, NHEAD, HEAD_DIM
    x = jnp.take(p['emb'], x_tokens, axis=0)                          # (B, S, H)
    for l in range(NUM_LAYERS):
        qkv = jnp.einsum('bsh,ih->bsi', x, p['in_w'][l]) + p['in_b'][l]
        q, k, v = qkv[..., :H], qkv[..., H:2 * H], qkv[..., 2 * H:]
        split = lambda z: z.reshape(B, S, N, D).transpose(2, 1, 0, 3)  # (N, S, B, D)
        qh, kh, vh = split(q), split(k), split(v)
        scores = jnp.einsum('nsbd,nscd->nsbc', qh, kh) / (D ** 0.5)
        pr = jax.nn.softmax(scores, axis=-1)
        ctx = jnp.einsum('nsbc,nscd->nsbd', pr, vh)
        ctx = ctx.transpose(2, 1, 0, 3).reshape(B, S, H)
        attn = jnp.einsum('bsh,oh->bso', ctx, p['out_w'][l]) + p['out_b'][l]
        x = _layer_norm_ref(x + attn, p['ln1_w'][l], p['ln1_b'][l])
        h1 = jax.nn.relu(jnp.einsum('bsh,fh->bsf', x, p['ff1_w'][l]) + p['ff1_b'][l])
        h2 = jnp.einsum('bsf,hf->bsh', h1, p['ff2_w'][l]) + p['ff2_b'][l]
        x = _layer_norm_ref(x + h2, p['ln2_w'][l], p['ln2_b'][l])
    return x[:, -1, :] @ p['fc_w'].T + p['fc_b']


def init_params(key):
    ks = jax.random.split(key, 12)
    s = 0.02
    f32 = jnp.float32
    L, H, F, O, V = NUM_LAYERS, HIDDEN, FFN, OUTPUT, VOCAB
    return {
        'emb':   jax.random.normal(ks[0], (V, H), f32) * s,
        'in_w':  jax.random.normal(ks[1], (L, 3 * H, H), f32) * s,
        'in_b':  jax.random.normal(ks[2], (L, 3 * H), f32) * s,
        'out_w': jax.random.normal(ks[3], (L, H, H), f32) * s,
        'out_b': jax.random.normal(ks[4], (L, H), f32) * s,
        'ln1_w': jnp.ones((L, H), f32), 'ln1_b': jnp.zeros((L, H), f32),
        'ff1_w': jax.random.normal(ks[5], (L, F, H), f32) * s,
        'ff1_b': jax.random.normal(ks[6], (L, F), f32) * s,
        'ff2_w': jax.random.normal(ks[7], (L, H, F), f32) * s,
        'ff2_b': jax.random.normal(ks[8], (L, H), f32) * s,
        'ln2_w': jnp.ones((L, H), f32), 'ln2_b': jnp.zeros((L, H), f32),
        'fc_w':  jax.random.normal(ks[9], (O, H), f32) * s,
        'fc_b':  jax.random.normal(ks[10], (O,), f32) * s,
    }


if __name__ == "__main__":
    key = jax.random.PRNGKey(0)
    k_param, k_data = jax.random.split(key)
    params = init_params(k_param)
    kparams = prepare_params(params)

    B, S = 2, 8
    x = jax.random.randint(k_data, (B, S), 0, VOCAB, dtype=jnp.int32)

    out = jax.block_until_ready(char_transformer_forward(x, kparams))
    assert out.shape == (B, OUTPUT), out.shape
    assert bool(jnp.all(jnp.isfinite(out)))

    ref = reference_forward(x, params)
    assert jnp.allclose(out, ref, atol=1e-2, rtol=1e-2), float(jnp.max(jnp.abs(out - ref)))

    print("KERNEL_OK")
</pallas_src>

<mosaic_0001>
module attributes {stable_mosaic.version = 11 : i64} {
  func.func @char_transformer_kernel(%arg0: memref<16x32xf32, #tpu.memory_space<vmem>>, %arg1: memref<16x1xi32, #tpu.memory_space<vmem>>, %arg2: memref<1x16xi32, #tpu.memory_space<vmem>>, %arg3: memref<2x32x192xbf16, #tpu.memory_space<vmem>>, %arg4: memref<2x1x192xf32, #tpu.memory_space<vmem>>, %arg5: memref<2x1x32xf32, #tpu.memory_space<vmem>>, %arg6: memref<2x1x32xf32, #tpu.memory_space<vmem>>, %arg7: memref<2x1x32xf32, #tpu.memory_space<vmem>>, %arg8: memref<2x32x2048xbf16, #tpu.memory_space<vmem>>, %arg9: memref<2x1x2048xf32, #tpu.memory_space<vmem>>, %arg10: memref<2x2048x32xbf16, #tpu.memory_space<vmem>>, %arg11: memref<2x1x32xf32, #tpu.memory_space<vmem>>, %arg12: memref<2x1x32xf32, #tpu.memory_space<vmem>>, %arg13: memref<2x1x32xf32, #tpu.memory_space<vmem>>, %arg14: memref<32x16xf32, #tpu.memory_space<vmem>>, %arg15: memref<1x16xf32, #tpu.memory_space<vmem>>, %arg16: memref<2x16xf32, #tpu.memory_space<vmem>>) attributes {dimension_semantics = [], scalar_prefetch = 0 : i64, scratch_operands = 0 : i64, tpu.core_type = #tpu.core_type<tc>} {
    %c0 = arith.constant 0 : index
    %c0_0 = arith.constant 0 : index
    %0 = vector.load %arg0[%c0, %c0_0] : memref<16x32xf32, #tpu.memory_space<vmem>>, vector<16x32xf32>
    %c0_1 = arith.constant 0 : index
    %c0_2 = arith.constant 0 : index
    %1 = vector.load %arg1[%c0_1, %c0_2] : memref<16x1xi32, #tpu.memory_space<vmem>>, vector<16x1xi32>
    %c0_3 = arith.constant 0 : index
    %c0_4 = arith.constant 0 : index
    %2 = vector.load %arg2[%c0_3, %c0_4] : memref<1x16xi32, #tpu.memory_space<vmem>>, vector<1x16xi32>
    %3 = vector.broadcast %1 : vector<16x1xi32> to vector<16x16xi32>
    %4 = vector.broadcast %2 : vector<1x16xi32> to vector<16x16xi32>
    %5 = arith.cmpi eq, %3, %4 : vector<16x16xi32>
    %cst = arith.constant 0.000000e+00 : f32
    %cst_5 = arith.constant -1.000000e+30 : f32
    %6 = vector.broadcast %cst : f32 to vector<16x16xf32>
    %7 = vector.broadcast %cst_5 : f32 to vector<16x16xf32>
    %8 = arith.select %5, %6, %7 : vector<16x16xi1>, vector<16x16xf32>
    %9 = arith.truncf %0 : vector<16x32xf32> to vector<16x32xbf16>
    %c0_6 = arith.constant 0 : index
    %c0_7 = arith.constant 0 : index
    %c0_8 = arith.constant 0 : index
    %10 = vector.load %arg3[%c0_6, %c0_7, %c0_8] : memref<2x32x192xbf16, #tpu.memory_space<vmem>>, vector<1x32x192xbf16>
    %11 = vector.shape_cast %10 : vector<1x32x192xbf16> to vector<32x192xbf16>
    %cst_9 = arith.constant dense<0.000000e+00> : vector<16x192xf32>
    %12 = tpu.matmul %9, %11, %cst_9 {dimension_numbers = #tpu.dot_dimension_numbers<[1], [0], [0], [1], [0, 0, 1, 1], [], []>} : vector<16x32xbf16>, vector<32x192xbf16>, vector<16x192xf32> -> vector<16x192xf32>
    %c0_10 = arith.constant 0 : index
    %c0_11 = arith.constant 0 : index
    %c0_12 = arith.constant 0 : index
    %13 = vector.load %arg4[%c0_10, %c0_11, %c0_12] : memref<2x1x192xf32, #tpu.memory_space<vmem>>, vector<1x1x192xf32>
    %14 = vector.shape_cast %13 : vector<1x1x192xf32> to vector<1x192xf32>
    %15 = vector.broadcast %14 : vector<1x192xf32> to vector<16x192xf32>
    %16 = arith.addf %12, %15 : vector<16x192xf32>
    %cst_13 = arith.constant 0.000000e+00 : f32
    %17 = vector.broadcast %cst_13 : f32 to vector<16x32xf32>
    %18 = vector.extract_strided_slice %16 {offsets = [0, 0], sizes = [16, 8], strides = [1, 1]} : vector<16x192xf32> to vector<16x8xf32>
    %19 = arith.truncf %18 : vector<16x8xf32> to vector<16x8xbf16>
    %20 = vector.extract_strided_slice %16 {offsets = [0, 32], sizes = [16, 8], strides = [1, 1]} : vector<16x192xf32> to vector<16x8xf32>
    %21 = arith.truncf %20 : vector<16x8xf32> to vector<16x8xbf16>
    %22 = vector.extract_strided_slice %16 {offsets = [0, 64], sizes = [16, 32], strides = [1, 1]} : vector<16x192xf32> to vector<16x32xf32>
    %23 = arith.truncf %22 : vector<16x32xf32> to vector<16x32xbf16>
    %cst_14 = arith.constant dense<0.000000e+00> : vector<16x16xf32>
    %24 = tpu.matmul %19, %21, %cst_14 {dimension_numbers = #tpu.dot_dimension_numbers<[1], [1], [0], [0], [0, 0, 1, 0], [], []>} : vector<16x8xbf16>, vector<16x8xbf16>, vector<16x16xf32> -> vector<16x16xf32>
    %25 = arith.addf %24, %8 : vector<16x16xf32>
    %cst_15 = arith.constant dense<0xFF800000> : vector<16xf32>
    %26 = vector.multi_reduction <maximumf>, %25, %cst_15 [1] : vector<16x16xf32> to vector<16xf32>
    %27 = vector.shape_cast %26 : vector<16xf32> to vector<16x1xf32>
    %28 = vector.broadcast %27 : vector<16x1xf32> to vector<16x16xf32>
    %29 = arith.subf %25, %28 : vector<16x16xf32>
    %30 = math.exp %29 : vector<16x16xf32>
    %cst_16 = arith.constant dense<0.000000e+00> : vector<16xf32>
    %31 = vector.multi_reduction <add>, %30, %cst_16 [1] : vector<16x16xf32> to vector<16xf32>
    %32 = vector.shape_cast %31 : vector<16xf32> to vector<16x1xf32>
    %33 = tpu.reciprocal %32 {approx = true} : vector<16x1xf32> -> vector<16x1xf32>
    %34 = vector.broadcast %33 : vector<16x1xf32> to vector<16x16xf32>
    %35 = arith.mulf %30, %34 : vector<16x16xf32>
    %36 = arith.truncf %35 : vector<16x16xf32> to vector<16x16xbf16>
    %cst_17 = arith.constant dense<0.000000e+00> : vector<16x32xf32>
    %37 = tpu.matmul %36, %23, %cst_17 {dimension_numbers = #tpu.dot_dimension_numbers<[1], [0], [0], [1], [0, 0, 1, 1], [], []>} : vector<16x16xbf16>, vector<16x32xbf16>, vector<16x32xf32> -> vector<16x32xf32>
    %38 = arith.addf %17, %37 : vector<16x32xf32>
    %39 = vector.extract_strided_slice %16 {offsets = [0, 8], sizes = [16, 8], strides = [1, 1]} : vector<16x192xf32> to vector<16x8xf32>
    %40 = arith.truncf %39 : vector<16x8xf32> to vector<16x8xbf16>
    %41 = vector.extract_strided_slice %16 {offsets = [0, 40], sizes = [16, 8], strides = [1, 1]} : vector<16x192xf32> to vector<16x8xf32>
    %42 = arith.truncf %41 : vector<16x8xf32> to vector<16x8xbf16>
    %43 = vector.extract_strided_slice %16 {offsets = [0, 96], sizes = [16, 32], strides = [1, 1]} : vector<16x192xf32> to vector<16x32xf32>
    %44 = arith.truncf %43 : vector<16x32xf32> to vector<16x32xbf16>
    %cst_18 = arith.constant dense<0.000000e+00> : vector<16x16xf32>
    %45 = tpu.matmul %40, %42, %cst_18 {dimension_numbers = #tpu.dot_dimension_numbers<[1], [1], [0], [0], [0, 0, 1, 0], [], []>} : vector<16x8xbf16>, vector<16x8xbf16>, vector<16x16xf32> -> vector<16x16xf32>
    %46 = arith.addf %45, %8 : vector<16x16xf32>
    %cst_19 = arith.constant dense<0xFF800000> : vector<16xf32>
    %47 = vector.multi_reduction <maximumf>, %46, %cst_19 [1] : vector<16x16xf32> to vector<16xf32>
    %48 = vector.shape_cast %47 : vector<16xf32> to vector<16x1xf32>
    %49 = vector.broadcast %48 : vector<16x1xf32> to vector<16x16xf32>
    %50 = arith.subf %46, %49 : vector<16x16xf32>
    %51 = math.exp %50 : vector<16x16xf32>
    %cst_20 = arith.constant dense<0.000000e+00> : vector<16xf32>
    %52 = vector.multi_reduction <add>, %51, %cst_20 [1] : vector<16x16xf32> to vector<16xf32>
    %53 = vector.shape_cast %52 : vector<16xf32> to vector<16x1xf32>
    %54 = tpu.reciprocal %53 {approx = true} : vector<16x1xf32> -> vector<16x1xf32>
    %55 = vector.broadcast %54 : vector<16x1xf32> to vector<16x16xf32>
    %56 = arith.mulf %51, %55 : vector<16x16xf32>
    %57 = arith.truncf %56 : vector<16x16xf32> to vector<16x16xbf16>
    %cst_21 = arith.constant dense<0.000000e+00> : vector<16x32xf32>
    %58 = tpu.matmul %57, %44, %cst_21 {dimension_numbers = #tpu.dot_dimension_numbers<[1], [0], [0], [1], [0, 0, 1, 1], [], []>} : vector<16x16xbf16>, vector<16x32xbf16>, vector<16x32xf32> -> vector<16x32xf32>
    %59 = arith.addf %38, %58 : vector<16x32xf32>
    %60 = vector.extract_strided_slice %16 {offsets = [0, 16], sizes = [16, 8], strides = [1, 1]} : vector<16x192xf32> to vector<16x8xf32>
    %61 = arith.truncf %60 : vector<16x8xf32> to vector<16x8xbf16>
    %62 = vector.extract_strided_slice %16 {offsets = [0, 48], sizes = [16, 8], strides = [1, 1]} : vector<16x192xf32> to vector<16x8xf32>
    %63 = arith.truncf %62 : vector<16x8xf32> to vector<16x8xbf16>
    %64 = vector.extract_strided_slice %16 {offsets = [0, 128], sizes = [16, 32], strides = [1, 1]} : vector<16x192xf32> to vector<16x32xf32>
    %65 = arith.truncf %64 : vector<16x32xf32> to vector<16x32xbf16>
    %cst_22 = arith.constant dense<0.000000e+00> : vector<16x16xf32>
    %66 = tpu.matmul %61, %63, %cst_22 {dimension_numbers = #tpu.dot_dimension_numbers<[1], [1], [0], [0], [0, 0, 1, 0], [], []>} : vector<16x8xbf16>, vector<16x8xbf16>, vector<16x16xf32> -> vector<16x16xf32>
    %67 = arith.addf %66, %8 : vector<16x16xf32>
    %cst_23 = arith.constant dense<0xFF800000> : vector<16xf32>
    %68 = vector.multi_reduction <maximumf>, %67, %cst_23 [1] : vector<16x16xf32> to vector<16xf32>
    %69 = vector.shape_cast %68 : vector<16xf32> to vector<16x1xf32>
    %70 = vector.broadcast %69 : vector<16x1xf32> to vector<16x16xf32>
    %71 = arith.subf %67, %70 : vector<16x16xf32>
    %72 = math.exp %71 : vector<16x16xf32>
    %cst_24 = arith.constant dense<0.000000e+00> : vector<16xf32>
    %73 = vector.multi_reduction <add>, %72, %cst_24 [1] : vector<16x16xf32> to vector<16xf32>
    %74 = vector.shape_cast %73 : vector<16xf32> to vector<16x1xf32>
    %75 = tpu.reciprocal %74 {approx = true} : vector<16x1xf32> -> vector<16x1xf32>
    %76 = vector.broadcast %75 : vector<16x1xf32> to vector<16x16xf32>
    %77 = arith.mulf %72, %76 : vector<16x16xf32>
    %78 = arith.truncf %77 : vector<16x16xf32> to vector<16x16xbf16>
    %cst_25 = arith.constant dense<0.000000e+00> : vector<16x32xf32>
    %79 = tpu.matmul %78, %65, %cst_25 {dimension_numbers = #tpu.dot_dimension_numbers<[1], [0], [0], [1], [0, 0, 1, 1], [], []>} : vector<16x16xbf16>, vector<16x32xbf16>, vector<16x32xf32> -> vector<16x32xf32>
    %80 = arith.addf %59, %79 : vector<16x32xf32>
    %81 = vector.extract_strided_slice %16 {offsets = [0, 24], sizes = [16, 8], strides = [1, 1]} : vector<16x192xf32> to vector<16x8xf32>
    %82 = arith.truncf %81 : vector<16x8xf32> to vector<16x8xbf16>
    %83 = vector.extract_strided_slice %16 {offsets = [0, 56], sizes = [16, 8], strides = [1, 1]} : vector<16x192xf32> to vector<16x8xf32>
    %84 = arith.truncf %83 : vector<16x8xf32> to vector<16x8xbf16>
    %85 = vector.extract_strided_slice %16 {offsets = [0, 160], sizes = [16, 32], strides = [1, 1]} : vector<16x192xf32> to vector<16x32xf32>
    %86 = arith.truncf %85 : vector<16x32xf32> to vector<16x32xbf16>
    %cst_26 = arith.constant dense<0.000000e+00> : vector<16x16xf32>
    %87 = tpu.matmul %82, %84, %cst_26 {dimension_numbers = #tpu.dot_dimension_numbers<[1], [1], [0], [0], [0, 0, 1, 0], [], []>} : vector<16x8xbf16>, vector<16x8xbf16>, vector<16x16xf32> -> vector<16x16xf32>
    %88 = arith.addf %87, %8 : vector<16x16xf32>
    %cst_27 = arith.constant dense<0xFF800000> : vector<16xf32>
    %89 = vector.multi_reduction <maximumf>, %88, %cst_27 [1] : vector<16x16xf32> to vector<16xf32>
    %90 = vector.shape_cast %89 : vector<16xf32> to vector<16x1xf32>
    %91 = vector.broadcast %90 : vector<16x1xf32> to vector<16x16xf32>
    %92 = arith.subf %88, %91 : vector<16x16xf32>
    %93 = math.exp %92 : vector<16x16xf32>
    %cst_28 = arith.constant dense<0.000000e+00> : vector<16xf32>
    %94 = vector.multi_reduction <add>, %93, %cst_28 [1] : vector<16x16xf32> to vector<16xf32>
    %95 = vector.shape_cast %94 : vector<16xf32> to vector<16x1xf32>
    %96 = tpu.reciprocal %95 {approx = true} : vector<16x1xf32> -> vector<16x1xf32>
    %97 = vector.broadcast %96 : vector<16x1xf32> to vector<16x16xf32>
    %98 = arith.mulf %93, %97 : vector<16x16xf32>
    %99 = arith.truncf %98 : vector<16x16xf32> to vector<16x16xbf16>
    %cst_29 = arith.constant dense<0.000000e+00> : vector<16x32xf32>
    %100 = tpu.matmul %99, %86, %cst_29 {dimension_numbers = #tpu.dot_dimension_numbers<[1], [0], [0], [1], [0, 0, 1, 1], [], []>} : vector<16x16xbf16>, vector<16x32xbf16>, vector<16x32xf32> -> vector<16x32xf32>
    %101 = arith.addf %80, %100 : vector<16x32xf32>
    %102 = arith.addf %0, %101 : vector<16x32xf32>
    %c0_30 = arith.constant 0 : index
    %c0_31 = arith.constant 0 : index
    %c0_32 = arith.constant 0 : index
    %103 = vector.load %arg5[%c0_30, %c0_31, %c0_32] : memref<2x1x32xf32, #tpu.memory_space<vmem>>, vector<1x1x32xf32>
    %104 = vector.shape_cast %103 : vector<1x1x32xf32> to vector<1x32xf32>
    %105 = vector.broadcast %104 : vector<1x32xf32> to vector<16x32xf32>
    %106 = arith.addf %102, %105 : vector<16x32xf32>
    %c0_33 = arith.constant 0 : index
    %c0_34 = arith.constant 0 : index
    %c0_35 = arith.constant 0 : index
    %107 = vector.load %arg6[%c0_33, %c0_34, %c0_35] : memref<2x1x32xf32, #tpu.memory_space<vmem>>, vector<1x1x32xf32>
    %108 = vector.shape_cast %107 : vector<1x1x32xf32> to vector<1x32xf32>
    %c0_36 = arith.constant 0 : index
    %c0_37 = arith.constant 0 : index
    %c0_38 = arith.constant 0 : index
    %109 = vector.load %arg7[%c0_36, %c0_37, %c0_38] : memref<2x1x32xf32, #tpu.memory_space<vmem>>, vector<1x1x32xf32>
    %110 = vector.shape_cast %109 : vector<1x1x32xf32> to vector<1x32xf32>
    %cst_39 = arith.constant dense<0.000000e+00> : vector<16xf32>
    %111 = vector.multi_reduction <add>, %106, %cst_39 [1] : vector<16x32xf32> to vector<16xf32>
    %112 = vector.shape_cast %111 : vector<16xf32> to vector<16x1xf32>
    %cst_40 = arith.constant 3.200000e+01 : f32
    %113 = vector.broadcast %cst_40 : f32 to vector<16x1xf32>
    %114 = arith.divf %112, %113 : vector<16x1xf32>
    %115 = vector.broadcast %114 : vector<16x1xf32> to vector<16x32xf32>
    %116 = arith.subf %106, %115 : vector<16x32xf32>
    %117 = arith.mulf %116, %116 : vector<16x32xf32>
    %cst_41 = arith.constant dense<0.000000e+00> : vector<16xf32>
    %118 = vector.multi_reduction <add>, %117, %cst_41 [1] : vector<16x32xf32> to vector<16xf32>
    %119 = vector.shape_cast %118 : vector<16xf32> to vector<16x1xf32>
    %cst_42 = arith.constant 3.200000e+01 : f32
    %120 = vector.broadcast %cst_42 : f32 to vector<16x1xf32>
    %121 = arith.divf %119, %120 : vector<16x1xf32>
    %122 = vector.broadcast %114 : vector<16x1xf32> to vector<16x32xf32>
    %123 = arith.subf %106, %122 : vector<16x32xf32>
    %cst_43 = arith.constant 9.99999974E-6 : f32
    %124 = vector.broadcast %cst_43 : f32 to vector<16x1xf32>
    %125 = arith.addf %121, %124 : vector<16x1xf32>
    %126 = math.rsqrt %125 : vector<16x1xf32>
    %127 = vector.broadcast %126 : vector<16x1xf32> to vector<16x32xf32>
    %128 = arith.mulf %123, %127 : vector<16x32xf32>
    %129 = vector.broadcast %108 : vector<1x32xf32> to vector<16x32xf32>
    %130 = arith.mulf %128, %129 : vector<16x32xf32>
    %131 = vector.broadcast %110 : vector<1x32xf32> to vector<16x32xf32>
    %132 = arith.addf %130, %131 : vector<16x32xf32>
    %133 = arith.truncf %132 : vector<16x32xf32> to vector<16x32xbf16>
    %c0_44 = arith.constant 0 : index
    %c0_45 = arith.constant 0 : index
    %c0_46 = arith.constant 0 : index
    %134 = vector.load %arg8[%c0_44, %c0_45, %c0_46] : memref<2x32x2048xbf16, #tpu.memory_space<vmem>>, vector<1x32x2048xbf16>
    %135 = vector.shape_cast %134 : vector<1x32x2048xbf16> to vector<32x2048xbf16>
    %cst_47 = arith.constant dense<0.000000e+00> : vector<16x2048xf32>
    %136 = tpu.matmul %133, %135, %cst_47 {dimension_numbers = #tpu.dot_dimension_numbers<[1], [0], [0], [1], [0, 0, 1, 1], [], []>} : vector<16x32xbf16>, vector<32x2048xbf16>, vector<16x2048xf32> -> vector<16x2048xf32>
    %c0_48 = arith.constant 0 : index
    %c0_49 = arith.constant 0 : index
    %c0_50 = arith.constant 0 : index
    %137 = vector.load %arg9[%c0_48, %c0_49, %c0_50] : memref<2x1x2048xf32, #tpu.memory_space<vmem>>, vector<1x1x2048xf32>
    %138 = vector.shape_cast %137 : vector<1x1x2048xf32> to vector<1x2048xf32>
    %139 = vector.broadcast %138 : vector<1x2048xf32> to vector<16x2048xf32>
    %140 = arith.addf %136, %139 : vector<16x2048xf32>
    %cst_51 = arith.constant 0.000000e+00 : f32
    %141 = vector.broadcast %cst_51 : f32 to vector<16x2048xf32>
    %142 = arith.maximumf %140, %141 : vector<16x2048xf32>
    %143 = arith.truncf %142 : vector<16x2048xf32> to vector<16x2048xbf16>
    %c0_52 = arith.constant 0 : index
    %c0_53 = arith.constant 0 : index
    %c0_54 = arith.constant 0 : index
    %144 = vector.load %arg10[%c0_52, %c0_53, %c0_54] : memref<2x2048x32xbf16, #tpu.memory_space<vmem>>, vector<1x2048x32xbf16>
    %145 = vector.shape_cast %144 : vector<1x2048x32xbf16> to vector<2048x32xbf16>
    %cst_55 = arith.constant dense<0.000000e+00> : vector<16x32xf32>
    %146 = tpu.matmul %143, %145, %cst_55 {dimension_numbers = #tpu.dot_dimension_numbers<[1], [0], [0], [1], [0, 0, 1, 1], [], []>} : vector<16x2048xbf16>, vector<2048x32xbf16>, vector<16x32xf32> -> vector<16x32xf32>
    %c0_56 = arith.constant 0 : index
    %c0_57 = arith.constant 0 : index
    %c0_58 = arith.constant 0 : index
    %147 = vector.load %arg11[%c0_56, %c0_57, %c0_58] : memref<2x1x32xf32, #tpu.memory_space<vmem>>, vector<1x1x32xf32>
    %148 = vector.shape_cast %147 : vector<1x1x32xf32> to vector<1x32xf32>
    %149 = vector.broadcast %148 : vector<1x32xf32> to vector<16x32xf32>
    %150 = arith.addf %146, %149 : vector<16x32xf32>
    %151 = arith.addf %132, %150 : vector<16x32xf32>
    %c0_59 = arith.constant 0 : index
    %c0_60 = arith.constant 0 : index
    %c0_61 = arith.constant 0 : index
    %152 = vector.load %arg12[%c0_59, %c0_60, %c0_61] : memref<2x1x32xf32, #tpu.memory_space<vmem>>, vector<1x1x32xf32>
    %153 = vector.shape_cast %152 : vector<1x1x32xf32> to vector<1x32xf32>
    %c0_62 = arith.constant 0 : index
    %c0_63 = arith.constant 0 : index
    %c0_64 = arith.constant 0 : index
    %154 = vector.load %arg13[%c0_62, %c0_63, %c0_64] : memref<2x1x32xf32, #tpu.memory_space<vmem>>, vector<1x1x32xf32>
    %155 = vector.shape_cast %154 : vector<1x1x32xf32> to vector<1x32xf32>
    %cst_65 = arith.constant dense<0.000000e+00> : vector<16xf32>
    %156 = vector.multi_reduction <add>, %151, %cst_65 [1] : vector<16x32xf32> to vector<16xf32>
    %157 = vector.shape_cast %156 : vector<16xf32> to vector<16x1xf32>
    %cst_66 = arith.constant 3.200000e+01 : f32
    %158 = vector.broadcast %cst_66 : f32 to vector<16x1xf32>
    %159 = arith.divf %157, %158 : vector<16x1xf32>
    %160 = vector.broadcast %159 : vector<16x1xf32> to vector<16x32xf32>
    %161 = arith.subf %151, %160 : vector<16x32xf32>
    %162 = arith.mulf %161, %161 : vector<16x32xf32>
    %cst_67 = arith.constant dense<0.000000e+00> : vector<16xf32>
    %163 = vector.multi_reduction <add>, %162, %cst_67 [1] : vector<16x32xf32> to vector<16xf32>
    %164 = vector.shape_cast %163 : vector<16xf32> to vector<16x1xf32>
    %cst_68 = arith.constant 3.200000e+01 : f32
    %165 = vector.broadcast %cst_68 : f32 to vector<16x1xf32>
    %166 = arith.divf %164, %165 : vector<16x1xf32>
    %167 = vector.broadcast %159 : vector<16x1xf32> to vector<16x32xf32>
    %168 = arith.subf %151, %167 : vector<16x32xf32>
    %cst_69 = arith.constant 9.99999974E-6 : f32
    %169 = vector.broadcast %cst_69 : f32 to vector<16x1xf32>
    %170 = arith.addf %166, %169 : vector<16x1xf32>
    %171 = math.rsqrt %170 : vector<16x1xf32>
    %172 = vector.broadcast %171 : vector<16x1xf32> to vector<16x32xf32>
    %173 = arith.mulf %168, %172 : vector<16x32xf32>
    %174 = vector.broadcast %153 : vector<1x32xf32> to vector<16x32xf32>
    %175 = arith.mulf %173, %174 : vector<16x32xf32>
    %176 = vector.broadcast %155 : vector<1x32xf32> to vector<16x32xf32>
    %177 = arith.addf %175, %176 : vector<16x32xf32>
    %178 = arith.truncf %177 : vector<16x32xf32> to vector<16x32xbf16>
    %c1 = arith.constant 1 : index
    %c0_70 = arith.constant 0 : index
    %c0_71 = arith.constant 0 : index
    %179 = vector.load %arg3[%c1, %c0_70, %c0_71] : memref<2x32x192xbf16, #tpu.memory_space<vmem>>, vector<1x32x192xbf16>
    %180 = vector.shape_cast %179 : vector<1x32x192xbf16> to vector<32x192xbf16>
    %cst_72 = arith.constant dense<0.000000e+00> : vector<16x192xf32>
    %181 = tpu.matmul %178, %180, %cst_72 {dimension_numbers = #tpu.dot_dimension_numbers<[1], [0], [0], [1], [0, 0, 1, 1], [], []>} : vector<16x32xbf16>, vector<32x192xbf16>, vector<16x192xf32> -> vector<16x192xf32>
    %c1_73 = arith.constant 1 : index
    %c0_74 = arith.constant 0 : index
    %c0_75 = arith.constant 0 : index
    %182 = vector.load %arg4[%c1_73, %c0_74, %c0_75] : memref<2x1x192xf32, #tpu.memory_space<vmem>>, vector<1x1x192xf32>
    %183 = vector.shape_cast %182 : vector<1x1x192xf32> to vector<1x192xf32>
    %184 = vector.broadcast %183 : vector<1x192xf32> to vector<16x192xf32>
    %185 = arith.addf %181, %184 : vector<16x192xf32>
    %cst_76 = arith.constant 0.000000e+00 : f32
    %186 = vector.broadcast %cst_76 : f32 to vector<16x32xf32>
    %187 = vector.extract_strided_slice %185 {offsets = [0, 0], sizes = [16, 8], strides = [1, 1]} : vector<16x192xf32> to vector<16x8xf32>
    %188 = arith.truncf %187 : vector<16x8xf32> to vector<16x8xbf16>
    %189 = vector.extract_strided_slice %185 {offsets = [0, 32], sizes = [16, 8], strides = [1, 1]} : vector<16x192xf32> to vector<16x8xf32>
    %190 = arith.truncf %189 : vector<16x8xf32> to vector<16x8xbf16>
    %191 = vector.extract_strided_slice %185 {offsets = [0, 64], sizes = [16, 32], strides = [1, 1]} : vector<16x192xf32> to vector<16x32xf32>
    %192 = arith.truncf %191 : vector<16x32xf32> to vector<16x32xbf16>
    %cst_77 = arith.constant dense<0.000000e+00> : vector<16x16xf32>
    %193 = tpu.matmul %188, %190, %cst_77 {dimension_numbers = #tpu.dot_dimension_numbers<[1], [1], [0], [0], [0, 0, 1, 0], [], []>} : vector<16x8xbf16>, vector<16x8xbf16>, vector<16x16xf32> -> vector<16x16xf32>
    %194 = arith.addf %193, %8 : vector<16x16xf32>
    %cst_78 = arith.constant dense<0xFF800000> : vector<16xf32>
    %195 = vector.multi_reduction <maximumf>, %194, %cst_78 [1] : vector<16x16xf32> to vector<16xf32>
    %196 = vector.shape_cast %195 : vector<16xf32> to vector<16x1xf32>
    %197 = vector.broadcast %196 : vector<16x1xf32> to vector<16x16xf32>
    %198 = arith.subf %194, %197 : vector<16x16xf32>
    %199 = math.exp %198 : vector<16x16xf32>
    %cst_79 = arith.constant dense<0.000000e+00> : vector<16xf32>
    %200 = vector.multi_reduction <add>, %199, %cst_79 [1] : vector<16x16xf32> to vector<16xf32>
    %201 = vector.shape_cast %200 : vector<16xf32> to vector<16x1xf32>
    %202 = tpu.reciprocal %201 {approx = true} : vector<16x1xf32> -> vector<16x1xf32>
    %203 = vector.broadcast %202 : vector<16x1xf32> to vector<16x16xf32>
    %204 = arith.mulf %199, %203 : vector<16x16xf32>
    %205 = arith.truncf %204 : vector<16x16xf32> to vector<16x16xbf16>
    %cst_80 = arith.constant dense<0.000000e+00> : vector<16x32xf32>
    %206 = tpu.matmul %205, %192, %cst_80 {dimension_numbers = #tpu.dot_dimension_numbers<[1], [0], [0], [1], [0, 0, 1, 1], [], []>} : vector<16x16xbf16>, vector<16x32xbf16>, vector<16x32xf32> -> vector<16x32xf32>
    %207 = arith.addf %186, %206 : vector<16x32xf32>
    %208 = vector.extract_strided_slice %185 {offsets = [0, 8], sizes = [16, 8], strides = [1, 1]} : vector<16x192xf32> to vector<16x8xf32>
    %209 = arith.truncf %208 : vector<16x8xf32> to vector<16x8xbf16>
    %210 = vector.extract_strided_slice %185 {offsets = [0, 40], sizes = [16, 8], strides = [1, 1]} : vector<16x192xf32> to vector<16x8xf32>
    %211 = arith.truncf %210 : vector<16x8xf32> to vector<16x8xbf16>
    %212 = vector.extract_strided_slice %185 {offsets = [0, 96], sizes = [16, 32], strides = [1, 1]} : vector<16x192xf32> to vector<16x32xf32>
    %213 = arith.truncf %212 : vector<16x32xf32> to vector<16x32xbf16>
    %cst_81 = arith.constant dense<0.000000e+00> : vector<16x16xf32>
    %214 = tpu.matmul %209, %211, %cst_81 {dimension_numbers = #tpu.dot_dimension_numbers<[1], [1], [0], [0], [0, 0, 1, 0], [], []>} : vector<16x8xbf16>, vector<16x8xbf16>, vector<16x16xf32> -> vector<16x16xf32>
    %215 = arith.addf %214, %8 : vector<16x16xf32>
    %cst_82 = arith.constant dense<0xFF800000> : vector<16xf32>
    %216 = vector.multi_reduction <maximumf>, %215, %cst_82 [1] : vector<16x16xf32> to vector<16xf32>
    %217 = vector.shape_cast %216 : vector<16xf32> to vector<16x1xf32>
    %218 = vector.broadcast %217 : vector<16x1xf32> to vector<16x16xf32>
    %219 = arith.subf %215, %218 : vector<16x16xf32>
    %220 = math.exp %219 : vector<16x16xf32>
    %cst_83 = arith.constant dense<0.000000e+00> : vector<16xf32>
    %221 = vector.multi_reduction <add>, %220, %cst_83 [1] : vector<16x16xf32> to vector<16xf32>
    %222 = vector.shape_cast %221 : vector<16xf32> to vector<16x1xf32>
    %223 = tpu.reciprocal %222 {approx = true} : vector<16x1xf32> -> vector<16x1xf32>
    %224 = vector.broadcast %223 : vector<16x1xf32> to vector<16x16xf32>
    %225 = arith.mulf %220, %224 : vector<16x16xf32>
    %226 = arith.truncf %225 : vector<16x16xf32> to vector<16x16xbf16>
    %cst_84 = arith.constant dense<0.000000e+00> : vector<16x32xf32>
    %227 = tpu.matmul %226, %213, %cst_84 {dimension_numbers = #tpu.dot_dimension_numbers<[1], [0], [0], [1], [0, 0, 1, 1], [], []>} : vector<16x16xbf16>, vector<16x32xbf16>, vector<16x32xf32> -> vector<16x32xf32>
    %228 = arith.addf %207, %227 : vector<16x32xf32>
    %229 = vector.extract_strided_slice %185 {offsets = [0, 16], sizes = [16, 8], strides = [1, 1]} : vector<16x192xf32> to vector<16x8xf32>
    %230 = arith.truncf %229 : vector<16x8xf32> to vector<16x8xbf16>
    %231 = vector.extract_strided_slice %185 {offsets = [0, 48], sizes = [16, 8], strides = [1, 1]} : vector<16x192xf32> to vector<16x8xf32>
    %232 = arith.truncf %231 : vector<16x8xf32> to vector<16x8xbf16>
    %233 = vector.extract_strided_slice %185 {offsets = [0, 128], sizes = [16, 32], strides = [1, 1]} : vector<16x192xf32> to vector<16x32xf32>
    %234 = arith.truncf %233 : vector<16x32xf32> to vector<16x32xbf16>
    %cst_85 = arith.constant dense<0.000000e+00> : vector<16x16xf32>
    %235 = tpu.matmul %230, %232, %cst_85 {dimension_numbers = #tpu.dot_dimension_numbers<[1], [1], [0], [0], [0, 0, 1, 0], [], []>} : vector<16x8xbf16>, vector<16x8xbf16>, vector<16x16xf32> -> vector<16x16xf32>
    %236 = arith.addf %235, %8 : vector<16x16xf32>
    %cst_86 = arith.constant dense<0xFF800000> : vector<16xf32>
    %237 = vector.multi_reduction <maximumf>, %236, %cst_86 [1] : vector<16x16xf32> to vector<16xf32>
    %238 = vector.shape_cast %237 : vector<16xf32> to vector<16x1xf32>
    %239 = vector.broadcast %238 : vector<16x1xf32> to vector<16x16xf32>
    %240 = arith.subf %236, %239 : vector<16x16xf32>
    %241 = math.exp %240 : vector<16x16xf32>
    %cst_87 = arith.constant dense<0.000000e+00> : vector<16xf32>
    %242 = vector.multi_reduction <add>, %241, %cst_87 [1] : vector<16x16xf32> to vector<16xf32>
    %243 = vector.shape_cast %242 : vector<16xf32> to vector<16x1xf32>
    %244 = tpu.reciprocal %243 {approx = true} : vector<16x1xf32> -> vector<16x1xf32>
    %245 = vector.broadcast %244 : vector<16x1xf32> to vector<16x16xf32>
    %246 = arith.mulf %241, %245 : vector<16x16xf32>
    %247 = arith.truncf %246 : vector<16x16xf32> to vector<16x16xbf16>
    %cst_88 = arith.constant dense<0.000000e+00> : vector<16x32xf32>
    %248 = tpu.matmul %247, %234, %cst_88 {dimension_numbers = #tpu.dot_dimension_numbers<[1], [0], [0], [1], [0, 0, 1, 1], [], []>} : vector<16x16xbf16>, vector<16x32xbf16>, vector<16x32xf32> -> vector<16x32xf32>
    %249 = arith.addf %228, %248 : vector<16x32xf32>
    %250 = vector.extract_strided_slice %185 {offsets = [0, 24], sizes = [16, 8], strides = [1, 1]} : vector<16x192xf32> to vector<16x8xf32>
    %251 = arith.truncf %250 : vector<16x8xf32> to vector<16x8xbf16>
    %252 = vector.extract_strided_slice %185 {offsets = [0, 56], sizes = [16, 8], strides = [1, 1]} : vector<16x192xf32> to vector<16x8xf32>
    %253 = arith.truncf %252 : vector<16x8xf32> to vector<16x8xbf16>
    %254 = vector.extract_strided_slice %185 {offsets = [0, 160], sizes = [16, 32], strides = [1, 1]} : vector<16x192xf32> to vector<16x32xf32>
    %255 = arith.truncf %254 : vector<16x32xf32> to vector<16x32xbf16>
    %cst_89 = arith.constant dense<0.000000e+00> : vector<16x16xf32>
    %256 = tpu.matmul %251, %253, %cst_89 {dimension_numbers = #tpu.dot_dimension_numbers<[1], [1], [0], [0], [0, 0, 1, 0], [], []>} : vector<16x8xbf16>, vector<16x8xbf16>, vector<16x16xf32> -> vector<16x16xf32>
    %257 = arith.addf %256, %8 : vector<16x16xf32>
    %cst_90 = arith.constant dense<0xFF800000> : vector<16xf32>
    %258 = vector.multi_reduction <maximumf>, %257, %cst_90 [1] : vector<16x16xf32> to vector<16xf32>
    %259 = vector.shape_cast %258 : vector<16xf32> to vector<16x1xf32>
    %260 = vector.broadcast %259 : vector<16x1xf32> to vector<16x16xf32>
    %261 = arith.subf %257, %260 : vector<16x16xf32>
    %262 = math.exp %261 : vector<16x16xf32>
    %cst_91 = arith.constant dense<0.000000e+00> : vector<16xf32>
    %263 = vector.multi_reduction <add>, %262, %cst_91 [1] : vector<16x16xf32> to vector<16xf32>
    %264 = vector.shape_cast %263 : vector<16xf32> to vector<16x1xf32>
    %265 = tpu.reciprocal %264 {approx = true} : vector<16x1xf32> -> vector<16x1xf32>
    %266 = vector.broadcast %265 : vector<16x1xf32> to vector<16x16xf32>
    %267 = arith.mulf %262, %266 : vector<16x16xf32>
    %268 = arith.truncf %267 : vector<16x16xf32> to vector<16x16xbf16>
    %cst_92 = arith.constant dense<0.000000e+00> : vector<16x32xf32>
    %269 = tpu.matmul %268, %255, %cst_92 {dimension_numbers = #tpu.dot_dimension_numbers<[1], [0], [0], [1], [0, 0, 1, 1], [], []>} : vector<16x16xbf16>, vector<16x32xbf16>, vector<16x32xf32> -> vector<16x32xf32>
    %270 = arith.addf %249, %269 : vector<16x32xf32>
    %271 = arith.addf %177, %270 : vector<16x32xf32>
    %c1_93 = arith.constant 1 : index
    %c0_94 = arith.constant 0 : index
    %c0_95 = arith.constant 0 : index
    %272 = vector.load %arg5[%c1_93, %c0_94, %c0_95] : memref<2x1x32xf32, #tpu.memory_space<vmem>>, vector<1x1x32xf32>
    %273 = vector.shape_cast %272 : vector<1x1x32xf32> to vector<1x32xf32>
    %274 = vector.broadcast %273 : vector<1x32xf32> to vector<16x32xf32>
    %275 = arith.addf %271, %274 : vector<16x32xf32>
    %c1_96 = arith.constant 1 : index
    %c0_97 = arith.constant 0 : index
    %c0_98 = arith.constant 0 : index
    %276 = vector.load %arg6[%c1_96, %c0_97, %c0_98] : memref<2x1x32xf32, #tpu.memory_space<vmem>>, vector<1x1x32xf32>
    %277 = vector.shape_cast %276 : vector<1x1x32xf32> to vector<1x32xf32>
    %c1_99 = arith.constant 1 : index
    %c0_100 = arith.constant 0 : index
    %c0_101 = arith.constant 0 : index
    %278 = vector.load %arg7[%c1_99, %c0_100, %c0_101] : memref<2x1x32xf32, #tpu.memory_space<vmem>>, vector<1x1x32xf32>
    %279 = vector.shape_cast %278 : vector<1x1x32xf32> to vector<1x32xf32>
    %cst_102 = arith.constant dense<0.000000e+00> : vector<16xf32>
    %280 = vector.multi_reduction <add>, %275, %cst_102 [1] : vector<16x32xf32> to vector<16xf32>
    %281 = vector.shape_cast %280 : vector<16xf32> to vector<16x1xf32>
    %cst_103 = arith.constant 3.200000e+01 : f32
    %282 = vector.broadcast %cst_103 : f32 to vector<16x1xf32>
    %283 = arith.divf %281, %282 : vector<16x1xf32>
    %284 = vector.broadcast %283 : vector<16x1xf32> to vector<16x32xf32>
    %285 = arith.subf %275, %284 : vector<16x32xf32>
    %286 = arith.mulf %285, %285 : vector<16x32xf32>
    %cst_104 = arith.constant dense<0.000000e+00> : vector<16xf32>
    %287 = vector.multi_reduction <add>, %286, %cst_104 [1] : vector<16x32xf32> to vector<16xf32>
    %288 = vector.shape_cast %287 : vector<16xf32> to vector<16x1xf32>
    %cst_105 = arith.constant 3.200000e+01 : f32
    %289 = vector.broadcast %cst_105 : f32 to vector<16x1xf32>
    %290 = arith.divf %288, %289 : vector<16x1xf32>
    %291 = vector.broadcast %283 : vector<16x1xf32> to vector<16x32xf32>
    %292 = arith.subf %275, %291 : vector<16x32xf32>
    %cst_106 = arith.constant 9.99999974E-6 : f32
    %293 = vector.broadcast %cst_106 : f32 to vector<16x1xf32>
    %294 = arith.addf %290, %293 : vector<16x1xf32>
    %295 = math.rsqrt %294 : vector<16x1xf32>
    %296 = vector.broadcast %295 : vector<16x1xf32> to vector<16x32xf32>
    %297 = arith.mulf %292, %296 : vector<16x32xf32>
    %298 = vector.broadcast %277 : vector<1x32xf32> to vector<16x32xf32>
    %299 = arith.mulf %297, %298 : vector<16x32xf32>
    %300 = vector.broadcast %279 : vector<1x32xf32> to vector<16x32xf32>
    %301 = arith.addf %299, %300 : vector<16x32xf32>
    %302 = arith.truncf %301 : vector<16x32xf32> to vector<16x32xbf16>
    %c1_107 = arith.constant 1 : index
    %c0_108 = arith.constant 0 : index
    %c0_109 = arith.constant 0 : index
    %303 = vector.load %arg8[%c1_107, %c0_108, %c0_109] : memref<2x32x2048xbf16, #tpu.memory_space<vmem>>, vector<1x32x2048xbf16>
    %304 = vector.shape_cast %303 : vector<1x32x2048xbf16> to vector<32x2048xbf16>
    %cst_110 = arith.constant dense<0.000000e+00> : vector<16x2048xf32>
    %305 = tpu.matmul %302, %304, %cst_110 {dimension_numbers = #tpu.dot_dimension_numbers<[1], [0], [0], [1], [0, 0, 1, 1], [], []>} : vector<16x32xbf16>, vector<32x2048xbf16>, vector<16x2048xf32> -> vector<16x2048xf32>
    %c1_111 = arith.constant 1 : index
    %c0_112 = arith.constant 0 : index
    %c0_113 = arith.constant 0 : index
    %306 = vector.load %arg9[%c1_111, %c0_112, %c0_113] : memref<2x1x2048xf32, #tpu.memory_space<vmem>>, vector<1x1x2048xf32>
    %307 = vector.shape_cast %306 : vector<1x1x2048xf32> to vector<1x2048xf32>
    %308 = vector.broadcast %307 : vector<1x2048xf32> to vector<16x2048xf32>
    %309 = arith.addf %305, %308 : vector<16x2048xf32>
    %cst_114 = arith.constant 0.000000e+00 : f32
    %310 = vector.broadcast %cst_114 : f32 to vector<16x2048xf32>
    %311 = arith.maximumf %309, %310 : vector<16x2048xf32>
    %312 = arith.truncf %311 : vector<16x2048xf32> to vector<16x2048xbf16>
    %c1_115 = arith.constant 1 : index
    %c0_116 = arith.constant 0 : index
    %c0_117 = arith.constant 0 : index
    %313 = vector.load %arg10[%c1_115, %c0_116, %c0_117] : memref<2x2048x32xbf16, #tpu.memory_space<vmem>>, vector<1x2048x32xbf16>
    %314 = vector.shape_cast %313 : vector<1x2048x32xbf16> to vector<2048x32xbf16>
    %cst_118 = arith.constant dense<0.000000e+00> : vector<16x32xf32>
    %315 = tpu.matmul %312, %314, %cst_118 {dimension_numbers = #tpu.dot_dimension_numbers<[1], [0], [0], [1], [0, 0, 1, 1], [], []>} : vector<16x2048xbf16>, vector<2048x32xbf16>, vector<16x32xf32> -> vector<16x32xf32>
    %c1_119 = arith.constant 1 : index
    %c0_120 = arith.constant 0 : index
    %c0_121 = arith.constant 0 : index
    %316 = vector.load %arg11[%c1_119, %c0_120, %c0_121] : memref<2x1x32xf32, #tpu.memory_space<vmem>>, vector<1x1x32xf32>
    %317 = vector.shape_cast %316 : vector<1x1x32xf32> to vector<1x32xf32>
    %318 = vector.broadcast %317 : vector<1x32xf32> to vector<16x32xf32>
    %319 = arith.addf %315, %318 : vector<16x32xf32>
    %320 = arith.addf %301, %319 : vector<16x32xf32>
    %c1_122 = arith.constant 1 : index
    %c0_123 = arith.constant 0 : index
    %c0_124 = arith.constant 0 : index
    %321 = vector.load %arg12[%c1_122, %c0_123, %c0_124] : memref<2x1x32xf32, #tpu.memory_space<vmem>>, vector<1x1x32xf32>
    %322 = vector.shape_cast %321 : vector<1x1x32xf32> to vector<1x32xf32>
    %c1_125 = arith.constant 1 : index
    %c0_126 = arith.constant 0 : index
    %c0_127 = arith.constant 0 : index
    %323 = vector.load %arg13[%c1_125, %c0_126, %c0_127] : memref<2x1x32xf32, #tpu.memory_space<vmem>>, vector<1x1x32xf32>
    %324 = vector.shape_cast %323 : vector<1x1x32xf32> to vector<1x32xf32>
    %cst_128 = arith.constant dense<0.000000e+00> : vector<16xf32>
    %325 = vector.multi_reduction <add>, %320, %cst_128 [1] : vector<16x32xf32> to vector<16xf32>
    %326 = vector.shape_cast %325 : vector<16xf32> to vector<16x1xf32>
    %cst_129 = arith.constant 3.200000e+01 : f32
    %327 = vector.broadcast %cst_129 : f32 to vector<16x1xf32>
    %328 = arith.divf %326, %327 : vector<16x1xf32>
    %329 = vector.broadcast %328 : vector<16x1xf32> to vector<16x32xf32>
    %330 = arith.subf %320, %329 : vector<16x32xf32>
    %331 = arith.mulf %330, %330 : vector<16x32xf32>
    %cst_130 = arith.constant dense<0.000000e+00> : vector<16xf32>
    %332 = vector.multi_reduction <add>, %331, %cst_130 [1] : vector<16x32xf32> to vector<16xf32>
    %333 = vector.shape_cast %332 : vector<16xf32> to vector<16x1xf32>
    %cst_131 = arith.constant 3.200000e+01 : f32
    %334 = vector.broadcast %cst_131 : f32 to vector<16x1xf32>
    %335 = arith.divf %333, %334 : vector<16x1xf32>
    %336 = vector.broadcast %328 : vector<16x1xf32> to vector<16x32xf32>
    %337 = arith.subf %320, %336 : vector<16x32xf32>
    %cst_132 = arith.constant 9.99999974E-6 : f32
    %338 = vector.broadcast %cst_132 : f32 to vector<16x1xf32>
    %339 = arith.addf %335, %338 : vector<16x1xf32>
    %340 = math.rsqrt %339 : vector<16x1xf32>
    %341 = vector.broadcast %340 : vector<16x1xf32> to vector<16x32xf32>
    %342 = arith.mulf %337, %341 : vector<16x32xf32>
    %343 = vector.broadcast %322 : vector<1x32xf32> to vector<16x32xf32>
    %344 = arith.mulf %342, %343 : vector<16x32xf32>
    %345 = vector.broadcast %324 : vector<1x32xf32> to vector<16x32xf32>
    %346 = arith.addf %344, %345 : vector<16x32xf32>
    %347 = vector.extract_strided_slice %346 {offsets = [14, 0], sizes = [2, 32], strides = [1, 1]} : vector<16x32xf32> to vector<2x32xf32>
    %c0_133 = arith.constant 0 : index
    %c0_134 = arith.constant 0 : index
    %348 = vector.load %arg14[%c0_133, %c0_134] : memref<32x16xf32, #tpu.memory_space<vmem>>, vector<32x16xf32>
    %cst_135 = arith.constant dense<0.000000e+00> : vector<2x16xf32>
    %349 = tpu.matmul %347, %348, %cst_135 {dimension_numbers = #tpu.dot_dimension_numbers<[1], [0], [0], [1], [0, 0, 1, 1], [], []>} : vector<2x32xf32>, vector<32x16xf32>, vector<2x16xf32> -> vector<2x16xf32>
    %c0_136 = arith.constant 0 : index
    %c0_137 = arith.constant 0 : index
    %350 = vector.load %arg15[%c0_136, %c0_137] : memref<1x16xf32, #tpu.memory_space<vmem>>, vector<1x16xf32>
    %351 = vector.broadcast %350 : vector<1x16xf32> to vector<2x16xf32>
    %352 = arith.addf %349, %351 : vector<2x16xf32>
    %c0_138 = arith.constant 0 : index
    %c0_139 = arith.constant 0 : index
    %353 = vector.load %arg16[%c0_138, %c0_139] : memref<2x16xf32, #tpu.memory_space<vmem>>, vector<2x16xf32>
    tpu.vector_store %arg16[%c0_138, %c0_139], %352 {strides = array<i32>} : memref<2x16xf32, #tpu.memory_space<vmem>>, vector<2x16xf32>,
    return
  }
}

</mosaic_0001>

<llo_original>
// kernel: char_transformer_forward.1
$region0: #{char_transformer_forward.1}
  #allocation0 [shape = 'u32[]', space=smem, size = 0x4, offset = 0x4, fixed_abs, tag = 'smem constant byte address 0x4 - core index']
  #allocation1 [shape = 'u32[144,128]{1,0:T(1,128)}', space=vmem, size = 0x12000, scoped, tag = 'internal scratch']
  %s0 = inlined_call_operand.vmem [shape: f32[16,32], index: 0, kind: input, shape index: {}]
  %s1 = inlined_call_operand.vmem [shape: s32[16,1], index: 1, kind: input, shape index: {}]
  %s2 = inlined_call_operand.vmem [shape: s32[1,16], index: 2, kind: input, shape index: {}]
  %s3 = inlined_call_operand.vmem [shape: bf16[2,32,192], index: 3, kind: input, shape index: {}]
  %s4 = inlined_call_operand.vmem [shape: f32[2,1,192], index: 4, kind: input, shape index: {}]
  %s5 = inlined_call_operand.vmem [shape: f32[2,1,32], index: 5, kind: input, shape index: {}]
  %s6 = inlined_call_operand.vmem [shape: f32[2,1,32], index: 6, kind: input, shape index: {}]
  %s7 = inlined_call_operand.vmem [shape: f32[2,1,32], index: 7, kind: input, shape index: {}]
  %s8 = inlined_call_operand.vmem [shape: bf16[2,32,2048], index: 8, kind: input, shape index: {}]
  %s9 = inlined_call_operand.vmem [shape: f32[2,1,2048], index: 9, kind: input, shape index: {}]
  %s10 = inlined_call_operand.vmem [shape: bf16[2,2048,32], index: 10, kind: input, shape index: {}]
  %s11 = inlined_call_operand.vmem [shape: f32[2,1,32], index: 11, kind: input, shape index: {}]
  %s12 = inlined_call_operand.vmem [shape: f32[2,1,32], index: 12, kind: input, shape index: {}]
  %s13 = inlined_call_operand.vmem [shape: f32[2,1,32], index: 13, kind: input, shape index: {}]
  %s14 = inlined_call_operand.vmem [shape: f32[32,16], index: 14, kind: input, shape index: {}]
  %s15 = inlined_call_operand.vmem [shape: f32[1,16], index: 15, kind: input, shape index: {}]
  %s16 = inlined_call_operand.hbm [shape: f32[2,16], index: 16, kind: output, shape index: {}]
  %s17 = sld [smem:[#allocation0]]
  $region74: #{char_transformer_forward.1} parent=0
    _
  %s19 = ssub.s32 1, %s17
  %s20 = scalar_select 0, %s19, %s17
  $region1: #{char_transformer_forward.1} parent=0
    #allocation2 [shape = 'u8[1024]{0}', space=vmem, size = 0x400, scoped, tag = 'output window, operand 0, single buffered']
    #allocation3 [shape = 's32[1]{0}', space=sflag, size = 0x4, scoped, tag = 'scoped memory for char_transformer_forward.1']
    %21 = vsyncpa [#allocation3], 0
    // Predicated region
    $region2: #{char_transformer_forward.1} parent=1 // pred_check
      _
    $region3: #{char_transformer_forward.1} parent=1 // pred_check_branch
      %23 = sbr.rel (0) target = $region5
    $region4: #{char_transformer_forward.1} parent=1 // pred_region
      _
    $region5: #{char_transformer_forward.1} parent=1 // pred_fallthru
      _
    // Predicated region
    $region6: #{char_transformer_forward.1} parent=1 // pred_check
      _
    $region7: #{char_transformer_forward.1} parent=1 // pred_check_branch
      %25 = sbr.rel (0) target = $region9
    $region8: #{char_transformer_forward.1} parent=1 // pred_region
      _
    $region9: #{char_transformer_forward.1} parent=1 // pred_fallthru
      _
    // Predicated region
    $region10: #{char_transformer_forward.1} parent=1 // pred_check
      _
    $region11: #{char_transformer_forward.1} parent=1 // pred_check_branch
      %27 = sbr.rel (0) target = $region13
    $region12: #{char_transformer_forward.1} parent=1 // pred_region
      _
    $region13: #{char_transformer_forward.1} parent=1 // pred_fallthru
      _
    // Predicated region
    $region14: #{char_transformer_forward.1} parent=1 // pred_check
      _
    $region15: #{char_transformer_forward.1} parent=1 // pred_check_branch
      %29 = sbr.rel (0) target = $region17
    $region16: #{char_transformer_forward.1} parent=1 // pred_region
      _
    $region17: #{char_transformer_forward.1} parent=1 // pred_fallthru
      _
    // Predicated region
    $region18: #{char_transformer_forward.1} parent=1 // pred_check
      _
    $region19: #{char_transformer_forward.1} parent=1 // pred_check_branch
      %31 = sbr.rel (0) target = $region21
    $region20: #{char_transformer_forward.1} parent=1 // pred_region
      _
    $region21: #{char_transformer_forward.1} parent=1 // pred_fallthru
      _
    // Predicated region
    $region22: #{char_transformer_forward.1} parent=1 // pred_check
      _
    $region23: #{char_transformer_forward.1} parent=1 // pred_check_branch
      %33 = sbr.rel (0) target = $region25
    $region24: #{char_transformer_forward.1} parent=1 // pred_region
      _
    $region25: #{char_transformer_forward.1} parent=1 // pred_fallthru
      _
    // Predicated region
    $region26: #{char_transformer_forward.1} parent=1 // pred_check
      _
    $region27: #{char_transformer_forward.1} parent=1 // pred_check_branch
      %35 = sbr.rel (0) target = $region29
    $region28: #{char_transformer_forward.1} parent=1 // pred_region
      _
    $region29: #{char_transformer_forward.1} parent=1 // pred_fallthru
      _
    // Predicated region
    $region30: #{char_transformer_forward.1} parent=1 // pred_check
      _
    $region31: #{char_transformer_forward.1} parent=1 // pred_check_branch
      %37 = sbr.rel (0) target = $region33
    $region32: #{char_transformer_forward.1} parent=1 // pred_region
      _
    $region33: #{char_transformer_forward.1} parent=1 // pred_fallthru
      _
    // Predicated region
    $region34: #{char_transformer_forward.1} parent=1 // pred_check
      _
    $region35: #{char_transformer_forward.1} parent=1 // pred_check_branch
      %39 = sbr.rel (0) target = $region37
    $region36: #{char_transformer_forward.1} parent=1 // pred_region
      _
    $region37: #{char_transformer_forward.1} parent=1 // pred_fallthru
      _
    // Predicated region
    $region38: #{char_transformer_forward.1} parent=1 // pred_check
      _
    $region39: #{char_transformer_forward.1} parent=1 // pred_check_branch
      %41 = sbr.rel (0) target = $region41
    $region40: #{char_transformer_forward.1} parent=1 // pred_region
      _
    $region41: #{char_transformer_forward.1} parent=1 // pred_fallthru
      _
    // Predicated region
    $region42: #{char_transformer_forward.1} parent=1 // pred_check
      _
    $region43: #{char_transformer_forward.1} parent=1 // pred_check_branch
      %43 = sbr.rel (0) target = $region45
    $region44: #{char_transformer_forward.1} parent=1 // pred_region
      _
    $region45: #{char_transformer_forward.1} parent=1 // pred_fallthru
      _
    // Predicated region
    $region46: #{char_transformer_forward.1} parent=1 // pred_check
      _
    $region47: #{char_transformer_forward.1} parent=1 // pred_check_branch
      %45 = sbr.rel (0) target = $region49
    $region48: #{char_transformer_forward.1} parent=1 // pred_region
      _
    $region49: #{char_transformer_forward.1} parent=1 // pred_fallthru
      _
    // Predicated region
    $region50: #{char_transformer_forward.1} parent=1 // pred_check
      _
    $region51: #{char_transformer_forward.1} parent=1 // pred_check_branch
      %47 = sbr.rel (0) target = $region53
    $region52: #{char_transformer_forward.1} parent=1 // pred_region
      _
    $region53: #{char_transformer_forward.1} parent=1 // pred_fallthru
      _
    // Predicated region
    $region54: #{char_transformer_forward.1} parent=1 // pred_check
      _
    $region55: #{char_transformer_forward.1} parent=1 // pred_check_branch
      %49 = sbr.rel (0) target = $region57
    $region56: #{char_transformer_forward.1} parent=1 // pred_region
      _
    $region57: #{char_transformer_forward.1} parent=1 // pred_fallthru
      _
    // Predicated region
    $region58: #{char_transformer_forward.1} parent=1 // pred_check
      _
    $region59: #{char_transformer_forward.1} parent=1 // pred_check_branch
      %51 = sbr.rel (0) target = $region61
    $region60: #{char_transformer_forward.1} parent=1 // pred_region
      _
    $region61: #{char_transformer_forward.1} parent=1 // pred_fallthru
      _
    // Predicated region
    $region62: #{char_transformer_forward.1} parent=1 // pred_check
      _
    $region63: #{char_transformer_forward.1} parent=1 // pred_check_branch
      %53 = sbr.rel (0) target = $region65
    $region64: #{char_transformer_forward.1} parent=1 // pred_region
      _
    $region65: #{char_transformer_forward.1} parent=1 // pred_fallthru
      _
    %v55 = vld [vmem:[%s0] sm:$0xff]
    %v56 = vld [vmem:[%s0 + $0x8] sm:$0xff]
    %v57 = vld [vmem:[%s1] sm:$0xff]
    %v58 = vld [vmem:[%s1 + $0x8] sm:$0xff]
    %v59 = vld [vmem:[%s2] sm:$0x1]
    %60 = vset.pattern.permute.xlu0 0
    %61 = vperm.xlu0 %60, %v57
    %v62 = vpop.permute.xlu0 %61
    %63 = vset.pattern.permute.xlu0 0
    %64 = vperm.xlu0 %63, %v58
    %v65 = vpop.permute.xlu0 %64
    %v66 = vlaneseq
    %v67 = vshrl.u32 %v66, 7
    %v68 = vsub.s32 0, %v67
    %v69 = vrot.slane %v59, %v68
    %vm70 = vcmp.eq.s32.totalorder %v62, %v69
    %vm71 = vcmp.eq.s32.totalorder %v65, %v69
    %v72 = vsel %vm70, 0.0, -1e+30
    %v73 = vsel %vm71, 0.0, -1e+30
    %v74 = vpack.c.bf16 %v56, %v55
    %v75 = vld [vmem:[%s3] sm:$0xff]
    %v76 = vld [vmem:[%s3 + $0x8] sm:$0xff]
    %v77 = vld [vmem:[%s3 + $0x10] sm:$0xff]
    %v78 = vld [vmem:[%s3 + $0x18] sm:$0xff]
    %v79 = vld [vmem:[%s4] sm:$0x3]
    %v81 = vlaneseq
    %v82 = vshrl.u32 %v81, 7
    %v83 = vsub.s32 0, %v82
    %v84 = vrot.slane %v79, %v83
    %v85 = vlaneseq
    %v86 = vshrl.u32 %v85, 7
    %v87 = vsub.s32 1, %v86
    %v88 = vrot.slane %v79, %v87
    %v95 = vunpack.c.l.b16 %v75
    %v96 = vunpack.c.h.b16 %v75
    %v97 = vunpack.c.l.b16 %v76
    %v98 = vunpack.c.h.b16 %v76
    %v99 = vunpack.c.l.b16 %v77
    %v100 = vunpack.c.h.b16 %v77
    %v101 = vunpack.c.l.b16 %v78
    %v102 = vunpack.c.h.b16 %v78
    %v103 = vpack.c.b16 %v97, %v95
    %v104 = vpack.c.b16 %v98, %v96
    %v105 = vpack.c.b16 %v101, %v99
    %v106 = vpack.c.b16 %v102, %v100
    %vm111 = vcmask 261120
    %v113 = vsel %vm111, %v74, 0
    %115 = vmatprep.subr.bf16.mxu0 0
    %116 = vmatpush1.bf16.msra.mxu0 0
    %117 = vmatprep.subr.bf16.mxu0 0
    %118 = vmatpush1.bf16.msra.mxu0 0
    %119 = vmatprep.subr.bf16.mxu0 0
    %120 = vmatpush1.bf16.msra.mxu0 0
    %121 = vmatprep.subr.bf16.mxu0 0
    %122 = vmatpush1.bf16.msra.mxu0 0
    %123 = vmatprep.subr.bf16.mxu0 0
    %124 = vmatpush1.bf16.msra.mxu0 0
    %125 = vmatprep.subr.bf16.mxu0 0
    %126 = vmatpush1.bf16.msra.mxu0 0
    %127 = vmatprep.subr.bf16.mxu0 %v106
    %128 = vmatpush1.bf16.msra.mxu0 %v105
    %129 = vmatprep.subr.bf16.mxu0 %v104
    %130 = vmatpush1.bf16.msra.mxu0 %v103
    %131 = vmatprep.subr.bf16.mxu0 0
    %132 = vmatpush2.bf16.msra.mxu0 0
    %133 = vmatprep.subr.bf16.mxu0 0
    %134 = vmatpush2.bf16.msra.mxu0 0
    %135 = vmatprep.subr.bf16.mxu0 0
    %136 = vmatpush2.bf16.msra.mxu0 0
    %137 = vmatprep.subr.bf16.mxu0 0
    %138 = vmatpush2.bf16.msra.mxu0 0
    %139 = vmatprep.subr.bf16.mxu0 0
    %140 = vmatpush2.bf16.msra.mxu0 0
    %141 = vmatprep.subr.bf16.mxu0 0
    %142 = vmatpush2.bf16.msra.mxu0 0
    %143 = vmatprep.subr.bf16.mxu0 0
    %144 = vmatpush2.bf16.msra.mxu0 0
    %145 = vmatprep.subr.bf16.mxu0 0
    %146 = vmatpush2.bf16.msra.mxu0 0
    %147 = vmatprep.mubr.bf16.mxu0 0
    %148 = vmatmul.mubr.bf16.gmra.mxu0 %v113
    %v149 = vpop.f32.mrf.mxu0
    %v150 = vadd.f32 %v84, %v149
    %v151 = vpop.f32.mrf.mxu0
    %v152 = vadd.f32 %v88, %v151
    %v153 = vpop.f32.mrf.mxu0
    %v154 = vadd.f32 %v84, %v153
    %v155 = vpop.f32.mrf.mxu0
    %v156 = vadd.f32 %v88, %v155
    %157 = vdwg.mxu0
    %v158 = vpack.c.bf16 %v154, %v150
    %160 = vrot.lane.b32.xlu0 %v158, 96
    %v161 = vpop.permute.xlu0 %160
    %vm162 = vcmask 64512
    %v164 = vsel %vm162, %v158, 0
    %v167 = vsel %vm162, %v161, 0
    %169 = vmatprep.subr.bf16.mxu0 0
    %170 = vmatpush1.bf16.xpose.msra.mxu0 0
    %171 = vmatprep.subr.bf16.mxu0 0
    %172 = vmatpush1.bf16.xpose.msra.mxu0 0
    %173 = vmatprep.subr.bf16.mxu0 0
    %174 = vmatpush1.bf16.xpose.msra.mxu0 0
    %175 = vmatprep.subr.bf16.mxu0 0
    %176 = vmatpush1.bf16.xpose.msra.mxu0 0
    %177 = vmatprep.subr.bf16.mxu0 0
    %178 = vmatpush1.bf16.xpose.msra.mxu0 0
    %179 = vmatprep.subr.bf16.mxu0 0
    %180 = vmatpush1.bf16.xpose.msra.mxu0 0
    %181 = vmatprep.subr.bf16.mxu0 0
    %182 = vmatpush1.bf16.xpose.msra.mxu0 0
    %183 = vmatprep.subr.bf16.mxu0 0
    %184 = vmatpush1.bf16.xpose.msra.mxu0 %v167
    %185 = vmatprep.subr.bf16.mxu0 0
    %186 = vmatpush2.bf16.xpose.msra.mxu0 0
    %187 = vmatprep.subr.bf16.mxu0 0
    %188 = vmatpush2.bf16.xpose.msra.mxu0 0
    %189 = vmatprep.subr.bf16.mxu0 0
    %190 = vmatpush2.bf16.xpose.msra.mxu0 0
    %191 = vmatprep.subr.bf16.mxu0 0
    %192 = vmatpush2.bf16.xpose.msra.mxu0 0
    %193 = vmatprep.subr.bf16.mxu0 0
    %194 = vmatpush2.bf16.xpose.msra.mxu0 0
    %195 = vmatprep.subr.bf16.mxu0 0
    %196 = vmatpush2.bf16.xpose.msra.mxu0 0
    %197 = vmatprep.subr.bf16.mxu0 0
    %198 = vmatpush2.bf16.xpose.msra.mxu0 0
    %199 = vmatprep.subr.bf16.mxu0 0
    %200 = vmatpush2.bf16.xpose.msra.mxu0 0
    %201 = vmatprep.mubr.bf16.mxu0 0
    %202 = vmatmul.mubr.bf16.gmra.mxu0 %v164
    %v203 = vpop.f32.mrf.mxu0
    %v204 = vadd.f32 %v72, %v203
    %v205 = vpop.f32.mrf.mxu0
    %v206 = vpop.f32.mrf.mxu0
    %v207 = vadd.f32 %v73, %v206
    %v208 = vpop.f32.mrf.mxu0
    %209 = vdwg.mxu0
    %vm210 = vcmask 130048
    %v211 = vsel %vm210, %v204, -inf
    %212 = vmax.xlane.f32.xlu0 %v211
    %v213 = vpop.xlane.xlu0 %212
    %v214 = vsel %vm210, %v207, -inf
    %215 = vmax.xlane.f32.xlu0 %v214
    %v216 = vpop.xlane.xlu0 %215
    %v217 = vsub.f32 %v204, %v213
    %v218 = vsub.f32 %v207, %v216
    %v219 = vmul.f32 %v217, 1.442695
    %v220 = vpow.pop %v219
    %v221 = vmul.f32 %v218, 1.442695
    %v222 = vpow.pop %v221
    %v223 = vsel %vm210, %v220, 0.0
    %224 = vadd.xlane.f32.xlu0 %v223
    %v225 = vpop.xlane.xlu0 %224
    %v226 = vsel %vm210, %v222, 0.0
    %227 = vadd.xlane.f32.xlu0 %v226
    %v228 = vpop.xlane.xlu0 %227
    %v229 = vrcp.pop %v225
    %v230 = vrcp.pop %v228
    %v231 = vmul.f32 %v220, %v229
    %v232 = vmul.f32 %v222, %v230
    %v233 = vpack.c.bf16 %v232, %v231
    %234 = vrot.lane.b32.xlu0 %v158, 120
    %v235 = vpop.permute.xlu0 %234
    %236 = vrot.lane.b32.xlu0 %v158, 88
    %v237 = vpop.permute.xlu0 %236
    %v239 = vsel %vm162, %v235, 0
    %v242 = vsel %vm162, %v237, 0
    %244 = vmatprep.subr.bf16.mxu0 0
    %245 = vmatpush1.bf16.xpose.msra.mxu0 0
    %246 = vmatprep.subr.bf16.mxu0 0
    %247 = vmatpush1.bf16.xpose.msra.mxu0 0
    %248 = vmatprep.subr.bf16.mxu0 0
    %249 = vmatpush1.bf16.xpose.msra.mxu0 0
    %250 = vmatprep.subr.bf16.mxu0 0
    %251 = vmatpush1.bf16.xpose.msra.mxu0 0
    %252 = vmatprep.subr.bf16.mxu0 0
    %253 = vmatpush1.bf16.xpose.msra.mxu0 0
    %254 = vmatprep.subr.bf16.mxu0 0
    %255 = vmatpush1.bf16.xpose.msra.mxu0 0
    %256 = vmatprep.subr.bf16.mxu0 0
    %257 = vmatpush1.bf16.xpose.msra.mxu0 0
    %258 = vmatprep.subr.bf16.mxu0 0
    %259 = vmatpush1.bf16.xpose.msra.mxu0 %v242
    %260 = vmatprep.subr.bf16.mxu0 0
    %261 = vmatpush2.bf16.xpose.msra.mxu0 0
    %262 = vmatprep.subr.bf16.mxu0 0
    %263 = vmatpush2.bf16.xpose.msra.mxu0 0
    %264 = vmatprep.subr.bf16.mxu0 0
    %265 = vmatpush2.bf16.xpose.msra.mxu0 0
    %266 = vmatprep.subr.bf16.mxu0 0
    %267 = vmatpush2.bf16.xpose.msra.mxu0 0
    %268 = vmatprep.subr.bf16.mxu0 0
    %269 = vmatpush2.bf16.xpose.msra.mxu0 0
    %270 = vmatprep.subr.bf16.mxu0 0
    %271 = vmatpush2.bf16.xpose.msra.mxu0 0
    %272 = vmatprep.subr.bf16.mxu0 0
    %273 = vmatpush2.bf16.xpose.msra.mxu0 0
    %274 = vmatprep.subr.bf16.mxu0 0
    %275 = vmatpush2.bf16.xpose.msra.mxu0 0
    %276 = vmatprep.mubr.bf16.mxu0 0
    %277 = vmatmul.mubr.bf16.gmra.mxu0 %v239
    %v278 = vpop.f32.mrf.mxu0
    %v279 = vadd.f32 %v72, %v278
    %v280 = vpop.f32.mrf.mxu0
    %v281 = vpop.f32.mrf.mxu0
    %v282 = vadd.f32 %v73, %v281
    %v283 = vpop.f32.mrf.mxu0
    %284 = vdwg.mxu0
    %v285 = vsel %vm210, %v279, -inf
    %286 = vmax.xlane.f32.xlu0 %v285
    %v287 = vpop.xlane.xlu0 %286
    %v288 = vsel %vm210, %v282, -inf
    %289 = vmax.xlane.f32.xlu0 %v288
    %v290 = vpop.xlane.xlu0 %289
    %v291 = vsub.f32 %v279, %v287
    %v292 = vsub.f32 %v282, %v290
    %v293 = vmul.f32 %v291, 1.442695
    %v294 = vpow.pop %v293
    %v295 = vmul.f32 %v292, 1.442695
    %v296 = vpow.pop %v295
    %v297 = vsel %vm210, %v294, 0.0
    %298 = vadd.xlane.f32.xlu0 %v297
    %v299 = vpop.xlane.xlu0 %298
    %v300 = vsel %vm210, %v296, 0.0
    %301 = vadd.xlane.f32.xlu0 %v300
    %v302 = vpop.xlane.xlu0 %301
    %v303 = vrcp.pop %v299
    %v304 = vrcp.pop %v302
    %v305 = vmul.f32 %v294, %v303
    %v306 = vmul.f32 %v296, %v304
    %v307 = vpack.c.bf16 %v306, %v305
    %308 = vrot.lane.b32.xlu0 %v158, 32
    %v309 = vpop.permute.xlu0 %308
    %v312 = vsel %vm210, %v307, 0
    %314 = vmatprep.subr.bf16.mxu0 0
    %315 = vmatpush1.bf16.msra.mxu0 0
    %316 = vmatprep.subr.bf16.mxu0 0
    %317 = vmatpush1.bf16.msra.mxu0 0
    %318 = vmatprep.subr.bf16.mxu0 0
    %319 = vmatpush1.bf16.msra.mxu0 0
    %320 = vmatprep.subr.bf16.mxu0 0
    %321 = vmatpush1.bf16.msra.mxu0 0
    %322 = vmatprep.subr.bf16.mxu0 0
    %323 = vmatpush1.bf16.msra.mxu0 0
    %324 = vmatprep.subr.bf16.mxu0 0
    %325 = vmatpush1.bf16.msra.mxu0 0
    %326 = vmatprep.subr.bf16.mxu0 0
    %327 = vmatpush1.bf16.msra.mxu0 0
    %328 = vmatprep.subr.bf16.mxu0 0
    %329 = vmatpush1.bf16.msra.mxu0 %v309
    %330 = vmatprep.subr.bf16.mxu0 0
    %331 = vmatpush2.bf16.msra.mxu0 0
    %332 = vmatprep.subr.bf16.mxu0 0
    %333 = vmatpush2.bf16.msra.mxu0 0
    %334 = vmatprep.subr.bf16.mxu0 0
    %335 = vmatpush2.bf16.msra.mxu0 0
    %336 = vmatprep.subr.bf16.mxu0 0
    %337 = vmatpush2.bf16.msra.mxu0 0
    %338 = vmatprep.subr.bf16.mxu0 0
    %339 = vmatpush2.bf16.msra.mxu0 0
    %340 = vmatprep.subr.bf16.mxu0 0
    %341 = vmatpush2.bf16.msra.mxu0 0
    %342 = vmatprep.subr.bf16.mxu0 0
    %343 = vmatpush2.bf16.msra.mxu0 0
    %344 = vmatprep.subr.bf16.mxu0 0
    %345 = vmatpush2.bf16.msra.mxu0 0
    %346 = vmatprep.mubr.bf16.mxu0 0
    %347 = vmatmul.mubr.bf16.gmra.mxu0 %v312
    %v348 = vpop.f32.mrf.mxu0
    %v349 = vadd.f32 0.0, %v348
    %v350 = vpop.f32.mrf.mxu0
    %v351 = vpop.f32.mrf.mxu0
    %v352 = vadd.f32 0.0, %v351
    %v353 = vpop.f32.mrf.mxu0
    %354 = vdwg.mxu0
    %355 = vrot.lane.b32.xlu0 %v158, 64
    %v356 = vpop.permute.xlu0 %355
    %v359 = vsel %vm210, %v233, 0
    %361 = vmatprep.subr.bf16.mxu0 0
    %362 = vmatpush1.bf16.msra.mxu0 0
    %363 = vmatprep.subr.bf16.mxu0 0
    %364 = vmatpush1.bf16.msra.mxu0 0
    %365 = vmatprep.subr.bf16.mxu0 0
    %366 = vmatpush1.bf16.msra.mxu0 0
    %367 = vmatprep.subr.bf16.mxu0 0
    %368 = vmatpush1.bf16.msra.mxu0 0
    %369 = vmatprep.subr.bf16.mxu0 0
    %370 = vmatpush1.bf16.msra.mxu0 0
    %371 = vmatprep.subr.bf16.mxu0 0
    %372 = vmatpush1.bf16.msra.mxu0 0
    %373 = vmatprep.subr.bf16.mxu0 0
    %374 = vmatpush1.bf16.msra.mxu0 0
    %375 = vmatprep.subr.bf16.mxu0 0
    %376 = vmatpush1.bf16.msra.mxu0 %v356
    %377 = vmatprep.subr.bf16.mxu0 0
    %378 = vmatpush2.bf16.msra.mxu0 0
    %379 = vmatprep.subr.bf16.mxu0 0
    %380 = vmatpush2.bf16.msra.mxu0 0
    %381 = vmatprep.subr.bf16.mxu0 0
    %382 = vmatpush2.bf16.msra.mxu0 0
    %383 = vmatprep.subr.bf16.mxu0 0
    %384 = vmatpush2.bf16.msra.mxu0 0
    %385 = vmatprep.subr.bf16.mxu0 0
    %386 = vmatpush2.bf16.msra.mxu0 0
    %387 = vmatprep.subr.bf16.mxu0 0
    %388 = vmatpush2.bf16.msra.mxu0 0
    %389 = vmatprep.subr.bf16.mxu0 0
    %390 = vmatpush2.bf16.msra.mxu0 0
    %391 = vmatprep.subr.bf16.mxu0 0
    %392 = vmatpush2.bf16.msra.mxu0 0
    %393 = vmatprep.mubr.bf16.mxu0 0
    %394 = vmatmul.mubr.bf16.gmra.mxu0 %v359
    %v395 = vpop.f32.mrf.mxu0
    %v396 = vadd.f32 %v349, %v395
    %v397 = vpop.f32.mrf.mxu0
    %v398 = vpop.f32.mrf.mxu0
    %v399 = vadd.f32 %v352, %v398
    %v400 = vpop.f32.mrf.mxu0
    %401 = vdwg.mxu0
    %v402 = vpack.c.bf16 %v156, %v152
    %403 = vrot.lane.b32.xlu0 %v158, 112
    %v404 = vpop.permute.xlu0 %403
    %405 = vrot.lane.b32.xlu0 %v158, 80
    %v406 = vpop.permute.xlu0 %405
    %v408 = vsel %vm162, %v404, 0
    %v411 = vsel %vm162, %v406, 0
    %413 = vmatprep.subr.bf16.mxu0 0
    %414 = vmatpush1.bf16.xpose.msra.mxu0 0
    %415 = vmatprep.subr.bf16.mxu0 0
    %416 = vmatpush1.bf16.xpose.msra.mxu0 0
    %417 = vmatprep.subr.bf16.mxu0 0
    %418 = vmatpush1.bf16.xpose.msra.mxu0 0
    %419 = vmatprep.subr.bf16.mxu0 0
    %420 = vmatpush1.bf16.xpose.msra.mxu0 0
    %421 = vmatprep.subr.bf16.mxu0 0
    %422 = vmatpush1.bf16.xpose.msra.mxu0 0
    %423 = vmatprep.subr.bf16.mxu0 0
    %424 = vmatpush1.bf16.xpose.msra.mxu0 0
    %425 = vmatprep.subr.bf16.mxu0 0
    %426 = vmatpush1.bf16.xpose.msra.mxu0 0
    %427 = vmatprep.subr.bf16.mxu0 0
    %428 = vmatpush1.bf16.xpose.msra.mxu0 %v411
    %429 = vmatprep.subr.bf16.mxu0 0
    %430 = vmatpush2.bf16.xpose.msra.mxu0 0
    %431 = vmatprep.subr.bf16.mxu0 0
    %432 = vmatpush2.bf16.xpose.msra.mxu0 0
    %433 = vmatprep.subr.bf16.mxu0 0
    %434 = vmatpush2.bf16.xpose.msra.mxu0 0
    %435 = vmatprep.subr.bf16.mxu0 0
    %436 = vmatpush2.bf16.xpose.msra.mxu0 0
    %437 = vmatprep.subr.bf16.mxu0 0
    %438 = vmatpush2.bf16.xpose.msra.mxu0 0
    %439 = vmatprep.subr.bf16.mxu0 0
    %440 = vmatpush2.bf16.xpose.msra.mxu0 0
    %441 = vmatprep.subr.bf16.mxu0 0
    %442 = vmatpush2.bf16.xpose.msra.mxu0 0
    %443 = vmatprep.subr.bf16.mxu0 0
    %444 = vmatpush2.bf16.xpose.msra.mxu0 0
    %445 = vmatprep.mubr.bf16.mxu0 0
    %446 = vmatmul.mubr.bf16.gmra.mxu0 %v408
    %v447 = vpop.f32.mrf.mxu0
    %v448 = vadd.f32 %v72, %v447
    %v449 = vpop.f32.mrf.mxu0
    %v450 = vpop.f32.mrf.mxu0
    %v451 = vadd.f32 %v73, %v450
    %v452 = vpop.f32.mrf.mxu0
    %453 = vdwg.mxu0
    %v454 = vsel %vm210, %v448, -inf
    %455 = vmax.xlane.f32.xlu0 %v454
    %v456 = vpop.xlane.xlu0 %455
    %v457 = vsel %vm210, %v451, -inf
    %458 = vmax.xlane.f32.xlu0 %v457
    %v459 = vpop.xlane.xlu0 %458
    %v460 = vsub.f32 %v448, %v456
    %v461 = vsub.f32 %v451, %v459
    %v462 = vmul.f32 %v460, 1.442695
    %v463 = vpow.pop %v462
    %v464 = vmul.f32 %v461, 1.442695
    %v465 = vpow.pop %v464
    %v466 = vsel %vm210, %v463, 0.0
    %467 = vadd.xlane.f32.xlu0 %v466
    %v468 = vpop.xlane.xlu0 %467
    %v469 = vsel %vm210, %v465, 0.0
    %470 = vadd.xlane.f32.xlu0 %v469
    %v471 = vpop.xlane.xlu0 %470
    %v472 = vrcp.pop %v468
    %v473 = vrcp.pop %v471
    %v474 = vmul.f32 %v463, %v472
    %v475 = vmul.f32 %v465, %v473
    %v476 = vpack.c.bf16 %v475, %v474
    %v478 = vsel %vm210, %v476, 0
    %480 = vmatprep.subr.bf16.mxu0 0
    %481 = vmatpush1.bf16.msra.mxu0 0
    %482 = vmatprep.subr.bf16.mxu0 0
    %483 = vmatpush1.bf16.msra.mxu0 0
    %484 = vmatprep.subr.bf16.mxu0 0
    %485 = vmatpush1.bf16.msra.mxu0 0
    %486 = vmatprep.subr.bf16.mxu0 0
    %487 = vmatpush1.bf16.msra.mxu0 0
    %488 = vmatprep.subr.bf16.mxu0 0
    %489 = vmatpush1.bf16.msra.mxu0 0
    %490 = vmatprep.subr.bf16.mxu0 0
    %491 = vmatpush1.bf16.msra.mxu0 0
    %492 = vmatprep.subr.bf16.mxu0 0
    %493 = vmatpush1.bf16.msra.mxu0 0
    %494 = vmatprep.subr.bf16.mxu0 0
    %495 = vmatpush1.bf16.msra.mxu0 %v402
    %496 = vmatprep.subr.bf16.mxu0 0
    %497 = vmatpush2.bf16.msra.mxu0 0
    %498 = vmatprep.subr.bf16.mxu0 0
    %499 = vmatpush2.bf16.msra.mxu0 0
    %500 = vmatprep.subr.bf16.mxu0 0
    %501 = vmatpush2.bf16.msra.mxu0 0
    %502 = vmatprep.subr.bf16.mxu0 0
    %503 = vmatpush2.bf16.msra.mxu0 0
    %504 = vmatprep.subr.bf16.mxu0 0
    %505 = vmatpush2.bf16.msra.mxu0 0
    %506 = vmatprep.subr.bf16.mxu0 0
    %507 = vmatpush2.bf16.msra.mxu0 0
    %508 = vmatprep.subr.bf16.mxu0 0
    %509 = vmatpush2.bf16.msra.mxu0 0
    %510 = vmatprep.subr.bf16.mxu0 0
    %511 = vmatpush2.bf16.msra.mxu0 0
    %512 = vmatprep.mubr.bf16.mxu0 0
    %513 = vmatmul.mubr.bf16.gmra.mxu0 %v478
    %v514 = vpop.f32.mrf.mxu0
    %v515 = vadd.f32 0.0, %v514
    %v516 = vpop.f32.mrf.mxu0
    %v517 = vpop.f32.mrf.mxu0
    %v518 = vadd.f32 0.0, %v517
    %v519 = vpop.f32.mrf.mxu0
    %520 = vdwg.mxu0
    %v521 = vadd.f32 %v396, %v515
    %v522 = vadd.f32 %v399, %v518
    %523 = vrot.lane.b32.xlu0 %v158, 104
    %v524 = vpop.permute.xlu0 %523
    %525 = vrot.lane.b32.xlu0 %v158, 72
    %v526 = vpop.permute.xlu0 %525
    %v528 = vsel %vm162, %v524, 0
    %v531 = vsel %vm162, %v526, 0
    %533 = vmatprep.subr.bf16.mxu0 0
    %534 = vmatpush1.bf16.xpose.msra.mxu0 0
    %535 = vmatprep.subr.bf16.mxu0 0
    %536 = vmatpush1.bf16.xpose.msra.mxu0 0
    %537 = vmatprep.subr.bf16.mxu0 0
    %538 = vmatpush1.bf16.xpose.msra.mxu0 0
    %539 = vmatprep.subr.bf16.mxu0 0
    %540 = vmatpush1.bf16.xpose.msra.mxu0 0
    %541 = vmatprep.subr.bf16.mxu0 0
    %542 = vmatpush1.bf16.xpose.msra.mxu0 0
    %543 = vmatprep.subr.bf16.mxu0 0
    %544 = vmatpush1.bf16.xpose.msra.mxu0 0
    %545 = vmatprep.subr.bf16.mxu0 0
    %546 = vmatpush1.bf16.xpose.msra.mxu0 0
    %547 = vmatprep.subr.bf16.mxu0 0
    %548 = vmatpush1.bf16.xpose.msra.mxu0 %v531
    %549 = vmatprep.subr.bf16.mxu0 0
    %550 = vmatpush2.bf16.xpose.msra.mxu0 0
    %551 = vmatprep.subr.bf16.mxu0 0
    %552 = vmatpush2.bf16.xpose.msra.mxu0 0
    %553 = vmatprep.subr.bf16.mxu0 0
    %554 = vmatpush2.bf16.xpose.msra.mxu0 0
    %555 = vmatprep.subr.bf16.mxu0 0
    %556 = vmatpush2.bf16.xpose.msra.mxu0 0
    %557 = vmatprep.subr.bf16.mxu0 0
    %558 = vmatpush2.bf16.xpose.msra.mxu0 0
    %559 = vmatprep.subr.bf16.mxu0 0
    %560 = vmatpush2.bf16.xpose.msra.mxu0 0
    %561 = vmatprep.subr.bf16.mxu0 0
    %562 = vmatpush2.bf16.xpose.msra.mxu0 0
    %563 = vmatprep.subr.bf16.mxu0 0
    %564 = vmatpush2.bf16.xpose.msra.mxu0 0
    %565 = vmatprep.mubr.bf16.mxu0 0
    %566 = vmatmul.mubr.bf16.gmra.mxu0 %v528
    %v567 = vpop.f32.mrf.mxu0
    %v568 = vadd.f32 %v72, %v567
    %v569 = vpop.f32.mrf.mxu0
    %v570 = vpop.f32.mrf.mxu0
    %v571 = vadd.f32 %v73, %v570
    %v572 = vpop.f32.mrf.mxu0
    %573 = vdwg.mxu0
    %v574 = vsel %vm210, %v568, -inf
    %575 = vmax.xlane.f32.xlu0 %v574
    %v576 = vpop.xlane.xlu0 %575
    %v577 = vsel %vm210, %v571, -inf
    %578 = vmax.xlane.f32.xlu0 %v577
    %v579 = vpop.xlane.xlu0 %578
    %v580 = vsub.f32 %v568, %v576
    %v581 = vsub.f32 %v571, %v579
    %v582 = vmul.f32 %v580, 1.442695
    %v583 = vpow.pop %v582
    %v584 = vmul.f32 %v581, 1.442695
    %v585 = vpow.pop %v584
    %v586 = vsel %vm210, %v583, 0.0
    %587 = vadd.xlane.f32.xlu0 %v586
    %v588 = vpop.xlane.xlu0 %587
    %v589 = vsel %vm210, %v585, 0.0
    %590 = vadd.xlane.f32.xlu0 %v589
    %v591 = vpop.xlane.xlu0 %590
    %v592 = vrcp.pop %v588
    %v593 = vrcp.pop %v591
    %v594 = vmul.f32 %v583, %v592
    %v595 = vmul.f32 %v585, %v593
    %v596 = vpack.c.bf16 %v595, %v594
    %598 = vrot.lane.b32.xlu0 %v402, 96
    %v599 = vpop.permute.xlu0 %598
    %v602 = vsel %vm210, %v596, 0
    %604 = vmatprep.subr.bf16.mxu0 0
    %605 = vmatpush1.bf16.msra.mxu0 0
    %606 = vmatprep.subr.bf16.mxu0 0
    %607 = vmatpush1.bf16.msra.mxu0 0
    %608 = vmatprep.subr.bf16.mxu0 0
    %609 = vmatpush1.bf16.msra.mxu0 0
    %610 = vmatprep.subr.bf16.mxu0 0
    %611 = vmatpush1.bf16.msra.mxu0 0
    %612 = vmatprep.subr.bf16.mxu0 0
    %613 = vmatpush1.bf16.msra.mxu0 0
    %614 = vmatprep.subr.bf16.mxu0 0
    %615 = vmatpush1.bf16.msra.mxu0 0
    %616 = vmatprep.subr.bf16.mxu0 0
    %617 = vmatpush1.bf16.msra.mxu0 0
    %618 = vmatprep.subr.bf16.mxu0 0
    %619 = vmatpush1.bf16.msra.mxu0 %v599
    %620 = vmatprep.subr.bf16.mxu0 0
    %621 = vmatpush2.bf16.msra.mxu0 0
    %622 = vmatprep.subr.bf16.mxu0 0
    %623 = vmatpush2.bf16.msra.mxu0 0
    %624 = vmatprep.subr.bf16.mxu0 0
    %625 = vmatpush2.bf16.msra.mxu0 0
    %626 = vmatprep.subr.bf16.mxu0 0
    %627 = vmatpush2.bf16.msra.mxu0 0
    %628 = vmatprep.subr.bf16.mxu0 0
    %629 = vmatpush2.bf16.msra.mxu0 0
    %630 = vmatprep.subr.bf16.mxu0 0
    %631 = vmatpush2.bf16.msra.mxu0 0
    %632 = vmatprep.subr.bf16.mxu0 0
    %633 = vmatpush2.bf16.msra.mxu0 0
    %634 = vmatprep.subr.bf16.mxu0 0
    %635 = vmatpush2.bf16.msra.mxu0 0
    %636 = vmatprep.mubr.bf16.mxu0 0
    %637 = vmatmul.mubr.bf16.gmra.mxu0 %v602
    %v638 = vpop.f32.mrf.mxu0
    %v639 = vadd.f32 0.0, %v638
    %v640 = vpop.f32.mrf.mxu0
    %v641 = vpop.f32.mrf.mxu0
    %v642 = vadd.f32 0.0, %v641
    %v643 = vpop.f32.mrf.mxu0
    %644 = vdwg.mxu0
    %v645 = vadd.f32 %v521, %v639
    %v646 = vadd.f32 %v522, %v642
    %v647 = vadd.f32 %v55, %v645
    %v648 = vadd.f32 %v56, %v646
    %v649 = vld [vmem:[%s5] sm:$0x1]
    %v651 = vlaneseq
    %v652 = vshrl.u32 %v651, 7
    %v653 = vsub.s32 0, %v652
    %v654 = vrot.slane %v649, %v653
    %v656 = vadd.f32 %v647, %v654
    %v657 = vadd.f32 %v648, %v654
    %v658 = vld [vmem:[%s6] sm:$0x1]
    %v659 = vld [vmem:[%s7] sm:$0x1]
    %v660 = vsel %vm111, %v656, 0.0
    %661 = vadd.xlane.f32.xlu0 %v660
    %v662 = vpop.xlane.xlu0 %661
    %v663 = vsel %vm111, %v657, 0.0
    %664 = vadd.xlane.f32.xlu0 %v663
    %v665 = vpop.xlane.xlu0 %664
    %v666 = vrcp.pop 32.0
    %v667 = vmul.f32 %v662, %v666
    %v668 = vmul.f32 %v665, %v666
    %v669 = vsub.f32 %v656, %v667
    %v670 = vsub.f32 %v657, %v668
    %v671 = vmul.f32 %v669, %v669
    %v672 = vmul.f32 %v670, %v670
    %v673 = vsel %vm111, %v671, 0.0
    %674 = vadd.xlane.f32.xlu0 %v673
    %v675 = vpop.xlane.xlu0 %674
    %v676 = vsel %vm111, %v672, 0.0
    %677 = vadd.xlane.f32.xlu0 %v676
    %v678 = vpop.xlane.xlu0 %677
    %v679 = vmul.f32 %v675, %v666
    %v680 = vmul.f32 %v678, %v666
    %v681 = vadd.f32 %v679, 1e-05
    %v682 = vadd.f32 %v680, 1e-05
    %v683 = vrsqrt.pop %v681
    %v684 = vrsqrt.pop %v682
    %v685 = vmul.f32 %v669, %v683
    %v686 = vmul.f32 %v670, %v684
    %v688 = vlaneseq
    %v689 = vshrl.u32 %v688, 7
    %v690 = vsub.s32 0, %v689
    %v691 = vrot.slane %v658, %v690
    %v693 = vmul.f32 %v685, %v691
    %v694 = vmul.f32 %v686, %v691
    %v696 = vlaneseq
    %v697 = vshrl.u32 %v696, 7
    %v698 = vsub.s32 0, %v697
    %v699 = vrot.slane %v659, %v698
    %v701 = vadd.f32 %v693, %v699
    %v702 = vadd.f32 %v694, %v699
    %v703 = vpack.c.bf16 %v702, %v701
    %v704 = vld [vmem:[%s8] sm:$0xff]
    %v705 = vld [vmem:[%s8 + $0x8] sm:$0xff]
    %v706 = vld [vmem:[%s8 + $0x10] sm:$0xff]
    %v707 = vld [vmem:[%s8 + $0x18] sm:$0xff]
    %v708 = vld [vmem:[%s8 + $0x20] sm:$0xff]
    %v709 = vld [vmem:[%s8 + $0x28] sm:$0xff]
    %v710 = vld [vmem:[%s8 + $0x30] sm:$0xff]
    %v711 = vld [vmem:[%s8 + $0x38] sm:$0xff]
    %v712 = vld [vmem:[%s8 + $0x40] sm:$0xff]
    %v713 = vld [vmem:[%s8 + $0x48] sm:$0xff]
    %v714 = vld [vmem:[%s8 + $0x50] sm:$0xff]
    %v715 = vld [vmem:[%s8 + $0x58] sm:$0xff]
    %v716 = vld [vmem:[%s8 + $0x60] sm:$0xff]
    %v717 = vld [vmem:[%s8 + $0x68] sm:$0xff]
    %v718 = vld [vmem:[%s8 + $0x70] sm:$0xff]
    %v719 = vld [vmem:[%s8 + $0x78] sm:$0xff]
    %v720 = vld [vmem:[%s8 + $0x80] sm:$0xff]
    %v721 = vld [vmem:[%s8 + $0x88] sm:$0xff]
    %v722 = vld [vmem:[%s8 + $0x90] sm:$0xff]
    %v723 = vld [vmem:[%s8 + $0x98] sm:$0xff]
    %v724 = vld [vmem:[%s8 + $0xa0] sm:$0xff]
    %v725 = vld [vmem:[%s8 + $0xa8] sm:$0xff]
    %v726 = vld [vmem:[%s8 + $0xb0] sm:$0xff]
    %v727 = vld [vmem:[%s8 + $0xb8] sm:$0xff]
    %v728 = vld [vmem:[%s8 + $0xc0] sm:$0xff]
    %v729 = vld [vmem:[%s8 + $0xc8] sm:$0xff]
    %v730 = vld [vmem:[%s8 + $0xd0] sm:$0xff]
    %v731 = vld [vmem:[%s8 + $0xd8] sm:$0xff]
    %v732 = vld [vmem:[%s8 + $0xe0] sm:$0xff]
    %v733 = vld [vmem:[%s8 + $0xe8] sm:$0xff]
    %v734 = vld [vmem:[%s8 + $0xf0] sm:$0xff]
    %v735 = vld [vmem:[%s8 + $0xf8] sm:$0xff]
    %v736 = vld [vmem:[%s9] sm:$0xff]
    %v737 = vld [vmem:[%s9 + $0x8] sm:$0xff]
    %v740 = vlaneseq
    %v741 = vshrl.u32 %v740, 7
    %v742 = vsub.s32 0, %v741
    %v743 = vrot.slane %v736, %v742
    %v744 = vlaneseq
    %v745 = vshrl.u32 %v744, 7
    %v746 = vsub.s32 1, %v745
    %v747 = vrot.slane %v736, %v746
    %v748 = vlaneseq
    %v749 = vshrl.u32 %v748, 7
    %v750 = vsub.s32 2, %v749
    %v751 = vrot.slane %v736, %v750
    %v752 = vlaneseq
    %v753 = vshrl.u32 %v752, 7
    %v754 = vsub.s32 3, %v753
    %v755 = vrot.slane %v736, %v754
    %v756 = vlaneseq
    %v757 = vshrl.u32 %v756, 7
    %v758 = vsub.s32 4, %v757
    %v759 = vrot.slane %v736, %v758
    %v760 = vlaneseq
    %v761 = vshrl.u32 %v760, 7
    %v762 = vsub.s32 5, %v761
    %v763 = vrot.slane %v736, %v762
    %v764 = vlaneseq
    %v765 = vshrl.u32 %v764, 7
    %v766 = vsub.s32 6, %v765
    %v767 = vrot.slane %v736, %v766
    %v768 = vlaneseq
    %v769 = vshrl.u32 %v768, 7
    %v770 = vsub.s32 7, %v769
    %v771 = vrot.slane %v736, %v770
    %v772 = vlaneseq
    %v773 = vshrl.u32 %v772, 7
    %v774 = vsub.s32 0, %v773
    %v775 = vrot.slane %v737, %v774
    %v776 = vlaneseq
    %v777 = vshrl.u32 %v776, 7
    %v778 = vsub.s32 1, %v777
    %v779 = vrot.slane %v737, %v778
    %v780 = vlaneseq
    %v781 = vshrl.u32 %v780, 7
    %v782 = vsub.s32 2, %v781
    %v783 = vrot.slane %v737, %v782
    %v784 = vlaneseq
    %v785 = vshrl.u32 %v784, 7
    %v786 = vsub.s32 3, %v785
    %v787 = vrot.slane %v737, %v786
    %v788 = vlaneseq
    %v789 = vshrl.u32 %v788, 7
    %v790 = vsub.s32 4, %v789
    %v791 = vrot.slane %v737, %v790
    %v792 = vlaneseq
    %v793 = vshrl.u32 %v792, 7
    %v794 = vsub.s32 5, %v793
    %v795 = vrot.slane %v737, %v794
    %v796 = vlaneseq
    %v797 = vshrl.u32 %v796, 7
    %v798 = vsub.s32 6, %v797
    %v799 = vrot.slane %v737, %v798
    %v800 = vlaneseq
    %v801 = vshrl.u32 %v800, 7
    %v802 = vsub.s32 7, %v801
    %v803 = vrot.slane %v737, %v802
    %v852 = vunpack.c.l.b16 %v704
    %v853 = vunpack.c.h.b16 %v704
    %v854 = vunpack.c.l.b16 %v705
    %v855 = vunpack.c.h.b16 %v705
    %v856 = vunpack.c.l.b16 %v706
    %v857 = vunpack.c.h.b16 %v706
    %v858 = vunpack.c.l.b16 %v707
    %v859 = vunpack.c.h.b16 %v707
    %v860 = vunpack.c.l.b16 %v708
    %v861 = vunpack.c.h.b16 %v708
    %v862 = vunpack.c.l.b16 %v709
    %v863 = vunpack.c.h.b16 %v709
    %v864 = vunpack.c.l.b16 %v710
    %v865 = vunpack.c.h.b16 %v710
    %v866 = vunpack.c.l.b16 %v711
    %v867 = vunpack.c.h.b16 %v711
    %v868 = vunpack.c.l.b16 %v712
    %v869 = vunpack.c.h.b16 %v712
    %v870 = vunpack.c.l.b16 %v713
    %v871 = vunpack.c.h.b16 %v713
    %v872 = vunpack.c.l.b16 %v714
    %v873 = vunpack.c.h.b16 %v714
    %v874 = vunpack.c.l.b16 %v715
    %v875 = vunpack.c.h.b16 %v715
    %v876 = vunpack.c.l.b16 %v716
    %v877 = vunpack.c.h.b16 %v716
    %v878 = vunpack.c.l.b16 %v717
    %v879 = vunpack.c.h.b16 %v717
    %v880 = vunpack.c.l.b16 %v718
    %v881 = vunpack.c.h.b16 %v718
    %v882 = vunpack.c.l.b16 %v719
    %v883 = vunpack.c.h.b16 %v719
    %v884 = vunpack.c.l.b16 %v720
    %v885 = vunpack.c.h.b16 %v720
    %v886 = vunpack.c.l.b16 %v721
    %v887 = vunpack.c.h.b16 %v721
    %v888 = vunpack.c.l.b16 %v722
    %v889 = vunpack.c.h.b16 %v722
    %v890 = vunpack.c.l.b16 %v723
    %v891 = vunpack.c.h.b16 %v723
    %v892 = vunpack.c.l.b16 %v724
    %v893 = vunpack.c.h.b16 %v724
    %v894 = vunpack.c.l.b16 %v725
    %v895 = vunpack.c.h.b16 %v725
    %v896 = vunpack.c.l.b16 %v726
    %v897 = vunpack.c.h.b16 %v726
    %v898 = vunpack.c.l.b16 %v727
    %v899 = vunpack.c.h.b16 %v727
    %v900 = vunpack.c.l.b16 %v728
    %v901 = vunpack.c.h.b16 %v728
    %v902 = vunpack.c.l.b16 %v729
    %v903 = vunpack.c.h.b16 %v729
    %v904 = vunpack.c.l.b16 %v730
    %v905 = vunpack.c.h.b16 %v730
    %v906 = vunpack.c.l.b16 %v731
    %v907 = vunpack.c.h.b16 %v731
    %v908 = vunpack.c.l.b16 %v732
    %v909 = vunpack.c.h.b16 %v732
    %v910 = vunpack.c.l.b16 %v733
    %v911 = vunpack.c.h.b16 %v733
    %v912 = vunpack.c.l.b16 %v734
    %v913 = vunpack.c.h.b16 %v734
    %v914 = vunpack.c.l.b16 %v735
    %v915 = vunpack.c.h.b16 %v735
    %v916 = vpack.c.b16 %v868, %v852
    %v917 = vpack.c.b16 %v869, %v853
    %v918 = vpack.c.b16 %v870, %v854
    %v919 = vpack.c.b16 %v871, %v855
    %v920 = vpack.c.b16 %v872, %v856
    %v921 = vpack.c.b16 %v873, %v857
    %v922 = vpack.c.b16 %v874, %v858
    %v923 = vpack.c.b16 %v875, %v859
    %v924 = vpack.c.b16 %v876, %v860
    %v925 = vpack.c.b16 %v877, %v861
    %v926 = vpack.c.b16 %v878, %v862
    %v927 = vpack.c.b16 %v879, %v863
    %v928 = vpack.c.b16 %v880, %v864
    %v929 = vpack.c.b16 %v881, %v865
    %v930 = vpack.c.b16 %v882, %v866
    %v931 = vpack.c.b16 %v883, %v867
    %v932 = vpack.c.b16 %v900, %v884
    %v933 = vpack.c.b16 %v901, %v885
    %v934 = vpack.c.b16 %v902, %v886
    %v935 = vpack.c.b16 %v903, %v887
    %v936 = vpack.c.b16 %v904, %v888
    %v937 = vpack.c.b16 %v905, %v889
    %v938 = vpack.c.b16 %v906, %v890
    %v939 = vpack.c.b16 %v907, %v891
    %v940 = vpack.c.b16 %v908, %v892
    %v941 = vpack.c.b16 %v909, %v893
    %v942 = vpack.c.b16 %v910, %v894
    %v943 = vpack.c.b16 %v911, %v895
    %v944 = vpack.c.b16 %v912, %v896
    %v945 = vpack.c.b16 %v913, %v897
    %v946 = vpack.c.b16 %v914, %v898
    %v947 = vpack.c.b16 %v915, %v899
    %v981 = vsel %vm111, %v703, 0
    %983 = vmatprep.subr.bf16.mxu0 0
    %984 = vmatpush1.bf16.msra.mxu0 0
    %985 = vmatprep.subr.bf16.mxu0 0
    %986 = vmatpush1.bf16.msra.mxu0 0
    %987 = vmatprep.subr.bf16.mxu0 0
    %988 = vmatpush1.bf16.msra.mxu0 0
    %989 = vmatprep.subr.bf16.mxu0 0
    %990 = vmatpush1.bf16.msra.mxu0 0
    %991 = vmatprep.subr.bf16.mxu0 0
    %992 = vmatpush1.bf16.msra.mxu0 0
    %993 = vmatprep.subr.bf16.mxu0 0
    %994 = vmatpush1.bf16.msra.mxu0 0
    %995 = vmatprep.subr.bf16.mxu0 %v933
    %996 = vmatpush1.bf16.msra.mxu0 %v932
    %997 = vmatprep.subr.bf16.mxu0 %v917
    %998 = vmatpush1.bf16.msra.mxu0 %v916
    %999 = vmatprep.subr.bf16.mxu0 0
    %1000 = vmatpush2.bf16.msra.mxu0 0
    %1001 = vmatprep.subr.bf16.mxu0 0
    %1002 = vmatpush2.bf16.msra.mxu0 0
    %1003 = vmatprep.subr.bf16.mxu0 0
    %1004 = vmatpush2.bf16.msra.mxu0 0
    %1005 = vmatprep.subr.bf16.mxu0 0
    %1006 = vmatpush2.bf16.msra.mxu0 0
    %1007 = vmatprep.subr.bf16.mxu0 0
    %1008 = vmatpush2.bf16.msra.mxu0 0
    %1009 = vmatprep.subr.bf16.mxu0 0
    %1010 = vmatpush2.bf16.msra.mxu0 0
    %1011 = vmatprep.subr.bf16.mxu0 0
    %1012 = vmatpush2.bf16.msra.mxu0 0
    %1013 = vmatprep.subr.bf16.mxu0 0
    %1014 = vmatpush2.bf16.msra.mxu0 0
    %1015 = vmatprep.mubr.bf16.mxu0 0
    %1016 = vmatmul.mubr.bf16.gmra.mxu0 %v981
    %v1017 = vpop.f32.mrf.mxu0
    %v1018 = vadd.f32 %v743, %v1017
    %v1019 = vpop.f32.mrf.mxu0
    %v1020 = vadd.f32 %v747, %v1019
    %v1021 = vpop.f32.mrf.mxu0
    %v1022 = vadd.f32 %v743, %v1021
    %v1023 = vpop.f32.mrf.mxu0
    %v1024 = vadd.f32 %v747, %v1023
    %1025 = vdwg.mxu0
    %1026 = vmatprep.subr.bf16.mxu0 0
    %1027 = vmatpush1.bf16.msra.mxu0 0
    %1028 = vmatprep.subr.bf16.mxu0 0
    %1029 = vmatpush1.bf16.msra.mxu0 0
    %1030 = vmatprep.subr.bf16.mxu0 0
    %1031 = vmatpush1.bf16.msra.mxu0 0
    %1032 = vmatprep.subr.bf16.mxu0 0
    %1033 = vmatpush1.bf16.msra.mxu0 0
    %1034 = vmatprep.subr.bf16.mxu0 0
    %1035 = vmatpush1.bf16.msra.mxu0 0
    %1036 = vmatprep.subr.bf16.mxu0 0
    %1037 = vmatpush1.bf16.msra.mxu0 0
    %1038 = vmatprep.subr.bf16.mxu0 %v935
    %1039 = vmatpush1.bf16.msra.mxu0 %v934
    %1040 = vmatprep.subr.bf16.mxu0 %v919
    %1041 = vmatpush1.bf16.msra.mxu0 %v918
    %1042 = vmatprep.subr.bf16.mxu0 0
    %1043 = vmatpush2.bf16.msra.mxu0 0
    %1044 = vmatprep.subr.bf16.mxu0 0
    %1045 = vmatpush2.bf16.msra.mxu0 0
    %1046 = vmatprep.subr.bf16.mxu0 0
    %1047 = vmatpush2.bf16.msra.mxu0 0
    %1048 = vmatprep.subr.bf16.mxu0 0
    %1049 = vmatpush2.bf16.msra.mxu0 0
    %1050 = vmatprep.subr.bf16.mxu0 0
    %1051 = vmatpush2.bf16.msra.mxu0 0
    %1052 = vmatprep.subr.bf16.mxu0 0
    %1053 = vmatpush2.bf16.msra.mxu0 0
    %1054 = vmatprep.subr.bf16.mxu0 0
    %1055 = vmatpush2.bf16.msra.mxu0 0
    %1056 = vmatprep.subr.bf16.mxu0 0
    %1057 = vmatpush2.bf16.msra.mxu0 0
    %1058 = vmatprep.mubr.bf16.mxu0 0
    %1059 = vmatmul.mubr.bf16.gmra.mxu0 %v981
    %v1060 = vpop.f32.mrf.mxu0
    %v1061 = vadd.f32 %v751, %v1060
    %v1062 = vpop.f32.mrf.mxu0
    %v1063 = vadd.f32 %v755, %v1062
    %v1064 = vpop.f32.mrf.mxu0
    %v1065 = vadd.f32 %v751, %v1064
    %v1066 = vpop.f32.mrf.mxu0
    %v1067 = vadd.f32 %v755, %v1066
    %1068 = vdwg.mxu0
    %1069 = vmatprep.subr.bf16.mxu0 0
    %1070 = vmatpush1.bf16.msra.mxu0 0
    %1071 = vmatprep.subr.bf16.mxu0 0
    %1072 = vmatpush1.bf16.msra.mxu0 0
    %1073 = vmatprep.subr.bf16.mxu0 0
    %1074 = vmatpush1.bf16.msra.mxu0 0
    %1075 = vmatprep.subr.bf16.mxu0 0
    %1076 = vmatpush1.bf16.msra.mxu0 0
    %1077 = vmatprep.subr.bf16.mxu0 0
    %1078 = vmatpush1.bf16.msra.mxu0 0
    %1079 = vmatprep.subr.bf16.mxu0 0
    %1080 = vmatpush1.bf16.msra.mxu0 0
    %1081 = vmatprep.subr.bf16.mxu0 %v937
    %1082 = vmatpush1.bf16.msra.mxu0 %v936
    %1083 = vmatprep.subr.bf16.mxu0 %v921
    %1084 = vmatpush1.bf16.msra.mxu0 %v920
    %1085 = vmatprep.subr.bf16.mxu0 0
    %1086 = vmatpush2.bf16.msra.mxu0 0
    %1087 = vmatprep.subr.bf16.mxu0 0
    %1088 = vmatpush2.bf16.msra.mxu0 0
    %1089 = vmatprep.subr.bf16.mxu0 0
    %1090 = vmatpush2.bf16.msra.mxu0 0
    %1091 = vmatprep.subr.bf16.mxu0 0
    %1092 = vmatpush2.bf16.msra.mxu0 0
    %1093 = vmatprep.subr.bf16.mxu0 0
    %1094 = vmatpush2.bf16.msra.mxu0 0
    %1095 = vmatprep.subr.bf16.mxu0 0
    %1096 = vmatpush2.bf16.msra.mxu0 0
    %1097 = vmatprep.subr.bf16.mxu0 0
    %1098 = vmatpush2.bf16.msra.mxu0 0
    %1099 = vmatprep.subr.bf16.mxu0 0
    %1100 = vmatpush2.bf16.msra.mxu0 0
    %1101 = vmatprep.mubr.bf16.mxu0 0
    %1102 = vmatmul.mubr.bf16.gmra.mxu0 %v981
    %v1103 = vpop.f32.mrf.mxu0
    %v1104 = vadd.f32 %v759, %v1103
    %v1105 = vpop.f32.mrf.mxu0
    %v1106 = vadd.f32 %v763, %v1105
    %v1107 = vpop.f32.mrf.mxu0
    %v1108 = vadd.f32 %v759, %v1107
    %v1109 = vpop.f32.mrf.mxu0
    %v1110 = vadd.f32 %v763, %v1109
    %1111 = vdwg.mxu0
    %1112 = vmatprep.subr.bf16.mxu0 0
    %1113 = vmatpush1.bf16.msra.mxu0 0
    %1114 = vmatprep.subr.bf16.mxu0 0
    %1115 = vmatpush1.bf16.msra.mxu0 0
    %1116 = vmatprep.subr.bf16.mxu0 0
    %1117 = vmatpush1.bf16.msra.mxu0 0
    %1118 = vmatprep.subr.bf16.mxu0 0
    %1119 = vmatpush1.bf16.msra.mxu0 0
    %1120 = vmatprep.subr.bf16.mxu0 0
    %1121 = vmatpush1.bf16.msra.mxu0 0
    %1122 = vmatprep.subr.bf16.mxu0 0
    %1123 = vmatpush1.bf16.msra.mxu0 0
    %1124 = vmatprep.subr.bf16.mxu0 %v939
    %1125 = vmatpush1.bf16.msra.mxu0 %v938
    %1126 = vmatprep.subr.bf16.mxu0 %v923
    %1127 = vmatpush1.bf16.msra.mxu0 %v922
    %1128 = vmatprep.subr.bf16.mxu0 0
    %1129 = vmatpush2.bf16.msra.mxu0 0
    %1130 = vmatprep.subr.bf16.mxu0 0
    %1131 = vmatpush2.bf16.msra.mxu0 0
    %1132 = vmatprep.subr.bf16.mxu0 0
    %1133 = vmatpush2.bf16.msra.mxu0 0
    %1134 = vmatprep.subr.bf16.mxu0 0
    %1135 = vmatpush2.bf16.msra.mxu0 0
    %1136 = vmatprep.subr.bf16.mxu0 0
    %1137 = vmatpush2.bf16.msra.mxu0 0
    %1138 = vmatprep.subr.bf16.mxu0 0
    %1139 = vmatpush2.bf16.msra.mxu0 0
    %1140 = vmatprep.subr.bf16.mxu0 0
    %1141 = vmatpush2.bf16.msra.mxu0 0
    %1142 = vmatprep.subr.bf16.mxu0 0
    %1143 = vmatpush2.bf16.msra.mxu0 0
    %1144 = vmatprep.mubr.bf16.mxu0 0
    %1145 = vmatmul.mubr.bf16.gmra.mxu0 %v981
    %v1146 = vpop.f32.mrf.mxu0
    %v1147 = vadd.f32 %v767, %v1146
    %v1148 = vpop.f32.mrf.mxu0
    %v1149 = vadd.f32 %v771, %v1148
    %v1150 = vpop.f32.mrf.mxu0
    %v1151 = vadd.f32 %v767, %v1150
    %v1152 = vpop.f32.mrf.mxu0
    %v1153 = vadd.f32 %v771, %v1152
    %1154 = vdwg.mxu0
    %1155 = vmatprep.subr.bf16.mxu0 0
    %1156 = vmatpush1.bf16.msra.mxu0 0
    %1157 = vmatprep.subr.bf16.mxu0 0
    %1158 = vmatpush1.bf16.msra.mxu0 0
    %1159 = vmatprep.subr.bf16.mxu0 0
    %1160 = vmatpush1.bf16.msra.mxu0 0
    %1161 = vmatprep.subr.bf16.mxu0 0
    %1162 = vmatpush1.bf16.msra.mxu0 0
    %1163 = vmatprep.subr.bf16.mxu0 0
    %1164 = vmatpush1.bf16.msra.mxu0 0
    %1165 = vmatprep.subr.bf16.mxu0 0
    %1166 = vmatpush1.bf16.msra.mxu0 0
    %1167 = vmatprep.subr.bf16.mxu0 %v941
    %1168 = vmatpush1.bf16.msra.mxu0 %v940
    %1169 = vmatprep.subr.bf16.mxu0 %v925
    %1170 = vmatpush1.bf16.msra.mxu0 %v924
    %1171 = vmatprep.subr.bf16.mxu0 0
    %1172 = vmatpush2.bf16.msra.mxu0 0
    %1173 = vmatprep.subr.bf16.mxu0 0
    %1174 = vmatpush2.bf16.msra.mxu0 0
    %1175 = vmatprep.subr.bf16.mxu0 0
    %1176 = vmatpush2.bf16.msra.mxu0 0
    %1177 = vmatprep.subr.bf16.mxu0 0
    %1178 = vmatpush2.bf16.msra.mxu0 0
    %1179 = vmatprep.subr.bf16.mxu0 0
    %1180 = vmatpush2.bf16.msra.mxu0 0
    %1181 = vmatprep.subr.bf16.mxu0 0
    %1182 = vmatpush2.bf16.msra.mxu0 0
    %1183 = vmatprep.subr.bf16.mxu0 0
    %1184 = vmatpush2.bf16.msra.mxu0 0
    %1185 = vmatprep.subr.bf16.mxu0 0
    %1186 = vmatpush2.bf16.msra.mxu0 0
    %1187 = vmatprep.mubr.bf16.mxu0 0
    %1188 = vmatmul.mubr.bf16.gmra.mxu0 %v981
    %v1189 = vpop.f32.mrf.mxu0
    %v1190 = vadd.f32 %v775, %v1189
    %v1191 = vpop.f32.mrf.mxu0
    %v1192 = vadd.f32 %v779, %v1191
    %v1193 = vpop.f32.mrf.mxu0
    %v1194 = vadd.f32 %v775, %v1193
    %v1195 = vpop.f32.mrf.mxu0
    %v1196 = vadd.f32 %v779, %v1195
    %1197 = vdwg.mxu0
    %1198 = vmatprep.subr.bf16.mxu0 0
    %1199 = vmatpush1.bf16.msra.mxu0 0
    %1200 = vmatprep.subr.bf16.mxu0 0
    %1201 = vmatpush1.bf16.msra.mxu0 0
    %1202 = vmatprep.subr.bf16.mxu0 0
    %1203 = vmatpush1.bf16.msra.mxu0 0
    %1204 = vmatprep.subr.bf16.mxu0 0
    %1205 = vmatpush1.bf16.msra.mxu0 0
    %1206 = vmatprep.subr.bf16.mxu0 0
    %1207 = vmatpush1.bf16.msra.mxu0 0
    %1208 = vmatprep.subr.bf16.mxu0 0
    %1209 = vmatpush1.bf16.msra.mxu0 0
    %1210 = vmatprep.subr.bf16.mxu0 %v943
    %1211 = vmatpush1.bf16.msra.mxu0 %v942
    %1212 = vmatprep.subr.bf16.mxu0 %v927
    %1213 = vmatpush1.bf16.msra.mxu0 %v926
    %1214 = vmatprep.subr.bf16.mxu0 0
    %1215 = vmatpush2.bf16.msra.mxu0 0
    %1216 = vmatprep.subr.bf16.mxu0 0
    %1217 = vmatpush2.bf16.msra.mxu0 0
    %1218 = vmatprep.subr.bf16.mxu0 0
    %1219 = vmatpush2.bf16.msra.mxu0 0
    %1220 = vmatprep.subr.bf16.mxu0 0
    %1221 = vmatpush2.bf16.msra.mxu0 0
    %1222 = vmatprep.subr.bf16.mxu0 0
    %1223 = vmatpush2.bf16.msra.mxu0 0
    %1224 = vmatprep.subr.bf16.mxu0 0
    %1225 = vmatpush2.bf16.msra.mxu0 0
    %1226 = vmatprep.subr.bf16.mxu0 0
    %1227 = vmatpush2.bf16.msra.mxu0 0
    %1228 = vmatprep.subr.bf16.mxu0 0
    %1229 = vmatpush2.bf16.msra.mxu0 0
    %1230 = vmatprep.mubr.bf16.mxu0 0
    %1231 = vmatmul.mubr.bf16.gmra.mxu0 %v981
    %v1232 = vpop.f32.mrf.mxu0
    %v1233 = vadd.f32 %v783, %v1232
    %v1234 = vpop.f32.mrf.mxu0
    %v1235 = vadd.f32 %v787, %v1234
    %v1236 = vpop.f32.mrf.mxu0
    %v1237 = vadd.f32 %v783, %v1236
    %v1238 = vpop.f32.mrf.mxu0
    %v1239 = vadd.f32 %v787, %v1238
    %1240 = vdwg.mxu0
    %1241 = vmatprep.subr.bf16.mxu0 0
    %1242 = vmatpush1.bf16.msra.mxu0 0
    %1243 = vmatprep.subr.bf16.mxu0 0
    %1244 = vmatpush1.bf16.msra.mxu0 0
    %1245 = vmatprep.subr.bf16.mxu0 0
    %1246 = vmatpush1.bf16.msra.mxu0 0
    %1247 = vmatprep.subr.bf16.mxu0 0
    %1248 = vmatpush1.bf16.msra.mxu0 0
    %1249 = vmatprep.subr.bf16.mxu0 0
    %1250 = vmatpush1.bf16.msra.mxu0 0
    %1251 = vmatprep.subr.bf16.mxu0 0
    %1252 = vmatpush1.bf16.msra.mxu0 0
    %1253 = vmatprep.subr.bf16.mxu0 %v945
    %1254 = vmatpush1.bf16.msra.mxu0 %v944
    %1255 = vmatprep.subr.bf16.mxu0 %v929
    %1256 = vmatpush1.bf16.msra.mxu0 %v928
    %1257 = vmatprep.subr.bf16.mxu0 0
    %1258 = vmatpush2.bf16.msra.mxu0 0
    %1259 = vmatprep.subr.bf16.mxu0 0
    %1260 = vmatpush2.bf16.msra.mxu0 0
    %1261 = vmatprep.subr.bf16.mxu0 0
    %1262 = vmatpush2.bf16.msra.mxu0 0
    %1263 = vmatprep.subr.bf16.mxu0 0
    %1264 = vmatpush2.bf16.msra.mxu0 0
    %1265 = vmatprep.subr.bf16.mxu0 0
    %1266 = vmatpush2.bf16.msra.mxu0 0
    %1267 = vmatprep.subr.bf16.mxu0 0
    %1268 = vmatpush2.bf16.msra.mxu0 0
    %1269 = vmatprep.subr.bf16.mxu0 0
    %1270 = vmatpush2.bf16.msra.mxu0 0
    %1271 = vmatprep.subr.bf16.mxu0 0
    %1272 = vmatpush2.bf16.msra.mxu0 0
    %1273 = vmatprep.mubr.bf16.mxu0 0
    %1274 = vmatmul.mubr.bf16.gmra.mxu0 %v981
    %v1275 = vpop.f32.mrf.mxu0
    %v1276 = vadd.f32 %v791, %v1275
    %v1277 = vpop.f32.mrf.mxu0
    %v1278 = vadd.f32 %v795, %v1277
    %v1279 = vpop.f32.mrf.mxu0
    %v1280 = vadd.f32 %v791, %v1279
    %v1281 = vpop.f32.mrf.mxu0
    %v1282 = vadd.f32 %v795, %v1281
    %1283 = vdwg.mxu0
    %1284 = vmatprep.subr.bf16.mxu0 0
    %1285 = vmatpush1.bf16.msra.mxu0 0
    %1286 = vmatprep.subr.bf16.mxu0 0
    %1287 = vmatpush1.bf16.msra.mxu0 0
    %1288 = vmatprep.subr.bf16.mxu0 0
    %1289 = vmatpush1.bf16.msra.mxu0 0
    %1290 = vmatprep.subr.bf16.mxu0 0
    %1291 = vmatpush1.bf16.msra.mxu0 0
    %1292 = vmatprep.subr.bf16.mxu0 0
    %1293 = vmatpush1.bf16.msra.mxu0 0
    %1294 = vmatprep.subr.bf16.mxu0 0
    %1295 = vmatpush1.bf16.msra.mxu0 0
    %1296 = vmatprep.subr.bf16.mxu0 %v947
    %1297 = vmatpush1.bf16.msra.mxu0 %v946
    %1298 = vmatprep.subr.bf16.mxu0 %v931
    %1299 = vmatpush1.bf16.msra.mxu0 %v930
    %1300 = vmatprep.subr.bf16.mxu0 0
    %1301 = vmatpush2.bf16.msra.mxu0 0
    %1302 = vmatprep.subr.bf16.mxu0 0
    %1303 = vmatpush2.bf16.msra.mxu0 0
    %1304 = vmatprep.subr.bf16.mxu0 0
    %1305 = vmatpush2.bf16.msra.mxu0 0
    %1306 = vmatprep.subr.bf16.mxu0 0
    %1307 = vmatpush2.bf16.msra.mxu0 0
    %1308 = vmatprep.subr.bf16.mxu0 0
    %1309 = vmatpush2.bf16.msra.mxu0 0
    %1310 = vmatprep.subr.bf16.mxu0 0
    %1311 = vmatpush2.bf16.msra.mxu0 0
    %1312 = vmatprep.subr.bf16.mxu0 0
    %1313 = vmatpush2.bf16.msra.mxu0 0
    %1314 = vmatprep.subr.bf16.mxu0 0
    %1315 = vmatpush2.bf16.msra.mxu0 0
    %1316 = vmatprep.mubr.bf16.mxu0 0
    %1317 = vmatmul.mubr.bf16.gmra.mxu0 %v981
    %v1318 = vpop.f32.mrf.mxu0
    %v1319 = vadd.f32 %v799, %v1318
    %v1320 = vpop.f32.mrf.mxu0
    %v1321 = vadd.f32 %v803, %v1320
    %v1322 = vpop.f32.mrf.mxu0
    %v1323 = vadd.f32 %v799, %v1322
    %v1324 = vpop.f32.mrf.mxu0
    %v1325 = vadd.f32 %v803, %v1324
    %1326 = vdwg.mxu0
    %v1327 = vmax.f32 %v1018, 0.0
    %v1328 = vmax.f32 %v1020, 0.0
    %v1329 = vmax.f32 %v1061, 0.0
    %v1330 = vmax.f32 %v1063, 0.0
    %v1331 = vmax.f32 %v1104, 0.0
    %v1332 = vmax.f32 %v1106, 0.0
    %v1333 = vmax.f32 %v1147, 0.0
    %v1334 = vmax.f32 %v1149, 0.0
    %v1335 = vmax.f32 %v1190, 0.0
    %v1336 = vmax.f32 %v1192, 0.0
    %v1337 = vmax.f32 %v1233, 0.0
    %v1338 = vmax.f32 %v1235, 0.0
    %v1339 = vmax.f32 %v1276, 0.0
    %v1340 = vmax.f32 %v1278, 0.0
    %v1341 = vmax.f32 %v1319, 0.0
    %v1342 = vmax.f32 %v1321, 0.0
    %v1343 = vmax.f32 %v1022, 0.0
    %v1344 = vmax.f32 %v1024, 0.0
    %v1345 = vmax.f32 %v1065, 0.0
    %v1346 = vmax.f32 %v1067, 0.0
    %v1347 = vmax.f32 %v1108, 0.0
    %v1348 = vmax.f32 %v1110, 0.0
    %v1349 = vmax.f32 %v1151, 0.0
    %v1350 = vmax.f32 %v1153, 0.0
    %v1351 = vmax.f32 %v1194, 0.0
    %v1352 = vmax.f32 %v1196, 0.0
    %v1353 = vmax.f32 %v1237, 0.0
    %v1354 = vmax.f32 %v1239, 0.0
    %v1355 = vmax.f32 %v1280, 0.0
    %v1356 = vmax.f32 %v1282, 0.0
    %v1357 = vmax.f32 %v1323, 0.0
    %v1358 = vmax.f32 %v1325, 0.0
    %v1359 = vpack.c.bf16 %v1343, %v1327
    %v1360 = vpack.c.bf16 %v1344, %v1328
    %v1361 = vpack.c.bf16 %v1345, %v1329
    %v1362 = vpack.c.bf16 %v1346, %v1330
    %v1363 = vpack.c.bf16 %v1347, %v1331
    %v1364 = vpack.c.bf16 %v1348, %v1332
    %v1365 = vpack.c.bf16 %v1349, %v1333
    %v1366 = vpack.c.bf16 %v1350, %v1334
    %v1367 = vpack.c.bf16 %v1351, %v1335
    %v1368 = vpack.c.bf16 %v1352, %v1336
    %v1369 = vpack.c.bf16 %v1353, %v1337
    %v1370 = vpack.c.bf16 %v1354, %v1338
    %v1371 = vpack.c.bf16 %v1355, %v1339
    %v1372 = vpack.c.bf16 %v1356, %v1340
    %v1373 = vpack.c.bf16 %v1357, %v1341
    %v1374 = vpack.c.bf16 %v1358, %v1342
    %v1375 = vld [vmem:[%s10] sm:$0xf]
    %v1376 = vld [vmem:[%s10 + $0x4] sm:$0xf]
    %v1377 = vld [vmem:[%s10 + $0x8] sm:$0xf]
    %v1378 = vld [vmem:[%s10 + $0xc] sm:$0xf]
    %v1379 = vld [vmem:[%s10 + $0x10] sm:$0xf]
    %v1380 = vld [vmem:[%s10 + $0x14] sm:$0xf]
    %v1381 = vld [vmem:[%s10 + $0x18] sm:$0xf]
    %v1382 = vld [vmem:[%s10 + $0x1c] sm:$0xf]
    %v1383 = vld [vmem:[%s10 + $0x20] sm:$0xf]
    %v1384 = vld [vmem:[%s10 + $0x24] sm:$0xf]
    %v1385 = vld [vmem:[%s10 + $0x28] sm:$0xf]
    %v1386 = vld [vmem:[%s10 + $0x2c] sm:$0xf]
    %v1387 = vld [vmem:[%s10 + $0x30] sm:$0xf]
    %v1388 = vld [vmem:[%s10 + $0x34] sm:$0xf]
    %v1389 = vld [vmem:[%s10 + $0x38] sm:$0xf]
    %v1390 = vld [vmem:[%s10 + $0x3c] sm:$0xf]
    %v1391 = vld [vmem:[%s10 + $0x40] sm:$0xf]
    %v1392 = vld [vmem:[%s10 + $0x44] sm:$0xf]
    %v1393 = vld [vmem:[%s10 + $0x48] sm:$0xf]
    %v1394 = vld [vmem:[%s10 + $0x4c] sm:$0xf]
    %v1395 = vld [vmem:[%s10 + $0x50] sm:$0xf]
    %v1396 = vld [vmem:[%s10 + $0x54] sm:$0xf]
    %v1397 = vld [vmem:[%s10 + $0x58] sm:$0xf]
    %v1398 = vld [vmem:[%s10 + $0x5c] sm:$0xf]
    %v1399 = vld [vmem:[%s10 + $0x60] sm:$0xf]
    %v1400 = vld [vmem:[%s10 + $0x64] sm:$0xf]
    %v1401 = vld [vmem:[%s10 + $0x68] sm:$0xf]
    %v1402 = vld [vmem:[%s10 + $0x6c] sm:$0xf]
    %v1403 = vld [vmem:[%s10 + $0x70] sm:$0xf]
    %v1404 = vld [vmem:[%s10 + $0x74] sm:$0xf]
    %v1405 = vld [vmem:[%s10 + $0x78] sm:$0xf]
    %v1406 = vld [vmem:[%s10 + $0x7c] sm:$0xf]
    %v1407 = vld [vmem:[%s10 + $0x80] sm:$0xf]
    %v1408 = vld [vmem:[%s10 + $0x84] sm:$0xf]
    %v1409 = vld [vmem:[%s10 + $0x88] sm:$0xf]
    %v1410 = vld [vmem:[%s10 + $0x8c] sm:$0xf]
    %v1411 = vld [vmem:[%s10 + $0x90] sm:$0xf]
    %v1412 = vld [vmem:[%s10 + $0x94] sm:$0xf]
    %v1413 = vld [vmem:[%s10 + $0x98] sm:$0xf]
    %v1414 = vld [vmem:[%s10 + $0x9c] sm:$0xf]
    %v1415 = vld [vmem:[%s10 + $0xa0] sm:$0xf]
    %v1416 = vld [vmem:[%s10 + $0xa4] sm:$0xf]
    %v1417 = vld [vmem:[%s10 + $0xa8] sm:$0xf]
    %v1418 = vld [vmem:[%s10 + $0xac] sm:$0xf]
    %v1419 = vld [vmem:[%s10 + $0xb0] sm:$0xf]
    %v1420 = vld [vmem:[%s10 + $0xb4] sm:$0xf]
    %v1421 = vld [vmem:[%s10 + $0xb8] sm:$0xf]
    %v1422 = vld [vmem:[%s10 + $0xbc] sm:$0xf]
    %v1423 = vld [vmem:[%s10 + $0xc0] sm:$0xf]
    %v1424 = vld [vmem:[%s10 + $0xc4] sm:$0xf]
    %v1425 = vld [vmem:[%s10 + $0xc8] sm:$0xf]
    %v1426 = vld [vmem:[%s10 + $0xcc] sm:$0xf]
    %v1427 = vld [vmem:[%s10 + $0xd0] sm:$0xf]
    %v1428 = vld [vmem:[%s10 + $0xd4] sm:$0xf]
    %v1429 = vld [vmem:[%s10 + $0xd8] sm:$0xf]
    %v1430 = vld [vmem:[%s10 + $0xdc] sm:$0xf]
    %v1431 = vld [vmem:[%s10 + $0xe0] sm:$0xf]
    %v1432 = vld [vmem:[%s10 + $0xe4] sm:$0xf]
    %v1433 = vld [vmem:[%s10 + $0xe8] sm:$0xf]
    %v1434 = vld [vmem:[%s10 + $0xec] sm:$0xf]
    %v1435 = vld [vmem:[%s10 + $0xf0] sm:$0xf]
    %v1436 = vld [vmem:[%s10 + $0xf4] sm:$0xf]
    %v1437 = vld [vmem:[%s10 + $0xf8] sm:$0xf]
    %v1438 = vld [vmem:[%s10 + $0xfc] sm:$0xf]
    %v1439 = vld [vmem:[%s10 + $0x100] sm:$0xf]
    %v1440 = vld [vmem:[%s10 + $0x104] sm:$0xf]
    %v1441 = vld [vmem:[%s10 + $0x108] sm:$0xf]
    %v1442 = vld [vmem:[%s10 + $0x10c] sm:$0xf]
    %v1443 = vld [vmem:[%s10 + $0x110] sm:$0xf]
    %v1444 = vld [vmem:[%s10 + $0x114] sm:$0xf]
    %v1445 = vld [vmem:[%s10 + $0x118] sm:$0xf]
    %v1446 = vld [vmem:[%s10 + $0x11c] sm:$0xf]
    %v1447 = vld [vmem:[%s10 + $0x120] sm:$0xf]
    %v1448 = vld [vmem:[%s10 + $0x124] sm:$0xf]
    %v1449 = vld [vmem:[%s10 + $0x128] sm:$0xf]
    %v1450 = vld [vmem:[%s10 + $0x12c] sm:$0xf]
    %v1451 = vld [vmem:[%s10 + $0x130] sm:$0xf]
    %v1452 = vld [vmem:[%s10 + $0x134] sm:$0xf]
    %v1453 = vld [vmem:[%s10 + $0x138] sm:$0xf]
    %v1454 = vld [vmem:[%s10 + $0x13c] sm:$0xf]
    %v1455 = vld [vmem:[%s10 + $0x140] sm:$0xf]
    %v1456 = vld [vmem:[%s10 + $0x144] sm:$0xf]
    %v1457 = vld [vmem:[%s10 + $0x148] sm:$0xf]
    %v1458 = vld [vmem:[%s10 + $0x14c] sm:$0xf]
    %v1459 = vld [vmem:[%s10 + $0x150] sm:$0xf]
    %v1460 = vld [vmem:[%s10 + $0x154] sm:$0xf]
    %v1461 = vld [vmem:[%s10 + $0x158] sm:$0xf]
    %v1462 = vld [vmem:[%s10 + $0x15c] sm:$0xf]
    %v1463 = vld [vmem:[%s10 + $0x160] sm:$0xf]
    %v1464 = vld [vmem:[%s10 + $0x164] sm:$0xf]
    %v1465 = vld [vmem:[%s10 + $0x168] sm:$0xf]
    %v1466 = vld [vmem:[%s10 + $0x16c] sm:$0xf]
    %v1467 = vld [vmem:[%s10 + $0x170] sm:$0xf]
    %v1468 = vld [vmem:[%s10 + $0x174] sm:$0xf]
    %v1469 = vld [vmem:[%s10 + $0x178] sm:$0xf]
    %v1470 = vld [vmem:[%s10 + $0x17c] sm:$0xf]
    %v1471 = vld [vmem:[%s10 + $0x180] sm:$0xf]
    %v1472 = vld [vmem:[%s10 + $0x184] sm:$0xf]
    %v1473 = vld [vmem:[%s10 + $0x188] sm:$0xf]
    %v1474 = vld [vmem:[%s10 + $0x18c] sm:$0xf]
    %v1475 = vld [vmem:[%s10 + $0x190] sm:$0xf]
    %v1476 = vld [vmem:[%s10 + $0x194] sm:$0xf]
    %v1477 = vld [vmem:[%s10 + $0x198] sm:$0xf]
    %v1478 = vld [vmem:[%s10 + $0x19c] sm:$0xf]
    %v1479 = vld [vmem:[%s10 + $0x1a0] sm:$0xf]
    %v1480 = vld [vmem:[%s10 + $0x1a4] sm:$0xf]
    %v1481 = vld [vmem:[%s10 + $0x1a8] sm:$0xf]
    %v1482 = vld [vmem:[%s10 + $0x1ac] sm:$0xf]
    %v1483 = vld [vmem:[%s10 + $0x1b0] sm:$0xf]
    %v1484 = vld [vmem:[%s10 + $0x1b4] sm:$0xf]
    %v1485 = vld [vmem:[%s10 + $0x1b8] sm:$0xf]
    %v1486 = vld [vmem:[%s10 + $0x1bc] sm:$0xf]
    %v1487 = vld [vmem:[%s10 + $0x1c0] sm:$0xf]
    %v1488 = vld [vmem:[%s10 + $0x1c4] sm:$0xf]
    %v1489 = vld [vmem:[%s10 + $0x1c8] sm:$0xf]
    %v1490 = vld [vmem:[%s10 + $0x1cc] sm:$0xf]
    %v1491 = vld [vmem:[%s10 + $0x1d0] sm:$0xf]
    %v1492 = vld [vmem:[%s10 + $0x1d4] sm:$0xf]
    %v1493 = vld [vmem:[%s10 + $0x1d8] sm:$0xf]
    %v1494 = vld [vmem:[%s10 + $0x1dc] sm:$0xf]
    %v1495 = vld [vmem:[%s10 + $0x1e0] sm:$0xf]
    %v1496 = vld [vmem:[%s10 + $0x1e4] sm:$0xf]
    %v1497 = vld [vmem:[%s10 + $0x1e8] sm:$0xf]
    %v1498 = vld [vmem:[%s10 + $0x1ec] sm:$0xf]
    %v1499 = vld [vmem:[%s10 + $0x1f0] sm:$0xf]
    %v1500 = vld [vmem:[%s10 + $0x1f4] sm:$0xf]
    %v1501 = vld [vmem:[%s10 + $0x1f8] sm:$0xf]
    %v1502 = vld [vmem:[%s10 + $0x1fc] sm:$0xf]
    %v1503 = vld [vmem:[%s10 + $0x200] sm:$0xf]
    %v1504 = vld [vmem:[%s10 + $0x204] sm:$0xf]
    %v1505 = vld [vmem:[%s10 + $0x208] sm:$0xf]
    %v1506 = vld [vmem:[%s10 + $0x20c] sm:$0xf]
    %v1507 = vld [vmem:[%s10 + $0x210] sm:$0xf]
    %v1508 = vld [vmem:[%s10 + $0x214] sm:$0xf]
    %v1509 = vld [vmem:[%s10 + $0x218] sm:$0xf]
    %v1510 = vld [vmem:[%s10 + $0x21c] sm:$0xf]
    %v1511 = vld [vmem:[%s10 + $0x220] sm:$0xf]
    %v1512 = vld [vmem:[%s10 + $0x224] sm:$0xf]
    %v1513 = vld [vmem:[%s10 + $0x228] sm:$0xf]
    %v1514 = vld [vmem:[%s10 + $0x22c] sm:$0xf]
    %v1515 = vld [vmem:[%s10 + $0x230] sm:$0xf]
    %v1516 = vld [vmem:[%s10 + $0x234] sm:$0xf]
    %v1517 = vld [vmem:[%s10 + $0x238] sm:$0xf]
    %v1518 = vld [vmem:[%s10 + $0x23c] sm:$0xf]
    %v1519 = vld [vmem:[%s10 + $0x240] sm:$0xf]
    %v1520 = vld [vmem:[%s10 + $0x244] sm:$0xf]
    %v1521 = vld [vmem:[%s10 + $0x248] sm:$0xf]
    %v1522 = vld [vmem:[%s10 + $0x24c] sm:$0xf]
    %v1523 = vld [vmem:[%s10 + $0x250] sm:$0xf]
    %v1524 = vld [vmem:[%s10 + $0x254] sm:$0xf]
    %v1525 = vld [vmem:[%s10 + $0x258] sm:$0xf]
    %v1526 = vld [vmem:[%s10 + $0x25c] sm:$0xf]
    %v1527 = vld [vmem:[%s10 + $0x260] sm:$0xf]
    %v1528 = vld [vmem:[%s10 + $0x264] sm:$0xf]
    %v1529 = vld [vmem:[%s10 + $0x268] sm:$0xf]
    %v1530 = vld [vmem:[%s10 + $0x26c] sm:$0xf]
    %v1531 = vld [vmem:[%s10 + $0x270] sm:$0xf]
    %v1532 = vld [vmem:[%s10 + $0x274] sm:$0xf]
    %v1533 = vld [vmem:[%s10 + $0x278] sm:$0xf]
    %v1534 = vld [vmem:[%s10 + $0x27c] sm:$0xf]
    %v1535 = vld [vmem:[%s10 + $0x280] sm:$0xf]
    %v1536 = vld [vmem:[%s10 + $0x284] sm:$0xf]
    %v1537 = vld [vmem:[%s10 + $0x288] sm:$0xf]
    %v1538 = vld [vmem:[%s10 + $0x28c] sm:$0xf]
    %v1539 = vld [vmem:[%s10 + $0x290] sm:$0xf]
    %v1540 = vld [vmem:[%s10 + $0x294] sm:$0xf]
    %v1541 = vld [vmem:[%s10 + $0x298] sm:$0xf]
    %v1542 = vld [vmem:[%s10 + $0x29c] sm:$0xf]
    %v1543 = vld [vmem:[%s10 + $0x2a0] sm:$0xf]
    %v1544 = vld [vmem:[%s10 + $0x2a4] sm:$0xf]
    %v1545 = vld [vmem:[%s10 + $0x2a8] sm:$0xf]
    %v1546 = vld [vmem:[%s10 + $0x2ac] sm:$0xf]
    %v1547 = vld [vmem:[%s10 + $0x2b0] sm:$0xf]
    %v1548 = vld [vmem:[%s10 + $0x2b4] sm:$0xf]
    %v1549 = vld [vmem:[%s10 + $0x2b8] sm:$0xf]
    %v1550 = vld [vmem:[%s10 + $0x2bc] sm:$0xf]
    %v1551 = vld [vmem:[%s10 + $0x2c0] sm:$0xf]
    %v1552 = vld [vmem:[%s10 + $0x2c4] sm:$0xf]
    %v1553 = vld [vmem:[%s10 + $0x2c8] sm:$0xf]
    %v1554 = vld [vmem:[%s10 + $0x2cc] sm:$0xf]
    %v1555 = vld [vmem:[%s10 + $0x2d0] sm:$0xf]
    %v1556 = vld [vmem:[%s10 + $0x2d4] sm:$0xf]
    %v1557 = vld [vmem:[%s10 + $0x2d8] sm:$0xf]
    %v1558 = vld [vmem:[%s10 + $0x2dc] sm:$0xf]
    %v1559 = vld [vmem:[%s10 + $0x2e0] sm:$0xf]
    %v1560 = vld [vmem:[%s10 + $0x2e4] sm:$0xf]
    %v1561 = vld [vmem:[%s10 + $0x2e8] sm:$0xf]
    %v1562 = vld [vmem:[%s10 + $0x2ec] sm:$0xf]
    %v1563 = vld [vmem:[%s10 + $0x2f0] sm:$0xf]
    %v1564 = vld [vmem:[%s10 + $0x2f4] sm:$0xf]
    %v1565 = vld [vmem:[%s10 + $0x2f8] sm:$0xf]
    %v1566 = vld [vmem:[%s10 + $0x2fc] sm:$0xf]
    %v1567 = vld [vmem:[%s10 + $0x300] sm:$0xf]
    %v1568 = vld [vmem:[%s10 + $0x304] sm:$0xf]
    %v1569 = vld [vmem:[%s10 + $0x308] sm:$0xf]
    %v1570 = vld [vmem:[%s10 + $0x30c] sm:$0xf]
    %v1571 = vld [vmem:[%s10 + $0x310] sm:$0xf]
    %v1572 = vld [vmem:[%s10 + $0x314] sm:$0xf]
    %v1573 = vld [vmem:[%s10 + $0x318] sm:$0xf]
    %v1574 = vld [vmem:[%s10 + $0x31c] sm:$0xf]
    %v1575 = vld [vmem:[%s10 + $0x320] sm:$0xf]
    %v1576 = vld [vmem:[%s10 + $0x324] sm:$0xf]
    %v1577 = vld [vmem:[%s10 + $0x328] sm:$0xf]
    %v1578 = vld [vmem:[%s10 + $0x32c] sm:$0xf]
    %v1579 = vld [vmem:[%s10 + $0x330] sm:$0xf]
    %v1580 = vld [vmem:[%s10 + $0x334] sm:$0xf]
    %v1581 = vld [vmem:[%s10 + $0x338] sm:$0xf]
    %v1582 = vld [vmem:[%s10 + $0x33c] sm:$0xf]
    %v1583 = vld [vmem:[%s10 + $0x340] sm:$0xf]
    %v1584 = vld [vmem:[%s10 + $0x344] sm:$0xf]
    %v1585 = vld [vmem:[%s10 + $0x348] sm:$0xf]
    %v1586 = vld [vmem:[%s10 + $0x34c] sm:$0xf]
    %v1587 = vld [vmem:[%s10 + $0x350] sm:$0xf]
    %v1588 = vld [vmem:[%s10 + $0x354] sm:$0xf]
    %v1589 = vld [vmem:[%s10 + $0x358] sm:$0xf]
    %v1590 = vld [vmem:[%s10 + $0x35c] sm:$0xf]
    %v1591 = vld [vmem:[%s10 + $0x360] sm:$0xf]
    %v1592 = vld [vmem:[%s10 + $0x364] sm:$0xf]
    %v1593 = vld [vmem:[%s10 + $0x368] sm:$0xf]
    %v1594 = vld [vmem:[%s10 + $0x36c] sm:$0xf]
    %v1595 = vld [vmem:[%s10 + $0x370] sm:$0xf]
    %v1596 = vld [vmem:[%s10 + $0x374] sm:$0xf]
    %v1597 = vld [vmem:[%s10 + $0x378] sm:$0xf]
    %v1598 = vld [vmem:[%s10 + $0x37c] sm:$0xf]
    %v1599 = vld [vmem:[%s10 + $0x380] sm:$0xf]
    %v1600 = vld [vmem:[%s10 + $0x384] sm:$0xf]
    %v1601 = vld [vmem:[%s10 + $0x388] sm:$0xf]
    %v1602 = vld [vmem:[%s10 + $0x38c] sm:$0xf]
    %v1603 = vld [vmem:[%s10 + $0x390] sm:$0xf]
    %v1604 = vld [vmem:[%s10 + $0x394] sm:$0xf]
    %v1605 = vld [vmem:[%s10 + $0x398] sm:$0xf]
    %v1606 = vld [vmem:[%s10 + $0x39c] sm:$0xf]
    %v1607 = vld [vmem:[%s10 + $0x3a0] sm:$0xf]
    %v1608 = vld [vmem:[%s10 + $0x3a4] sm:$0xf]
    %v1609 = vld [vmem:[%s10 + $0x3a8] sm:$0xf]
    %v1610 = vld [vmem:[%s10 + $0x3ac] sm:$0xf]
    %v1611 = vld [vmem:[%s10 + $0x3b0] sm:$0xf]
    %v1612 = vld [vmem:[%s10 + $0x3b4] sm:$0xf]
    %v1613 = vld [vmem:[%s10 + $0x3b8] sm:$0xf]
    %v1614 = vld [vmem:[%s10 + $0x3bc] sm:$0xf]
    %v1615 = vld [vmem:[%s10 + $0x3c0] sm:$0xf]
    %v1616 = vld [vmem:[%s10 + $0x3c4] sm:$0xf]
    %v1617 = vld [vmem:[%s10 + $0x3c8] sm:$0xf]
    %v1618 = vld [vmem:[%s10 + $0x3cc] sm:$0xf]
    %v1619 = vld [vmem:[%s10 + $0x3d0] sm:$0xf]
    %v1620 = vld [vmem:[%s10 + $0x3d4] sm:$0xf]
    %v1621 = vld [vmem:[%s10 + $0x3d8] sm:$0xf]
    %v1622 = vld [vmem:[%s10 + $0x3dc] sm:$0xf]
    %v1623 = vld [vmem:[%s10 + $0x3e0] sm:$0xf]
    %v1624 = vld [vmem:[%s10 + $0x3e4] sm:$0xf]
    %v1625 = vld [vmem:[%s10 + $0x3e8] sm:$0xf]
    %v1626 = vld [vmem:[%s10 + $0x3ec] sm:$0xf]
    %v1627 = vld [vmem:[%s10 + $0x3f0] sm:$0xf]
    %v1628 = vld [vmem:[%s10 + $0x3f4] sm:$0xf]
    %v1629 = vld [vmem:[%s10 + $0x3f8] sm:$0xf]
    %v1630 = vld [vmem:[%s10 + $0x3fc] sm:$0xf]
    %v1631 = vld [vmem:[%s11] sm:$0x1]
    %v1633 = vlaneseq
    %v1634 = vshrl.u32 %v1633, 7
    %v1635 = vsub.s32 0, %v1634
    %v1636 = vrot.slane %v1631, %v1635
    %v1894 = vunpack.c.l.b16 %v1375
    %v1895 = vunpack.c.l.b16 %v1376
    %v1896 = vunpack.c.l.b16 %v1377
    %v1897 = vunpack.c.l.b16 %v1378
    %v1898 = vunpack.c.l.b16 %v1379
    %v1899 = vunpack.c.l.b16 %v1380
    %v1900 = vunpack.c.l.b16 %v1381
    %v1901 = vunpack.c.l.b16 %v1382
    %v1902 = vunpack.c.l.b16 %v1383
    %v1903 = vunpack.c.l.b16 %v1384
    %v1904 = vunpack.c.l.b16 %v1385
    %v1905 = vunpack.c.l.b16 %v1386
    %v1906 = vunpack.c.l.b16 %v1387
    %v1907 = vunpack.c.l.b16 %v1388
    %v1908 = vunpack.c.l.b16 %v1389
    %v1909 = vunpack.c.l.b16 %v1390
    %v1910 = vunpack.c.l.b16 %v1391
    %v1911 = vunpack.c.l.b16 %v1392
    %v1912 = vunpack.c.l.b16 %v1393
    %v1913 = vunpack.c.l.b16 %v1394
    %v1914 = vunpack.c.l.b16 %v1395
    %v1915 = vunpack.c.l.b16 %v1396
    %v1916 = vunpack.c.l.b16 %v1397
    %v1917 = vunpack.c.l.b16 %v1398
    %v1918 = vunpack.c.l.b16 %v1399
    %v1919 = vunpack.c.l.b16 %v1400
    %v1920 = vunpack.c.l.b16 %v1401
    %v1921 = vunpack.c.l.b16 %v1402
    %v1922 = vunpack.c.l.b16 %v1403
    %v1923 = vunpack.c.l.b16 %v1404
    %v1924 = vunpack.c.l.b16 %v1405
    %v1925 = vunpack.c.l.b16 %v1406
    %v1926 = vunpack.c.l.b16 %v1407
    %v1927 = vunpack.c.l.b16 %v1408
    %v1928 = vunpack.c.l.b16 %v1409
    %v1929 = vunpack.c.l.b16 %v1410
    %v1930 = vunpack.c.l.b16 %v1411
    %v1931 = vunpack.c.l.b16 %v1412
    %v1932 = vunpack.c.l.b16 %v1413
    %v1933 = vunpack.c.l.b16 %v1414
    %v1934 = vunpack.c.l.b16 %v1415
    %v1935 = vunpack.c.l.b16 %v1416
    %v1936 = vunpack.c.l.b16 %v1417
    %v1937 = vunpack.c.l.b16 %v1418
    %v1938 = vunpack.c.l.b16 %v1419
    %v1939 = vunpack.c.l.b16 %v1420
    %v1940 = vunpack.c.l.b16 %v1421
    %v1941 = vunpack.c.l.b16 %v1422
    %v1942 = vunpack.c.l.b16 %v1423
    %v1943 = vunpack.c.l.b16 %v1424
    %v1944 = vunpack.c.l.b16 %v1425
    %v1945 = vunpack.c.l.b16 %v1426
    %v1946 = vunpack.c.l.b16 %v1427
    %v1947 = vunpack.c.l.b16 %v1428
    %v1948 = vunpack.c.l.b16 %v1429
    %v1949 = vunpack.c.l.b16 %v1430
    %v1950 = vunpack.c.l.b16 %v1431
    %v1951 = vunpack.c.l.b16 %v1432
    %v1952 = vunpack.c.l.b16 %v1433
    %v1953 = vunpack.c.l.b16 %v1434
    %v1954 = vunpack.c.l.b16 %v1435
    %v1955 = vunpack.c.l.b16 %v1436
    %v1956 = vunpack.c.l.b16 %v1437
    %v1957 = vunpack.c.l.b16 %v1438
    %v1958 = vunpack.c.l.b16 %v1439
    %v1959 = vunpack.c.l.b16 %v1440
    %v1960 = vunpack.c.l.b16 %v1441
    %v1961 = vunpack.c.l.b16 %v1442
    %v1962 = vunpack.c.l.b16 %v1443
    %v1963 = vunpack.c.l.b16 %v1444
    %v1964 = vunpack.c.l.b16 %v1445
    %v1965 = vunpack.c.l.b16 %v1446
    %v1966 = vunpack.c.l.b16 %v1447
    %v1967 = vunpack.c.l.b16 %v1448
    %v1968 = vunpack.c.l.b16 %v1449
    %v1969 = vunpack.c.l.b16 %v1450
    %v1970 = vunpack.c.l.b16 %v1451
    %v1971 = vunpack.c.l.b16 %v1452
    %v1972 = vunpack.c.l.b16 %v1453
    %v1973 = vunpack.c.l.b16 %v1454
    %v1974 = vunpack.c.l.b16 %v1455
    %v1975 = vunpack.c.l.b16 %v1456
    %v1976 = vunpack.c.l.b16 %v1457
    %v1977 = vunpack.c.l.b16 %v1458
    %v1978 = vunpack.c.l.b16 %v1459
    %v1979 = vunpack.c.l.b16 %v1460
    %v1980 = vunpack.c.l.b16 %v1461
    %v1981 = vunpack.c.l.b16 %v1462
    %v1982 = vunpack.c.l.b16 %v1463
    %v1983 = vunpack.c.l.b16 %v1464
    %v1984 = vunpack.c.l.b16 %v1465
    %v1985 = vunpack.c.l.b16 %v1466
    %v1986 = vunpack.c.l.b16 %v1467
    %v1987 = vunpack.c.l.b16 %v1468
    %v1988 = vunpack.c.l.b16 %v1469
    %v1989 = vunpack.c.l.b16 %v1470
    %v1990 = vunpack.c.l.b16 %v1471
    %v1991 = vunpack.c.l.b16 %v1472
    %v1992 = vunpack.c.l.b16 %v1473
    %v1993 = vunpack.c.l.b16 %v1474
    %v1994 = vunpack.c.l.b16 %v1475
    %v1995 = vunpack.c.l.b16 %v1476
    %v1996 = vunpack.c.l.b16 %v1477
    %v1997 = vunpack.c.l.b16 %v1478
    %v1998 = vunpack.c.l.b16 %v1479
    %v1999 = vunpack.c.l.b16 %v1480
    %v2000 = vunpack.c.l.b16 %v1481
    %v2001 = vunpack.c.l.b16 %v1482
    %v2002 = vunpack.c.l.b16 %v1483
    %v2003 = vunpack.c.l.b16 %v1484
    %v2004 = vunpack.c.l.b16 %v1485
    %v2005 = vunpack.c.l.b16 %v1486
    %v2006 = vunpack.c.l.b16 %v1487
    %v2007 = vunpack.c.l.b16 %v1488
    %v2008 = vunpack.c.l.b16 %v1489
    %v2009 = vunpack.c.l.b16 %v1490
    %v2010 = vunpack.c.l.b16 %v1491
    %v2011 = vunpack.c.l.b16 %v1492
    %v2012 = vunpack.c.l.b16 %v1493
    %v2013 = vunpack.c.l.b16 %v1494
    %v2014 = vunpack.c.l.b16 %v1495
    %v2015 = vunpack.c.l.b16 %v1496
    %v2016 = vunpack.c.l.b16 %v1497
    %v2017 = vunpack.c.l.b16 %v1498
    %v2018 = vunpack.c.l.b16 %v1499
    %v2019 = vunpack.c.l.b16 %v1500
    %v2020 = vunpack.c.l.b16 %v1501
    %v2021 = vunpack.c.l.b16 %v1502
    %v2022 = vunpack.c.l.b16 %v1503
    %v2023 = vunpack.c.l.b16 %v1504
    %v2024 = vunpack.c.l.b16 %v1505
    %v2025 = vunpack.c.l.b16 %v1506
    %v2026 = vunpack.c.l.b16 %v1507
    %v2027 = vunpack.c.l.b16 %v1508
    %v2028 = vunpack.c.l.b16 %v1509
    %v2029 = vunpack.c.l.b16 %v1510
    %v2030 = vunpack.c.l.b16 %v1511
    %v2031 = vunpack.c.l.b16 %v1512
    %v2032 = vunpack.c.l.b16 %v1513
    %v2033 = vunpack.c.l.b16 %v1514
    %v2034 = vunpack.c.l.b16 %v1515
    %v2035 = vunpack.c.l.b16 %v1516
    %v2036 = vunpack.c.l.b16 %v1517
    %v2037 = vunpack.c.l.b16 %v1518
    %v2038 = vunpack.c.l.b16 %v1519
    %v2039 = vunpack.c.l.b16 %v1520
    %v2040 = vunpack.c.l.b16 %v1521
    %v2041 = vunpack.c.l.b16 %v1522
    %v2042 = vunpack.c.l.b16 %v1523
    %v2043 = vunpack.c.l.b16 %v1524
    %v2044 = vunpack.c.l.b16 %v1525
    %v2045 = vunpack.c.l.b16 %v1526
    %v2046 = vunpack.c.l.b16 %v1527
    %v2047 = vunpack.c.l.b16 %v1528
    %v2048 = vunpack.c.l.b16 %v1529
    %v2049 = vunpack.c.l.b16 %v1530
    %v2050 = vunpack.c.l.b16 %v1531
    %v2051 = vunpack.c.l.b16 %v1532
    %v2052 = vunpack.c.l.b16 %v1533
    %v2053 = vunpack.c.l.b16 %v1534
    %v2054 = vunpack.c.l.b16 %v1535
    %v2055 = vunpack.c.l.b16 %v1536
    %v2056 = vunpack.c.l.b16 %v1537
    %v2057 = vunpack.c.l.b16 %v1538
    %v2058 = vunpack.c.l.b16 %v1539
    %v2059 = vunpack.c.l.b16 %v1540
    %v2060 = vunpack.c.l.b16 %v1541
    %v2061 = vunpack.c.l.b16 %v1542
    %v2062 = vunpack.c.l.b16 %v1543
    %v2063 = vunpack.c.l.b16 %v1544
    %v2064 = vunpack.c.l.b16 %v1545
    %v2065 = vunpack.c.l.b16 %v1546
    %v2066 = vunpack.c.l.b16 %v1547
    %v2067 = vunpack.c.l.b16 %v1548
    %v2068 = vunpack.c.l.b16 %v1549
    %v2069 = vunpack.c.l.b16 %v1550
    %v2070 = vunpack.c.l.b16 %v1551
    %v2071 = vunpack.c.l.b16 %v1552
    %v2072 = vunpack.c.l.b16 %v1553
    %v2073 = vunpack.c.l.b16 %v1554
    %v2074 = vunpack.c.l.b16 %v1555
    %v2075 = vunpack.c.l.b16 %v1556
    %v2076 = vunpack.c.l.b16 %v1557
    %v2077 = vunpack.c.l.b16 %v1558
    %v2078 = vunpack.c.l.b16 %v1559
    %v2079 = vunpack.c.l.b16 %v1560
    %v2080 = vunpack.c.l.b16 %v1561
    %v2081 = vunpack.c.l.b16 %v1562
    %v2082 = vunpack.c.l.b16 %v1563
    %v2083 = vunpack.c.l.b16 %v1564
    %v2084 = vunpack.c.l.b16 %v1565
    %v2085 = vunpack.c.l.b16 %v1566
    %v2086 = vunpack.c.l.b16 %v1567
    %v2087 = vunpack.c.l.b16 %v1568
    %v2088 = vunpack.c.l.b16 %v1569
    %v2089 = vunpack.c.l.b16 %v1570
    %v2090 = vunpack.c.l.b16 %v1571
    %v2091 = vunpack.c.l.b16 %v1572
    %v2092 = vunpack.c.l.b16 %v1573
    %v2093 = vunpack.c.l.b16 %v1574
    %v2094 = vunpack.c.l.b16 %v1575
    %v2095 = vunpack.c.l.b16 %v1576
    %v2096 = vunpack.c.l.b16 %v1577
    %v2097 = vunpack.c.l.b16 %v1578
    %v2098 = vunpack.c.l.b16 %v1579
    %v2099 = vunpack.c.l.b16 %v1580
    %v2100 = vunpack.c.l.b16 %v1581
    %v2101 = vunpack.c.l.b16 %v1582
    %v2102 = vunpack.c.l.b16 %v1583
    %v2103 = vunpack.c.l.b16 %v1584
    %v2104 = vunpack.c.l.b16 %v1585
    %v2105 = vunpack.c.l.b16 %v1586
    %v2106 = vunpack.c.l.b16 %v1587
    %v2107 = vunpack.c.l.b16 %v1588
    %v2108 = vunpack.c.l.b16 %v1589
    %v2109 = vunpack.c.l.b16 %v1590
    %v2110 = vunpack.c.l.b16 %v1591
    %v2111 = vunpack.c.l.b16 %v1592
    %v2112 = vunpack.c.l.b16 %v1593
    %v2113 = vunpack.c.l.b16 %v1594
    %v2114 = vunpack.c.l.b16 %v1595
    %v2115 = vunpack.c.l.b16 %v1596
    %v2116 = vunpack.c.l.b16 %v1597
    %v2117 = vunpack.c.l.b16 %v1598
    %v2118 = vunpack.c.l.b16 %v1599
    %v2119 = vunpack.c.l.b16 %v1600
    %v2120 = vunpack.c.l.b16 %v1601
    %v2121 = vunpack.c.l.b16 %v1602
    %v2122 = vunpack.c.l.b16 %v1603
    %v2123 = vunpack.c.l.b16 %v1604
    %v2124 = vunpack.c.l.b16 %v1605
    %v2125 = vunpack.c.l.b16 %v1606
    %v2126 = vunpack.c.l.b16 %v1607
    %v2127 = vunpack.c.l.b16 %v1608
    %v2128 = vunpack.c.l.b16 %v1609
    %v2129 = vunpack.c.l.b16 %v1610
    %v2130 = vunpack.c.l.b16 %v1611
    %v2131 = vunpack.c.l.b16 %v1612
    %v2132 = vunpack.c.l.b16 %v1613
    %v2133 = vunpack.c.l.b16 %v1614
    %v2134 = vunpack.c.l.b16 %v1615
    %v2135 = vunpack.c.l.b16 %v1616
    %v2136 = vunpack.c.l.b16 %v1617
    %v2137 = vunpack.c.l.b16 %v1618
    %v2138 = vunpack.c.l.b16 %v1619
    %v2139 = vunpack.c.l.b16 %v1620
    %v2140 = vunpack.c.l.b16 %v1621
    %v2141 = vunpack.c.l.b16 %v1622
    %v2142 = vunpack.c.l.b16 %v1623
    %v2143 = vunpack.c.l.b16 %v1624
    %v2144 = vunpack.c.l.b16 %v1625
    %v2145 = vunpack.c.l.b16 %v1626
    %v2146 = vunpack.c.l.b16 %v1627
    %v2147 = vunpack.c.l.b16 %v1628
    %v2148 = vunpack.c.l.b16 %v1629
    %v2149 = vunpack.c.l.b16 %v1630
    %v2150 = vpack.c.b16 %v1895, %v1894
    %v2151 = vpack.c.b16 %v1897, %v1896
    %v2152 = vpack.c.b16 %v1899, %v1898
    %v2153 = vpack.c.b16 %v1901, %v1900
    %v2154 = vpack.c.b16 %v1903, %v1902
    %v2155 = vpack.c.b16 %v1905, %v1904
    %v2156 = vpack.c.b16 %v1907, %v1906
    %v2157 = vpack.c.b16 %v1909, %v1908
    %v2158 = vpack.c.b16 %v1911, %v1910
    %v2159 = vpack.c.b16 %v1913, %v1912
    %v2160 = vpack.c.b16 %v1915, %v1914
    %v2161 = vpack.c.b16 %v1917, %v1916
    %v2162 = vpack.c.b16 %v1919, %v1918
    %v2163 = vpack.c.b16 %v1921, %v1920
    %v2164 = vpack.c.b16 %v1923, %v1922
    %v2165 = vpack.c.b16 %v1925, %v1924
    %v2166 = vpack.c.b16 %v1927, %v1926
    %v2167 = vpack.c.b16 %v1929, %v1928
    %v2168 = vpack.c.b16 %v1931, %v1930
    %v2169 = vpack.c.b16 %v1933, %v1932
    %v2170 = vpack.c.b16 %v1935, %v1934
    %v2171 = vpack.c.b16 %v1937, %v1936
    %v2172 = vpack.c.b16 %v1939, %v1938
    %v2173 = vpack.c.b16 %v1941, %v1940
    %v2174 = vpack.c.b16 %v1943, %v1942
    %v2175 = vpack.c.b16 %v1945, %v1944
    %v2176 = vpack.c.b16 %v1947, %v1946
    %v2177 = vpack.c.b16 %v1949, %v1948
    %v2178 = vpack.c.b16 %v1951, %v1950
    %v2179 = vpack.c.b16 %v1953, %v1952
    %v2180 = vpack.c.b16 %v1955, %v1954
    %v2181 = vpack.c.b16 %v1957, %v1956
    %v2182 = vpack.c.b16 %v1959, %v1958
    %v2183 = vpack.c.b16 %v1961, %v1960
    %v2184 = vpack.c.b16 %v1963, %v1962
    %v2185 = vpack.c.b16 %v1965, %v1964
    %v2186 = vpack.c.b16 %v1967, %v1966
    %v2187 = vpack.c.b16 %v1969, %v1968
    %v2188 = vpack.c.b16 %v1971, %v1970
    %v2189 = vpack.c.b16 %v1973, %v1972
    %v2190 = vpack.c.b16 %v1975, %v1974
    %v2191 = vpack.c.b16 %v1977, %v1976
    %v2192 = vpack.c.b16 %v1979, %v1978
    %v2193 = vpack.c.b16 %v1981, %v1980
    %v2194 = vpack.c.b16 %v1983, %v1982
    %v2195 = vpack.c.b16 %v1985, %v1984
    %v2196 = vpack.c.b16 %v1987, %v1986
    %v2197 = vpack.c.b16 %v1989, %v1988
    %v2198 = vpack.c.b16 %v1991, %v1990
    %v2199 = vpack.c.b16 %v1993, %v1992
    %v2200 = vpack.c.b16 %v1995, %v1994
    %v2201 = vpack.c.b16 %v1997, %v1996
    %v2202 = vpack.c.b16 %v1999, %v1998
    %v2203 = vpack.c.b16 %v2001, %v2000
    %v2204 = vpack.c.b16 %v2003, %v2002
    %v2205 = vpack.c.b16 %v2005, %v2004
    %v2206 = vpack.c.b16 %v2007, %v2006
    %v2207 = vpack.c.b16 %v2009, %v2008
    %v2208 = vpack.c.b16 %v2011, %v2010
    %v2209 = vpack.c.b16 %v2013, %v2012
    %v2210 = vpack.c.b16 %v2015, %v2014
    %v2211 = vpack.c.b16 %v2017, %v2016
    %v2212 = vpack.c.b16 %v2019, %v2018
    %v2213 = vpack.c.b16 %v2021, %v2020
    %v2214 = vpack.c.b16 %v2023, %v2022
    %v2215 = vpack.c.b16 %v2025, %v2024
    %v2216 = vpack.c.b16 %v2027, %v2026
    %v2217 = vpack.c.b16 %v2029, %v2028
    %v2218 = vpack.c.b16 %v2031, %v2030
    %v2219 = vpack.c.b16 %v2033, %v2032
    %v2220 = vpack.c.b16 %v2035, %v2034
    %v2221 = vpack.c.b16 %v2037, %v2036
    %v2222 = vpack.c.b16 %v2039, %v2038
    %v2223 = vpack.c.b16 %v2041, %v2040
    %v2224 = vpack.c.b16 %v2043, %v2042
    %v2225 = vpack.c.b16 %v2045, %v2044
    %v2226 = vpack.c.b16 %v2047, %v2046
    %v2227 = vpack.c.b16 %v2049, %v2048
    %v2228 = vpack.c.b16 %v2051, %v2050
    %v2229 = vpack.c.b16 %v2053, %v2052
    %v2230 = vpack.c.b16 %v2055, %v2054
    %v2231 = vpack.c.b16 %v2057, %v2056
    %v2232 = vpack.c.b16 %v2059, %v2058
    %v2233 = vpack.c.b16 %v2061, %v2060
    %v2234 = vpack.c.b16 %v2063, %v2062
    %v2235 = vpack.c.b16 %v2065, %v2064
    %v2236 = vpack.c.b16 %v2067, %v2066
    %v2237 = vpack.c.b16 %v2069, %v2068
    %v2238 = vpack.c.b16 %v2071, %v2070
    %v2239 = vpack.c.b16 %v2073, %v2072
    %v2240 = vpack.c.b16 %v2075, %v2074
    %v2241 = vpack.c.b16 %v2077, %v2076
    %v2242 = vpack.c.b16 %v2079, %v2078
    %v2243 = vpack.c.b16 %v2081, %v2080
    %v2244 = vpack.c.b16 %v2083, %v2082
    %v2245 = vpack.c.b16 %v2085, %v2084
    %v2246 = vpack.c.b16 %v2087, %v2086
    %v2247 = vpack.c.b16 %v2089, %v2088
    %v2248 = vpack.c.b16 %v2091, %v2090
    %v2249 = vpack.c.b16 %v2093, %v2092
    %v2250 = vpack.c.b16 %v2095, %v2094
    %v2251 = vpack.c.b16 %v2097, %v2096
    %v2252 = vpack.c.b16 %v2099, %v2098
    %v2253 = vpack.c.b16 %v2101, %v2100
    %v2254 = vpack.c.b16 %v2103, %v2102
    %v2255 = vpack.c.b16 %v2105, %v2104
    %v2256 = vpack.c.b16 %v2107, %v2106
    %v2257 = vpack.c.b16 %v2109, %v2108
    %v2258 = vpack.c.b16 %v2111, %v2110
    %v2259 = vpack.c.b16 %v2113, %v2112
    %v2260 = vpack.c.b16 %v2115, %v2114
    %v2261 = vpack.c.b16 %v2117, %v2116
    %v2262 = vpack.c.b16 %v2119, %v2118
    %v2263 = vpack.c.b16 %v2121, %v2120
    %v2264 = vpack.c.b16 %v2123, %v2122
    %v2265 = vpack.c.b16 %v2125, %v2124
    %v2266 = vpack.c.b16 %v2127, %v2126
    %v2267 = vpack.c.b16 %v2129, %v2128
    %v2268 = vpack.c.b16 %v2131, %v2130
    %v2269 = vpack.c.b16 %v2133, %v2132
    %v2270 = vpack.c.b16 %v2135, %v2134
    %v2271 = vpack.c.b16 %v2137, %v2136
    %v2272 = vpack.c.b16 %v2139, %v2138
    %v2273 = vpack.c.b16 %v2141, %v2140
    %v2274 = vpack.c.b16 %v2143, %v2142
    %v2275 = vpack.c.b16 %v2145, %v2144
    %v2276 = vpack.c.b16 %v2147, %v2146
    %v2277 = vpack.c.b16 %v2149, %v2148
    %2406 = vmatprep.subr.bf16.mxu0 0
    %2407 = vmatpush1.bf16.msra.mxu0 %v2157
    %2408 = vmatprep.subr.bf16.mxu0 0
    %2409 = vmatpush1.bf16.msra.mxu0 %v2156
    %2410 = vmatprep.subr.bf16.mxu0 0
    %2411 = vmatpush1.bf16.msra.mxu0 %v2155
    %2412 = vmatprep.subr.bf16.mxu0 0
    %2413 = vmatpush1.bf16.msra.mxu0 %v2154
    %2414 = vmatprep.subr.bf16.mxu0 0
    %2415 = vmatpush1.bf16.msra.mxu0 %v2153
    %2416 = vmatprep.subr.bf16.mxu0 0
    %2417 = vmatpush1.bf16.msra.mxu0 %v2152
    %2418 = vmatprep.subr.bf16.mxu0 0
    %2419 = vmatpush1.bf16.msra.mxu0 %v2151
    %2420 = vmatprep.subr.bf16.mxu0 0
    %2421 = vmatpush1.bf16.msra.mxu0 %v2150
    %2422 = vmatprep.subr.bf16.mxu0 0
    %2423 = vmatpush2.bf16.msra.mxu0 %v2165
    %2424 = vmatprep.subr.bf16.mxu0 0
    %2425 = vmatpush2.bf16.msra.mxu0 %v2164
    %2426 = vmatprep.subr.bf16.mxu0 0
    %2427 = vmatpush2.bf16.msra.mxu0 %v2163
    %2428 = vmatprep.subr.bf16.mxu0 0
    %2429 = vmatpush2.bf16.msra.mxu0 %v2162
    %2430 = vmatprep.subr.bf16.mxu0 0
    %2431 = vmatpush2.bf16.msra.mxu0 %v2161
    %2432 = vmatprep.subr.bf16.mxu0 0
    %2433 = vmatpush2.bf16.msra.mxu0 %v2160
    %2434 = vmatprep.subr.bf16.mxu0 0
    %2435 = vmatpush2.bf16.msra.mxu0 %v2159
    %2436 = vmatprep.subr.bf16.mxu0 0
    %2437 = vmatpush2.bf16.msra.mxu0 %v2158
    %2438 = vmatprep.mubr.bf16.mxu0 %v1360
    %2439 = vmatmul.mubr.bf16.gmra.mxu0 %v1359
    %v2440 = vpop.f32.mrf.mxu0
    %v2441 = vadd.f32 %v1636, %v2440
    %v2442 = vpop.f32.mrf.mxu0
    %v2443 = vpop.f32.mrf.mxu0
    %v2444 = vadd.f32 %v1636, %v2443
    %v2445 = vpop.f32.mrf.mxu0
    %2446 = vdwg.mxu0
    %2447 = vmatprep.subr.bf16.mxu0 0
    %2448 = vmatpush1.bf16.msra.mxu0 %v2173
    %2449 = vmatprep.subr.bf16.mxu0 0
    %2450 = vmatpush1.bf16.msra.mxu0 %v2172
    %2451 = vmatprep.subr.bf16.mxu0 0
    %2452 = vmatpush1.bf16.msra.mxu0 %v2171
    %2453 = vmatprep.subr.bf16.mxu0 0
    %2454 = vmatpush1.bf16.msra.mxu0 %v2170
    %2455 = vmatprep.subr.bf16.mxu0 0
    %2456 = vmatpush1.bf16.msra.mxu0 %v2169
    %2457 = vmatprep.subr.bf16.mxu0 0
    %2458 = vmatpush1.bf16.msra.mxu0 %v2168
    %2459 = vmatprep.subr.bf16.mxu0 0
    %2460 = vmatpush1.bf16.msra.mxu0 %v2167
    %2461 = vmatprep.subr.bf16.mxu0 0
    %2462 = vmatpush1.bf16.msra.mxu0 %v2166
    %2463 = vmatprep.subr.bf16.mxu0 0
    %2464 = vmatpush2.bf16.msra.mxu0 %v2181
    %2465 = vmatprep.subr.bf16.mxu0 0
    %2466 = vmatpush2.bf16.msra.mxu0 %v2180
    %2467 = vmatprep.subr.bf16.mxu0 0
    %2468 = vmatpush2.bf16.msra.mxu0 %v2179
    %2469 = vmatprep.subr.bf16.mxu0 0
    %2470 = vmatpush2.bf16.msra.mxu0 %v2178
    %2471 = vmatprep.subr.bf16.mxu0 0
    %2472 = vmatpush2.bf16.msra.mxu0 %v2177
    %2473 = vmatprep.subr.bf16.mxu0 0
    %2474 = vmatpush2.bf16.msra.mxu0 %v2176
    %2475 = vmatprep.subr.bf16.mxu0 0
    %2476 = vmatpush2.bf16.msra.mxu0 %v2175
    %2477 = vmatprep.subr.bf16.mxu0 0
    %2478 = vmatpush2.bf16.msra.mxu0 %v2174
    %2479 = vmatprep.mubr.bf16.mxu0 %v1362
    %2480 = vmatmul.mubr.bf16.gmra.mxu0 %v1361
    %v2481 = vpop.f32.mrf.mxu0
    %v2482 = vadd.f32 %v2441, %v2481
    %v2483 = vpop.f32.mrf.mxu0
    %v2484 = vpop.f32.mrf.mxu0
    %v2485 = vadd.f32 %v2444, %v2484
    %v2486 = vpop.f32.mrf.mxu0
    %2487 = vdwg.mxu0
    %2488 = vmatprep.subr.bf16.mxu0 0
    %2489 = vmatpush1.bf16.msra.mxu0 %v2189
    %2490 = vmatprep.subr.bf16.mxu0 0
    %2491 = vmatpush1.bf16.msra.mxu0 %v2188
    %2492 = vmatprep.subr.bf16.mxu0 0
    %2493 = vmatpush1.bf16.msra.mxu0 %v2187
    %2494 = vmatprep.subr.bf16.mxu0 0
    %2495 = vmatpush1.bf16.msra.mxu0 %v2186
    %2496 = vmatprep.subr.bf16.mxu0 0
    %2497 = vmatpush1.bf16.msra.mxu0 %v2185
    %2498 = vmatprep.subr.bf16.mxu0 0
    %2499 = vmatpush1.bf16.msra.mxu0 %v2184
    %2500 = vmatprep.subr.bf16.mxu0 0
    %2501 = vmatpush1.bf16.msra.mxu0 %v2183
    %2502 = vmatprep.subr.bf16.mxu0 0
    %2503 = vmatpush1.bf16.msra.mxu0 %v2182
    %2504 = vmatprep.subr.bf16.mxu0 0
    %2505 = vmatpush2.bf16.msra.mxu0 %v2197
    %2506 = vmatprep.subr.bf16.mxu0 0
    %2507 = vmatpush2.bf16.msra.mxu0 %v2196
    %2508 = vmatprep.subr.bf16.mxu0 0
    %2509 = vmatpush2.bf16.msra.mxu0 %v2195
    %2510 = vmatprep.subr.bf16.mxu0 0
    %2511 = vmatpush2.bf16.msra.mxu0 %v2194
    %2512 = vmatprep.subr.bf16.mxu0 0
    %2513 = vmatpush2.bf16.msra.mxu0 %v2193
    %2514 = vmatprep.subr.bf16.mxu0 0
    %2515 = vmatpush2.bf16.msra.mxu0 %v2192
    %2516 = vmatprep.subr.bf16.mxu0 0
    %2517 = vmatpush2.bf16.msra.mxu0 %v2191
    %2518 = vmatprep.subr.bf16.mxu0 0
    %2519 = vmatpush2.bf16.msra.mxu0 %v2190
    %2520 = vmatprep.mubr.bf16.mxu0 %v1364
    %2521 = vmatmul.mubr.bf16.gmra.mxu0 %v1363
    %v2522 = vpop.f32.mrf.mxu0
    %v2523 = vadd.f32 %v2482, %v2522
    %v2524 = vpop.f32.mrf.mxu0
    %v2525 = vpop.f32.mrf.mxu0
    %v2526 = vadd.f32 %v2485, %v2525
    %v2527 = vpop.f32.mrf.mxu0
    %2528 = vdwg.mxu0
    %2529 = vmatprep.subr.bf16.mxu0 0
    %2530 = vmatpush1.bf16.msra.mxu0 %v2205
    %2531 = vmatprep.subr.bf16.mxu0 0
    %2532 = vmatpush1.bf16.msra.mxu0 %v2204
    %2533 = vmatprep.subr.bf16.mxu0 0
    %2534 = vmatpush1.bf16.msra.mxu0 %v2203
    %2535 = vmatprep.subr.bf16.mxu0 0
    %2536 = vmatpush1.bf16.msra.mxu0 %v2202
    %2537 = vmatprep.subr.bf16.mxu0 0
    %2538 = vmatpush1.bf16.msra.mxu0 %v2201
    %2539 = vmatprep.subr.bf16.mxu0 0
    %2540 = vmatpush1.bf16.msra.mxu0 %v2200
    %2541 = vmatprep.subr.bf16.mxu0 0
    %2542 = vmatpush1.bf16.msra.mxu0 %v2199
    %2543 = vmatprep.subr.bf16.mxu0 0
    %2544 = vmatpush1.bf16.msra.mxu0 %v2198
    %2545 = vmatprep.subr.bf16.mxu0 0
    %2546 = vmatpush2.bf16.msra.mxu0 %v2213
    %2547 = vmatprep.subr.bf16.mxu0 0
    %2548 = vmatpush2.bf16.msra.mxu0 %v2212
    %2549 = vmatprep.subr.bf16.mxu0 0
    %2550 = vmatpush2.bf16.msra.mxu0 %v2211
    %2551 = vmatprep.subr.bf16.mxu0 0
    %2552 = vmatpush2.bf16.msra.mxu0 %v2210
    %2553 = vmatprep.subr.bf16.mxu0 0
    %2554 = vmatpush2.bf16.msra.mxu0 %v2209
    %2555 = vmatprep.subr.bf16.mxu0 0
    %2556 = vmatpush2.bf16.msra.mxu0 %v2208
    %2557 = vmatprep.subr.bf16.mxu0 0
    %2558 = vmatpush2.bf16.msra.mxu0 %v2207
    %2559 = vmatprep.subr.bf16.mxu0 0
    %2560 = vmatpush2.bf16.msra.mxu0 %v2206
    %2561 = vmatprep.mubr.bf16.mxu0 %v1366
    %2562 = vmatmul.mubr.bf16.gmra.mxu0 %v1365
    %v2563 = vpop.f32.mrf.mxu0
    %v2564 = vadd.f32 %v2523, %v2563
    %v2565 = vpop.f32.mrf.mxu0
    %v2566 = vpop.f32.mrf.mxu0
    %v2567 = vadd.f32 %v2526, %v2566
    %v2568 = vpop.f32.mrf.mxu0
    %2569 = vdwg.mxu0
    %2570 = vmatprep.subr.bf16.mxu0 0
    %2571 = vmatpush1.bf16.msra.mxu0 %v2221
    %2572 = vmatprep.subr.bf16.mxu0 0
    %2573 = vmatpush1.bf16.msra.mxu0 %v2220
    %2574 = vmatprep.subr.bf16.mxu0 0
    %2575 = vmatpush1.bf16.msra.mxu0 %v2219
    %2576 = vmatprep.subr.bf16.mxu0 0
    %2577 = vmatpush1.bf16.msra.mxu0 %v2218
    %2578 = vmatprep.subr.bf16.mxu0 0
    %2579 = vmatpush1.bf16.msra.mxu0 %v2217
    %2580 = vmatprep.subr.bf16.mxu0 0
    %2581 = vmatpush1.bf16.msra.mxu0 %v2216
    %2582 = vmatprep.subr.bf16.mxu0 0
    %2583 = vmatpush1.bf16.msra.mxu0 %v2215
    %2584 = vmatprep.subr.bf16.mxu0 0
    %2585 = vmatpush1.bf16.msra.mxu0 %v2214
    %2586 = vmatprep.subr.bf16.mxu0 0
    %2587 = vmatpush2.bf16.msra.mxu0 %v2229
    %2588 = vmatprep.subr.bf16.mxu0 0
    %2589 = vmatpush2.bf16.msra.mxu0 %v2228
    %2590 = vmatprep.subr.bf16.mxu0 0
    %2591 = vmatpush2.bf16.msra.mxu0 %v2227
    %2592 = vmatprep.subr.bf16.mxu0 0
    %2593 = vmatpush2.bf16.msra.mxu0 %v2226
    %2594 = vmatprep.subr.bf16.mxu0 0
    %2595 = vmatpush2.bf16.msra.mxu0 %v2225
    %2596 = vmatprep.subr.bf16.mxu0 0
    %2597 = vmatpush2.bf16.msra.mxu0 %v2224
    %2598 = vmatprep.subr.bf16.mxu0 0
    %2599 = vmatpush2.bf16.msra.mxu0 %v2223
    %2600 = vmatprep.subr.bf16.mxu0 0
    %2601 = vmatpush2.bf16.msra.mxu0 %v2222
    %2602 = vmatprep.mubr.bf16.mxu0 %v1368
    %2603 = vmatmul.mubr.bf16.gmra.mxu0 %v1367
    %v2604 = vpop.f32.mrf.mxu0
    %v2605 = vadd.f32 %v2564, %v2604
    %v2606 = vpop.f32.mrf.mxu0
    %v2607 = vpop.f32.mrf.mxu0
    %v2608 = vadd.f32 %v2567, %v2607
    %v2609 = vpop.f32.mrf.mxu0
    %2610 = vdwg.mxu0
    %2611 = vmatprep.subr.bf16.mxu0 0
    %2612 = vmatpush1.bf16.msra.mxu0 %v2237
    %2613 = vmatprep.subr.bf16.mxu0 0
    %2614 = vmatpush1.bf16.msra.mxu0 %v2236
    %2615 = vmatprep.subr.bf16.mxu0 0
    %2616 = vmatpush1.bf16.msra.mxu0 %v2235
    %2617 = vmatprep.subr.bf16.mxu0 0
    %2618 = vmatpush1.bf16.msra.mxu0 %v2234
    %2619 = vmatprep.subr.bf16.mxu0 0
    %2620 = vmatpush1.bf16.msra.mxu0 %v2233
    %2621 = vmatprep.subr.bf16.mxu0 0
    %2622 = vmatpush1.bf16.msra.mxu0 %v2232
    %2623 = vmatprep.subr.bf16.mxu0 0
    %2624 = vmatpush1.bf16.msra.mxu0 %v2231
    %2625 = vmatprep.subr.bf16.mxu0 0
    %2626 = vmatpush1.bf16.msra.mxu0 %v2230
    %2627 = vmatprep.subr.bf16.mxu0 0
    %2628 = vmatpush2.bf16.msra.mxu0 %v2245
    %2629 = vmatprep.subr.bf16.mxu0 0
    %2630 = vmatpush2.bf16.msra.mxu0 %v2244
    %2631 = vmatprep.subr.bf16.mxu0 0
    %2632 = vmatpush2.bf16.msra.mxu0 %v2243
    %2633 = vmatprep.subr.bf16.mxu0 0
    %2634 = vmatpush2.bf16.msra.mxu0 %v2242
    %2635 = vmatprep.subr.bf16.mxu0 0
    %2636 = vmatpush2.bf16.msra.mxu0 %v2241
    %2637 = vmatprep.subr.bf16.mxu0 0
    %2638 = vmatpush2.bf16.msra.mxu0 %v2240
    %2639 = vmatprep.subr.bf16.mxu0 0
    %2640 = vmatpush2.bf16.msra.mxu0 %v2239
    %2641 = vmatprep.subr.bf16.mxu0 0
    %2642 = vmatpush2.bf16.msra.mxu0 %v2238
    %2643 = vmatprep.mubr.bf16.mxu0 %v1370
    %2644 = vmatmul.mubr.bf16.gmra.mxu0 %v1369
    %v2645 = vpop.f32.mrf.mxu0
    %v2646 = vadd.f32 %v2605, %v2645
    %v2647 = vpop.f32.mrf.mxu0
    %v2648 = vpop.f32.mrf.mxu0
    %v2649 = vadd.f32 %v2608, %v2648
    %v2650 = vpop.f32.mrf.mxu0
    %2651 = vdwg.mxu0
    %2652 = vmatprep.subr.bf16.mxu0 0
    %2653 = vmatpush1.bf16.msra.mxu0 %v2253
    %2654 = vmatprep.subr.bf16.mxu0 0
    %2655 = vmatpush1.bf16.msra.mxu0 %v2252
    %2656 = vmatprep.subr.bf16.mxu0 0
    %2657 = vmatpush1.bf16.msra.mxu0 %v2251
    %2658 = vmatprep.subr.bf16.mxu0 0
    %2659 = vmatpush1.bf16.msra.mxu0 %v2250
    %2660 = vmatprep.subr.bf16.mxu0 0
    %2661 = vmatpush1.bf16.msra.mxu0 %v2249
    %2662 = vmatprep.subr.bf16.mxu0 0
    %2663 = vmatpush1.bf16.msra.mxu0 %v2248
    %2664 = vmatprep.subr.bf16.mxu0 0
    %2665 = vmatpush1.bf16.msra.mxu0 %v2247
    %2666 = vmatprep.subr.bf16.mxu0 0
    %2667 = vmatpush1.bf16.msra.mxu0 %v2246
    %2668 = vmatprep.subr.bf16.mxu0 0
    %2669 = vmatpush2.bf16.msra.mxu0 %v2261
    %2670 = vmatprep.subr.bf16.mxu0 0
    %2671 = vmatpush2.bf16.msra.mxu0 %v2260
    %2672 = vmatprep.subr.bf16.mxu0 0
    %2673 = vmatpush2.bf16.msra.mxu0 %v2259
    %2674 = vmatprep.subr.bf16.mxu0 0
    %2675 = vmatpush2.bf16.msra.mxu0 %v2258
    %2676 = vmatprep.subr.bf16.mxu0 0
    %2677 = vmatpush2.bf16.msra.mxu0 %v2257
    %2678 = vmatprep.subr.bf16.mxu0 0
    %2679 = vmatpush2.bf16.msra.mxu0 %v2256
    %2680 = vmatprep.subr.bf16.mxu0 0
    %2681 = vmatpush2.bf16.msra.mxu0 %v2255
    %2682 = vmatprep.subr.bf16.mxu0 0
    %2683 = vmatpush2.bf16.msra.mxu0 %v2254
    %2684 = vmatprep.mubr.bf16.mxu0 %v1372
    %2685 = vmatmul.mubr.bf16.gmra.mxu0 %v1371
    %v2686 = vpop.f32.mrf.mxu0
    %v2687 = vadd.f32 %v2646, %v2686
    %v2688 = vpop.f32.mrf.mxu0
    %v2689 = vpop.f32.mrf.mxu0
    %v2690 = vadd.f32 %v2649, %v2689
    %v2691 = vpop.f32.mrf.mxu0
    %2692 = vdwg.mxu0
    %2693 = vmatprep.subr.bf16.mxu0 0
    %2694 = vmatpush1.bf16.msra.mxu0 %v2269
    %2695 = vmatprep.subr.bf16.mxu0 0
    %2696 = vmatpush1.bf16.msra.mxu0 %v2268
    %2697 = vmatprep.subr.bf16.mxu0 0
    %2698 = vmatpush1.bf16.msra.mxu0 %v2267
    %2699 = vmatprep.subr.bf16.mxu0 0
    %2700 = vmatpush1.bf16.msra.mxu0 %v2266
    %2701 = vmatprep.subr.bf16.mxu0 0
    %2702 = vmatpush1.bf16.msra.mxu0 %v2265
    %2703 = vmatprep.subr.bf16.mxu0 0
    %2704 = vmatpush1.bf16.msra.mxu0 %v2264
    %2705 = vmatprep.subr.bf16.mxu0 0
    %2706 = vmatpush1.bf16.msra.mxu0 %v2263
    %2707 = vmatprep.subr.bf16.mxu0 0
    %2708 = vmatpush1.bf16.msra.mxu0 %v2262
    %2709 = vmatprep.subr.bf16.mxu0 0
    %2710 = vmatpush2.bf16.msra.mxu0 %v2277
    %2711 = vmatprep.subr.bf16.mxu0 0
    %2712 = vmatpush2.bf16.msra.mxu0 %v2276
    %2713 = vmatprep.subr.bf16.mxu0 0
    %2714 = vmatpush2.bf16.msra.mxu0 %v2275
    %2715 = vmatprep.subr.bf16.mxu0 0
    %2716 = vmatpush2.bf16.msra.mxu0 %v2274
    %2717 = vmatprep.subr.bf16.mxu0 0
    %2718 = vmatpush2.bf16.msra.mxu0 %v2273
    %2719 = vmatprep.subr.bf16.mxu0 0
    %2720 = vmatpush2.bf16.msra.mxu0 %v2272
    %2721 = vmatprep.subr.bf16.mxu0 0
    %2722 = vmatpush2.bf16.msra.mxu0 %v2271
    %2723 = vmatprep.subr.bf16.mxu0 0
    %2724 = vmatpush2.bf16.msra.mxu0 %v2270
    %2725 = vmatprep.mubr.bf16.mxu0 %v1374
    %2726 = vmatmul.mubr.bf16.gmra.mxu0 %v1373
    %v2727 = vpop.f32.mrf.mxu0
    %v2728 = vadd.f32 %v2687, %v2727
    %v2729 = vpop.f32.mrf.mxu0
    %v2730 = vpop.f32.mrf.mxu0
    %v2731 = vadd.f32 %v2690, %v2730
    %v2732 = vpop.f32.mrf.mxu0
    %2733 = vdwg.mxu0
    %v2734 = vadd.f32 %v701, %v2728
    %v2735 = vadd.f32 %v702, %v2731
    %v2736 = vld [vmem:[%s12] sm:$0x1]
    %v2737 = vld [vmem:[%s13] sm:$0x1]
    %v2738 = vsel %vm111, %v2734, 0.0
    %2739 = vadd.xlane.f32.xlu0 %v2738
    %v2740 = vpop.xlane.xlu0 %2739
    %v2741 = vsel %vm111, %v2735, 0.0
    %2742 = vadd.xlane.f32.xlu0 %v2741
    %v2743 = vpop.xlane.xlu0 %2742
    %v2744 = vmul.f32 %v2740, %v666
    %v2745 = vmul.f32 %v2743, %v666
    %v2746 = vsub.f32 %v2734, %v2744
    %v2747 = vsub.f32 %v2735, %v2745
    %v2748 = vmul.f32 %v2746, %v2746
    %v2749 = vmul.f32 %v2747, %v2747
    %v2750 = vsel %vm111, %v2748, 0.0
    %2751 = vadd.xlane.f32.xlu0 %v2750
    %v2752 = vpop.xlane.xlu0 %2751
    %v2753 = vsel %vm111, %v2749, 0.0
    %2754 = vadd.xlane.f32.xlu0 %v2753
    %v2755 = vpop.xlane.xlu0 %2754
    %v2756 = vmul.f32 %v2752, %v666
    %v2757 = vmul.f32 %v2755, %v666
    %v2758 = vadd.f32 %v2756, 1e-05
    %v2759 = vadd.f32 %v2757, 1e-05
    %v2760 = vrsqrt.pop %v2758
    %v2761 = vrsqrt.pop %v2759
    %v2762 = vmul.f32 %v2746, %v2760
    %v2763 = vmul.f32 %v2747, %v2761
    %v2765 = vlaneseq
    %v2766 = vshrl.u32 %v2765, 7
    %v2767 = vsub.s32 0, %v2766
    %v2768 = vrot.slane %v2736, %v2767
    %v2770 = vmul.f32 %v2762, %v2768
    %v2771 = vmul.f32 %v2763, %v2768
    %v2773 = vlaneseq
    %v2774 = vshrl.u32 %v2773, 7
    %v2775 = vsub.s32 0, %v2774
    %v2776 = vrot.slane %v2737, %v2775
    %v2778 = vadd.f32 %v2770, %v2776
    %v2779 = vadd.f32 %v2771, %v2776
    %v2780 = vpack.c.bf16 %v2779, %v2778
    %s2781 = scalar_lea.vmem %s3, 32
    %v2782 = vld [vmem:[%s2781] sm:$0xff]
    %v2783 = vld [vmem:[%s2781 + $0x8] sm:$0xff]
    %v2784 = vld [vmem:[%s2781 + $0x10] sm:$0xff]
    %v2785 = vld [vmem:[%s2781 + $0x18] sm:$0xff]
    %s2786 = scalar_lea.vmem %s4, 2
    %v2787 = vld [vmem:[%s2786] sm:$0x3]
    %v2789 = vlaneseq
    %v2790 = vshrl.u32 %v2789, 7
    %v2791 = vsub.s32 0, %v2790
    %v2792 = vrot.slane %v2787, %v2791
    %v2793 = vlaneseq
    %v2794 = vshrl.u32 %v2793, 7
    %v2795 = vsub.s32 1, %v2794
    %v2796 = vrot.slane %v2787, %v2795
    %v2803 = vunpack.c.l.b16 %v2782
    %v2804 = vunpack.c.h.b16 %v2782
    %v2805 = vunpack.c.l.b16 %v2783
    %v2806 = vunpack.c.h.b16 %v2783
    %v2807 = vunpack.c.l.b16 %v2784
    %v2808 = vunpack.c.h.b16 %v2784
    %v2809 = vunpack.c.l.b16 %v2785
    %v2810 = vunpack.c.h.b16 %v2785
    %v2811 = vpack.c.b16 %v2805, %v2803
    %v2812 = vpack.c.b16 %v2806, %v2804
    %v2813 = vpack.c.b16 %v2809, %v2807
    %v2814 = vpack.c.b16 %v2810, %v2808
    %v2820 = vsel %vm111, %v2780, 0
    %2822 = vmatprep.subr.bf16.mxu0 0
    %2823 = vmatpush1.bf16.msra.mxu0 0
    %2824 = vmatprep.subr.bf16.mxu0 0
    %2825 = vmatpush1.bf16.msra.mxu0 0
    %2826 = vmatprep.subr.bf16.mxu0 0
    %2827 = vmatpush1.bf16.msra.mxu0 0
    %2828 = vmatprep.subr.bf16.mxu0 0
    %2829 = vmatpush1.bf16.msra.mxu0 0
    %2830 = vmatprep.subr.bf16.mxu0 0
    %2831 = vmatpush1.bf16.msra.mxu0 0
    %2832 = vmatprep.subr.bf16.mxu0 0
    %2833 = vmatpush1.bf16.msra.mxu0 0
    %2834 = vmatprep.subr.bf16.mxu0 %v2814
    %2835 = vmatpush1.bf16.msra.mxu0 %v2813
    %2836 = vmatprep.subr.bf16.mxu0 %v2812
    %2837 = vmatpush1.bf16.msra.mxu0 %v2811
    %2838 = vmatprep.subr.bf16.mxu0 0
    %2839 = vmatpush2.bf16.msra.mxu0 0
    %2840 = vmatprep.subr.bf16.mxu0 0
    %2841 = vmatpush2.bf16.msra.mxu0 0
    %2842 = vmatprep.subr.bf16.mxu0 0
    %2843 = vmatpush2.bf16.msra.mxu0 0
    %2844 = vmatprep.subr.bf16.mxu0 0
    %2845 = vmatpush2.bf16.msra.mxu0 0
    %2846 = vmatprep.subr.bf16.mxu0 0
    %2847 = vmatpush2.bf16.msra.mxu0 0
    %2848 = vmatprep.subr.bf16.mxu0 0
    %2849 = vmatpush2.bf16.msra.mxu0 0
    %2850 = vmatprep.subr.bf16.mxu0 0
    %2851 = vmatpush2.bf16.msra.mxu0 0
    %2852 = vmatprep.subr.bf16.mxu0 0
    %2853 = vmatpush2.bf16.msra.mxu0 0
    %2854 = vmatprep.mubr.bf16.mxu0 0
    %2855 = vmatmul.mubr.bf16.gmra.mxu0 %v2820
    %v2856 = vpop.f32.mrf.mxu0
    %v2857 = vadd.f32 %v2792, %v2856
    %v2858 = vpop.f32.mrf.mxu0
    %v2859 = vadd.f32 %v2796, %v2858
    %v2860 = vpop.f32.mrf.mxu0
    %v2861 = vadd.f32 %v2792, %v2860
    %v2862 = vpop.f32.mrf.mxu0
    %v2863 = vadd.f32 %v2796, %v2862
    %2864 = vdwg.mxu0
    %v2865 = vpack.c.bf16 %v2861, %v2857
    %2867 = vrot.lane.b32.xlu0 %v2865, 96
    %v2868 = vpop.permute.xlu0 %2867
    %v2870 = vsel %vm162, %v2865, 0
    %v2873 = vsel %vm162, %v2868, 0
    %2875 = vmatprep.subr.bf16.mxu0 0
    %2876 = vmatpush1.bf16.xpose.msra.mxu0 0
    %2877 = vmatprep.subr.bf16.mxu0 0
    %2878 = vmatpush1.bf16.xpose.msra.mxu0 0
    %2879 = vmatprep.subr.bf16.mxu0 0
    %2880 = vmatpush1.bf16.xpose.msra.mxu0 0
    %2881 = vmatprep.subr.bf16.mxu0 0
    %2882 = vmatpush1.bf16.xpose.msra.mxu0 0
    %2883 = vmatprep.subr.bf16.mxu0 0
    %2884 = vmatpush1.bf16.xpose.msra.mxu0 0
    %2885 = vmatprep.subr.bf16.mxu0 0
    %2886 = vmatpush1.bf16.xpose.msra.mxu0 0
    %2887 = vmatprep.subr.bf16.mxu0 0
    %2888 = vmatpush1.bf16.xpose.msra.mxu0 0
    %2889 = vmatprep.subr.bf16.mxu0 0
    %2890 = vmatpush1.bf16.xpose.msra.mxu0 %v2873
    %2891 = vmatprep.subr.bf16.mxu0 0
    %2892 = vmatpush2.bf16.xpose.msra.mxu0 0
    %2893 = vmatprep.subr.bf16.mxu0 0
    %2894 = vmatpush2.bf16.xpose.msra.mxu0 0
    %2895 = vmatprep.subr.bf16.mxu0 0
    %2896 = vmatpush2.bf16.xpose.msra.mxu0 0
    %2897 = vmatprep.subr.bf16.mxu0 0
    %2898 = vmatpush2.bf16.xpose.msra.mxu0 0
    %2899 = vmatprep.subr.bf16.mxu0 0
    %2900 = vmatpush2.bf16.xpose.msra.mxu0 0
    %2901 = vmatprep.subr.bf16.mxu0 0
    %2902 = vmatpush2.bf16.xpose.msra.mxu0 0
    %2903 = vmatprep.subr.bf16.mxu0 0
    %2904 = vmatpush2.bf16.xpose.msra.mxu0 0
    %2905 = vmatprep.subr.bf16.mxu0 0
    %2906 = vmatpush2.bf16.xpose.msra.mxu0 0
    %2907 = vmatprep.mubr.bf16.mxu0 0
    %2908 = vmatmul.mubr.bf16.gmra.mxu0 %v2870
    %v2909 = vpop.f32.mrf.mxu0
    %v2910 = vadd.f32 %v72, %v2909
    %v2911 = vpop.f32.mrf.mxu0
    %v2912 = vpop.f32.mrf.mxu0
    %v2913 = vadd.f32 %v73, %v2912
    %v2914 = vpop.f32.mrf.mxu0
    %2915 = vdwg.mxu0
    %v2916 = vsel %vm210, %v2910, -inf
    %2917 = vmax.xlane.f32.xlu0 %v2916
    %v2918 = vpop.xlane.xlu0 %2917
    %v2919 = vsel %vm210, %v2913, -inf
    %2920 = vmax.xlane.f32.xlu0 %v2919
    %v2921 = vpop.xlane.xlu0 %2920
    %v2922 = vsub.f32 %v2910, %v2918
    %v2923 = vsub.f32 %v2913, %v2921
    %v2924 = vmul.f32 %v2922, 1.442695
    %v2925 = vpow.pop %v2924
    %v2926 = vmul.f32 %v2923, 1.442695
    %v2927 = vpow.pop %v2926
    %v2928 = vsel %vm210, %v2925, 0.0
    %2929 = vadd.xlane.f32.xlu0 %v2928
    %v2930 = vpop.xlane.xlu0 %2929
    %v2931 = vsel %vm210, %v2927, 0.0
    %2932 = vadd.xlane.f32.xlu0 %v2931
    %v2933 = vpop.xlane.xlu0 %2932
    %v2934 = vrcp.pop %v2930
    %v2935 = vrcp.pop %v2933
    %v2936 = vmul.f32 %v2925, %v2934
    %v2937 = vmul.f32 %v2927, %v2935
    %v2938 = vpack.c.bf16 %v2937, %v2936
    %2939 = vrot.lane.b32.xlu0 %v2865, 120
    %v2940 = vpop.permute.xlu0 %2939
    %2941 = vrot.lane.b32.xlu0 %v2865, 88
    %v2942 = vpop.permute.xlu0 %2941
    %v2944 = vsel %vm162, %v2940, 0
    %v2947 = vsel %vm162, %v2942, 0
    %2949 = vmatprep.subr.bf16.mxu0 0
    %2950 = vmatpush1.bf16.xpose.msra.mxu0 0
    %2951 = vmatprep.subr.bf16.mxu0 0
    %2952 = vmatpush1.bf16.xpose.msra.mxu0 0
    %2953 = vmatprep.subr.bf16.mxu0 0
    %2954 = vmatpush1.bf16.xpose.msra.mxu0 0
    %2955 = vmatprep.subr.bf16.mxu0 0
    %2956 = vmatpush1.bf16.xpose.msra.mxu0 0
    %2957 = vmatprep.subr.bf16.mxu0 0
    %2958 = vmatpush1.bf16.xpose.msra.mxu0 0
    %2959 = vmatprep.subr.bf16.mxu0 0
    %2960 = vmatpush1.bf16.xpose.msra.mxu0 0
    %2961 = vmatprep.subr.bf16.mxu0 0
    %2962 = vmatpush1.bf16.xpose.msra.mxu0 0
    %2963 = vmatprep.subr.bf16.mxu0 0
    %2964 = vmatpush1.bf16.xpose.msra.mxu0 %v2947
    %2965 = vmatprep.subr.bf16.mxu0 0
    %2966 = vmatpush2.bf16.xpose.msra.mxu0 0
    %2967 = vmatprep.subr.bf16.mxu0 0
    %2968 = vmatpush2.bf16.xpose.msra.mxu0 0
    %2969 = vmatprep.subr.bf16.mxu0 0
    %2970 = vmatpush2.bf16.xpose.msra.mxu0 0
    %2971 = vmatprep.subr.bf16.mxu0 0
    %2972 = vmatpush2.bf16.xpose.msra.mxu0 0
    %2973 = vmatprep.subr.bf16.mxu0 0
    %2974 = vmatpush2.bf16.xpose.msra.mxu0 0
    %2975 = vmatprep.subr.bf16.mxu0 0
    %2976 = vmatpush2.bf16.xpose.msra.mxu0 0
    %2977 = vmatprep.subr.bf16.mxu0 0
    %2978 = vmatpush2.bf16.xpose.msra.mxu0 0
    %2979 = vmatprep.subr.bf16.mxu0 0
    %2980 = vmatpush2.bf16.xpose.msra.mxu0 0
    %2981 = vmatprep.mubr.bf16.mxu0 0
    %2982 = vmatmul.mubr.bf16.gmra.mxu0 %v2944
    %v2983 = vpop.f32.mrf.mxu0
    %v2984 = vadd.f32 %v72, %v2983
    %v2985 = vpop.f32.mrf.mxu0
    %v2986 = vpop.f32.mrf.mxu0
    %v2987 = vadd.f32 %v73, %v2986
    %v2988 = vpop.f32.mrf.mxu0
    %2989 = vdwg.mxu0
    %v2990 = vsel %vm210, %v2984, -inf
    %2991 = vmax.xlane.f32.xlu0 %v2990
    %v2992 = vpop.xlane.xlu0 %2991
    %v2993 = vsel %vm210, %v2987, -inf
    %2994 = vmax.xlane.f32.xlu0 %v2993
    %v2995 = vpop.xlane.xlu0 %2994
    %v2996 = vsub.f32 %v2984, %v2992
    %v2997 = vsub.f32 %v2987, %v2995
    %v2998 = vmul.f32 %v2996, 1.442695
    %v2999 = vpow.pop %v2998
    %v3000 = vmul.f32 %v2997, 1.442695
    %v3001 = vpow.pop %v3000
    %v3002 = vsel %vm210, %v2999, 0.0
    %3003 = vadd.xlane.f32.xlu0 %v3002
    %v3004 = vpop.xlane.xlu0 %3003
    %v3005 = vsel %vm210, %v3001, 0.0
    %3006 = vadd.xlane.f32.xlu0 %v3005
    %v3007 = vpop.xlane.xlu0 %3006
    %v3008 = vrcp.pop %v3004
    %v3009 = vrcp.pop %v3007
    %v3010 = vmul.f32 %v2999, %v3008
    %v3011 = vmul.f32 %v3001, %v3009
    %v3012 = vpack.c.bf16 %v3011, %v3010
    %3013 = vrot.lane.b32.xlu0 %v2865, 32
    %v3014 = vpop.permute.xlu0 %3013
    %v3017 = vsel %vm210, %v3012, 0
    %3019 = vmatprep.subr.bf16.mxu0 0
    %3020 = vmatpush1.bf16.msra.mxu0 0
    %3021 = vmatprep.subr.bf16.mxu0 0
    %3022 = vmatpush1.bf16.msra.mxu0 0
    %3023 = vmatprep.subr.bf16.mxu0 0
    %3024 = vmatpush1.bf16.msra.mxu0 0
    %3025 = vmatprep.subr.bf16.mxu0 0
    %3026 = vmatpush1.bf16.msra.mxu0 0
    %3027 = vmatprep.subr.bf16.mxu0 0
    %3028 = vmatpush1.bf16.msra.mxu0 0
    %3029 = vmatprep.subr.bf16.mxu0 0
    %3030 = vmatpush1.bf16.msra.mxu0 0
    %3031 = vmatprep.subr.bf16.mxu0 0
    %3032 = vmatpush1.bf16.msra.mxu0 0
    %3033 = vmatprep.subr.bf16.mxu0 0
    %3034 = vmatpush1.bf16.msra.mxu0 %v3014
    %3035 = vmatprep.subr.bf16.mxu0 0
    %3036 = vmatpush2.bf16.msra.mxu0 0
    %3037 = vmatprep.subr.bf16.mxu0 0
    %3038 = vmatpush2.bf16.msra.mxu0 0
    %3039 = vmatprep.subr.bf16.mxu0 0
    %3040 = vmatpush2.bf16.msra.mxu0 0
    %3041 = vmatprep.subr.bf16.mxu0 0
    %3042 = vmatpush2.bf16.msra.mxu0 0
    %3043 = vmatprep.subr.bf16.mxu0 0
    %3044 = vmatpush2.bf16.msra.mxu0 0
    %3045 = vmatprep.subr.bf16.mxu0 0
    %3046 = vmatpush2.bf16.msra.mxu0 0
    %3047 = vmatprep.subr.bf16.mxu0 0
    %3048 = vmatpush2.bf16.msra.mxu0 0
    %3049 = vmatprep.subr.bf16.mxu0 0
    %3050 = vmatpush2.bf16.msra.mxu0 0
    %3051 = vmatprep.mubr.bf16.mxu0 0
    %3052 = vmatmul.mubr.bf16.gmra.mxu0 %v3017
    %v3053 = vpop.f32.mrf.mxu0
    %v3054 = vadd.f32 0.0, %v3053
    %v3055 = vpop.f32.mrf.mxu0
    %v3056 = vpop.f32.mrf.mxu0
    %v3057 = vadd.f32 0.0, %v3056
    %v3058 = vpop.f32.mrf.mxu0
    %3059 = vdwg.mxu0
    %3060 = vrot.lane.b32.xlu0 %v2865, 64
    %v3061 = vpop.permute.xlu0 %3060
    %v3064 = vsel %vm210, %v2938, 0
    %3066 = vmatprep.subr.bf16.mxu0 0
    %3067 = vmatpush1.bf16.msra.mxu0 0
    %3068 = vmatprep.subr.bf16.mxu0 0
    %3069 = vmatpush1.bf16.msra.mxu0 0
    %3070 = vmatprep.subr.bf16.mxu0 0
    %3071 = vmatpush1.bf16.msra.mxu0 0
    %3072 = vmatprep.subr.bf16.mxu0 0
    %3073 = vmatpush1.bf16.msra.mxu0 0
    %3074 = vmatprep.subr.bf16.mxu0 0
    %3075 = vmatpush1.bf16.msra.mxu0 0
    %3076 = vmatprep.subr.bf16.mxu0 0
    %3077 = vmatpush1.bf16.msra.mxu0 0
    %3078 = vmatprep.subr.bf16.mxu0 0
    %3079 = vmatpush1.bf16.msra.mxu0 0
    %3080 = vmatprep.subr.bf16.mxu0 0
    %3081 = vmatpush1.bf16.msra.mxu0 %v3061
    %3082 = vmatprep.subr.bf16.mxu0 0
    %3083 = vmatpush2.bf16.msra.mxu0 0
    %3084 = vmatprep.subr.bf16.mxu0 0
    %3085 = vmatpush2.bf16.msra.mxu0 0
    %3086 = vmatprep.subr.bf16.mxu0 0
    %3087 = vmatpush2.bf16.msra.mxu0 0
    %3088 = vmatprep.subr.bf16.mxu0 0
    %3089 = vmatpush2.bf16.msra.mxu0 0
    %3090 = vmatprep.subr.bf16.mxu0 0
    %3091 = vmatpush2.bf16.msra.mxu0 0
    %3092 = vmatprep.subr.bf16.mxu0 0
    %3093 = vmatpush2.bf16.msra.mxu0 0
    %3094 = vmatprep.subr.bf16.mxu0 0
    %3095 = vmatpush2.bf16.msra.mxu0 0
    %3096 = vmatprep.subr.bf16.mxu0 0
    %3097 = vmatpush2.bf16.msra.mxu0 0
    %3098 = vmatprep.mubr.bf16.mxu0 0
    %3099 = vmatmul.mubr.bf16.gmra.mxu0 %v3064
    %v3100 = vpop.f32.mrf.mxu0
    %v3101 = vadd.f32 %v3054, %v3100
    %v3102 = vpop.f32.mrf.mxu0
    %v3103 = vpop.f32.mrf.mxu0
    %v3104 = vadd.f32 %v3057, %v3103
    %v3105 = vpop.f32.mrf.mxu0
    %3106 = vdwg.mxu0
    %v3107 = vpack.c.bf16 %v2863, %v2859
    %3108 = vrot.lane.b32.xlu0 %v2865, 112
    %v3109 = vpop.permute.xlu0 %3108
    %3110 = vrot.lane.b32.xlu0 %v2865, 80
    %v3111 = vpop.permute.xlu0 %3110
    %v3113 = vsel %vm162, %v3109, 0
    %v3116 = vsel %vm162, %v3111, 0
    %3118 = vmatprep.subr.bf16.mxu0 0
    %3119 = vmatpush1.bf16.xpose.msra.mxu0 0
    %3120 = vmatprep.subr.bf16.mxu0 0
    %3121 = vmatpush1.bf16.xpose.msra.mxu0 0
    %3122 = vmatprep.subr.bf16.mxu0 0
    %3123 = vmatpush1.bf16.xpose.msra.mxu0 0
    %3124 = vmatprep.subr.bf16.mxu0 0
    %3125 = vmatpush1.bf16.xpose.msra.mxu0 0
    %3126 = vmatprep.subr.bf16.mxu0 0
    %3127 = vmatpush1.bf16.xpose.msra.mxu0 0
    %3128 = vmatprep.subr.bf16.mxu0 0
    %3129 = vmatpush1.bf16.xpose.msra.mxu0 0
    %3130 = vmatprep.subr.bf16.mxu0 0
    %3131 = vmatpush1.bf16.xpose.msra.mxu0 0
    %3132 = vmatprep.subr.bf16.mxu0 0
    %3133 = vmatpush1.bf16.xpose.msra.mxu0 %v3116
    %3134 = vmatprep.subr.bf16.mxu0 0
    %3135 = vmatpush2.bf16.xpose.msra.mxu0 0
    %3136 = vmatprep.subr.bf16.mxu0 0
    %3137 = vmatpush2.bf16.xpose.msra.mxu0 0
    %3138 = vmatprep.subr.bf16.mxu0 0
    %3139 = vmatpush2.bf16.xpose.msra.mxu0 0
    %3140 = vmatprep.subr.bf16.mxu0 0
    %3141 = vmatpush2.bf16.xpose.msra.mxu0 0
    %3142 = vmatprep.subr.bf16.mxu0 0
    %3143 = vmatpush2.bf16.xpose.msra.mxu0 0
    %3144 = vmatprep.subr.bf16.mxu0 0
    %3145 = vmatpush2.bf16.xpose.msra.mxu0 0
    %3146 = vmatprep.subr.bf16.mxu0 0
    %3147 = vmatpush2.bf16.xpose.msra.mxu0 0
    %3148 = vmatprep.subr.bf16.mxu0 0
    %3149 = vmatpush2.bf16.xpose.msra.mxu0 0
    %3150 = vmatprep.mubr.bf16.mxu0 0
    %3151 = vmatmul.mubr.bf16.gmra.mxu0 %v3113
    %v3152 = vpop.f32.mrf.mxu0
    %v3153 = vadd.f32 %v72, %v3152
    %v3154 = vpop.f32.mrf.mxu0
    %v3155 = vpop.f32.mrf.mxu0
    %v3156 = vadd.f32 %v73, %v3155
    %v3157 = vpop.f32.mrf.mxu0
    %3158 = vdwg.mxu0
    %v3159 = vsel %vm210, %v3153, -inf
    %3160 = vmax.xlane.f32.xlu0 %v3159
    %v3161 = vpop.xlane.xlu0 %3160
    %v3162 = vsel %vm210, %v3156, -inf
    %3163 = vmax.xlane.f32.xlu0 %v3162
    %v3164 = vpop.xlane.xlu0 %3163
    %v3165 = vsub.f32 %v3153, %v3161
    %v3166 = vsub.f32 %v3156, %v3164
    %v3167 = vmul.f32 %v3165, 1.442695
    %v3168 = vpow.pop %v3167
    %v3169 = vmul.f32 %v3166, 1.442695
    %v3170 = vpow.pop %v3169
    %v3171 = vsel %vm210, %v3168, 0.0
    %3172 = vadd.xlane.f32.xlu0 %v3171
    %v3173 = vpop.xlane.xlu0 %3172
    %v3174 = vsel %vm210, %v3170, 0.0
    %3175 = vadd.xlane.f32.xlu0 %v3174
    %v3176 = vpop.xlane.xlu0 %3175
    %v3177 = vrcp.pop %v3173
    %v3178 = vrcp.pop %v3176
    %v3179 = vmul.f32 %v3168, %v3177
    %v3180 = vmul.f32 %v3170, %v3178
    %v3181 = vpack.c.bf16 %v3180, %v3179
    %v3183 = vsel %vm210, %v3181, 0
    %3185 = vmatprep.subr.bf16.mxu0 0
    %3186 = vmatpush1.bf16.msra.mxu0 0
    %3187 = vmatprep.subr.bf16.mxu0 0
    %3188 = vmatpush1.bf16.msra.mxu0 0
    %3189 = vmatprep.subr.bf16.mxu0 0
    %3190 = vmatpush1.bf16.msra.mxu0 0
    %3191 = vmatprep.subr.bf16.mxu0 0
    %3192 = vmatpush1.bf16.msra.mxu0 0
    %3193 = vmatprep.subr.bf16.mxu0 0
    %3194 = vmatpush1.bf16.msra.mxu0 0
    %3195 = vmatprep.subr.bf16.mxu0 0
    %3196 = vmatpush1.bf16.msra.mxu0 0
    %3197 = vmatprep.subr.bf16.mxu0 0
    %3198 = vmatpush1.bf16.msra.mxu0 0
    %3199 = vmatprep.subr.bf16.mxu0 0
    %3200 = vmatpush1.bf16.msra.mxu0 %v3107
    %3201 = vmatprep.subr.bf16.mxu0 0
    %3202 = vmatpush2.bf16.msra.mxu0 0
    %3203 = vmatprep.subr.bf16.mxu0 0
    %3204 = vmatpush2.bf16.msra.mxu0 0
    %3205 = vmatprep.subr.bf16.mxu0 0
    %3206 = vmatpush2.bf16.msra.mxu0 0
    %3207 = vmatprep.subr.bf16.mxu0 0
    %3208 = vmatpush2.bf16.msra.mxu0 0
    %3209 = vmatprep.subr.bf16.mxu0 0
    %3210 = vmatpush2.bf16.msra.mxu0 0
    %3211 = vmatprep.subr.bf16.mxu0 0
    %3212 = vmatpush2.bf16.msra.mxu0 0
    %3213 = vmatprep.subr.bf16.mxu0 0
    %3214 = vmatpush2.bf16.msra.mxu0 0
    %3215 = vmatprep.subr.bf16.mxu0 0
    %3216 = vmatpush2.bf16.msra.mxu0 0
    %3217 = vmatprep.mubr.bf16.mxu0 0
    %3218 = vmatmul.mubr.bf16.gmra.mxu0 %v3183
    %v3219 = vpop.f32.mrf.mxu0
    %v3220 = vadd.f32 0.0, %v3219
    %v3221 = vpop.f32.mrf.mxu0
    %v3222 = vpop.f32.mrf.mxu0
    %v3223 = vadd.f32 0.0, %v3222
    %v3224 = vpop.f32.mrf.mxu0
    %3225 = vdwg.mxu0
    %v3226 = vadd.f32 %v3101, %v3220
    %v3227 = vadd.f32 %v3104, %v3223
    %3228 = vrot.lane.b32.xlu0 %v2865, 104
    %v3229 = vpop.permute.xlu0 %3228
    %3230 = vrot.lane.b32.xlu0 %v2865, 72
    %v3231 = vpop.permute.xlu0 %3230
    %v3233 = vsel %vm162, %v3229, 0
    %v3236 = vsel %vm162, %v3231, 0
    %3238 = vmatprep.subr.bf16.mxu0 0
    %3239 = vmatpush1.bf16.xpose.msra.mxu0 0
    %3240 = vmatprep.subr.bf16.mxu0 0
    %3241 = vmatpush1.bf16.xpose.msra.mxu0 0
    %3242 = vmatprep.subr.bf16.mxu0 0
    %3243 = vmatpush1.bf16.xpose.msra.mxu0 0
    %3244 = vmatprep.subr.bf16.mxu0 0
    %3245 = vmatpush1.bf16.xpose.msra.mxu0 0
    %3246 = vmatprep.subr.bf16.mxu0 0
    %3247 = vmatpush1.bf16.xpose.msra.mxu0 0
    %3248 = vmatprep.subr.bf16.mxu0 0
    %3249 = vmatpush1.bf16.xpose.msra.mxu0 0
    %3250 = vmatprep.subr.bf16.mxu0 0
    %3251 = vmatpush1.bf16.xpose.msra.mxu0 0
    %3252 = vmatprep.subr.bf16.mxu0 0
    %3253 = vmatpush1.bf16.xpose.msra.mxu0 %v3236
    %3254 = vmatprep.subr.bf16.mxu0 0
    %3255 = vmatpush2.bf16.xpose.msra.mxu0 0
    %3256 = vmatprep.subr.bf16.mxu0 0
    %3257 = vmatpush2.bf16.xpose.msra.mxu0 0
    %3258 = vmatprep.subr.bf16.mxu0 0
    %3259 = vmatpush2.bf16.xpose.msra.mxu0 0
    %3260 = vmatprep.subr.bf16.mxu0 0
    %3261 = vmatpush2.bf16.xpose.msra.mxu0 0
    %3262 = vmatprep.subr.bf16.mxu0 0
    %3263 = vmatpush2.bf16.xpose.msra.mxu0 0
    %3264 = vmatprep.subr.bf16.mxu0 0
    %3265 = vmatpush2.bf16.xpose.msra.mxu0 0
    %3266 = vmatprep.subr.bf16.mxu0 0
    %3267 = vmatpush2.bf16.xpose.msra.mxu0 0
    %3268 = vmatprep.subr.bf16.mxu0 0
    %3269 = vmatpush2.bf16.xpose.msra.mxu0 0
    %3270 = vmatprep.mubr.bf16.mxu0 0
    %3271 = vmatmul.mubr.bf16.gmra.mxu0 %v3233
    %v3272 = vpop.f32.mrf.mxu0
    %v3273 = vadd.f32 %v72, %v3272
    %v3274 = vpop.f32.mrf.mxu0
    %v3275 = vpop.f32.mrf.mxu0
    %v3276 = vadd.f32 %v73, %v3275
    %v3277 = vpop.f32.mrf.mxu0
    %3278 = vdwg.mxu0
    %v3279 = vsel %vm210, %v3273, -inf
    %3280 = vmax.xlane.f32.xlu0 %v3279
    %v3281 = vpop.xlane.xlu0 %3280
    %v3282 = vsel %vm210, %v3276, -inf
    %3283 = vmax.xlane.f32.xlu0 %v3282
    %v3284 = vpop.xlane.xlu0 %3283
    %v3285 = vsub.f32 %v3273, %v3281
    %v3286 = vsub.f32 %v3276, %v3284
    %v3287 = vmul.f32 %v3285, 1.442695
    %v3288 = vpow.pop %v3287
    %v3289 = vmul.f32 %v3286, 1.442695
    %v3290 = vpow.pop %v3289
    %v3291 = vsel %vm210, %v3288, 0.0
    %3292 = vadd.xlane.f32.xlu0 %v3291
    %v3293 = vpop.xlane.xlu0 %3292
    %v3294 = vsel %vm210, %v3290, 0.0
    %3295 = vadd.xlane.f32.xlu0 %v3294
    %v3296 = vpop.xlane.xlu0 %3295
    %v3297 = vrcp.pop %v3293
    %v3298 = vrcp.pop %v3296
    %v3299 = vmul.f32 %v3288, %v3297
    %v3300 = vmul.f32 %v3290, %v3298
    %v3301 = vpack.c.bf16 %v3300, %v3299
    %3303 = vrot.lane.b32.xlu0 %v3107, 96
    %v3304 = vpop.permute.xlu0 %3303
    %v3307 = vsel %vm210, %v3301, 0
    %3309 = vmatprep.subr.bf16.mxu0 0
    %3310 = vmatpush1.bf16.msra.mxu0 0
    %3311 = vmatprep.subr.bf16.mxu0 0
    %3312 = vmatpush1.bf16.msra.mxu0 0
    %3313 = vmatprep.subr.bf16.mxu0 0
    %3314 = vmatpush1.bf16.msra.mxu0 0
    %3315 = vmatprep.subr.bf16.mxu0 0
    %3316 = vmatpush1.bf16.msra.mxu0 0
    %3317 = vmatprep.subr.bf16.mxu0 0
    %3318 = vmatpush1.bf16.msra.mxu0 0
    %3319 = vmatprep.subr.bf16.mxu0 0
    %3320 = vmatpush1.bf16.msra.mxu0 0
    %3321 = vmatprep.subr.bf16.mxu0 0
    %3322 = vmatpush1.bf16.msra.mxu0 0
    %3323 = vmatprep.subr.bf16.mxu0 0
    %3324 = vmatpush1.bf16.msra.mxu0 %v3304
    %3325 = vmatprep.subr.bf16.mxu0 0
    %3326 = vmatpush2.bf16.msra.mxu0 0
    %3327 = vmatprep.subr.bf16.mxu0 0
    %3328 = vmatpush2.bf16.msra.mxu0 0
    %3329 = vmatprep.subr.bf16.mxu0 0
    %3330 = vmatpush2.bf16.msra.mxu0 0
    %3331 = vmatprep.subr.bf16.mxu0 0
    %3332 = vmatpush2.bf16.msra.mxu0 0
    %3333 = vmatprep.subr.bf16.mxu0 0
    %3334 = vmatpush2.bf16.msra.mxu0 0
    %3335 = vmatprep.subr.bf16.mxu0 0
    %3336 = vmatpush2.bf16.msra.mxu0 0
    %3337 = vmatprep.subr.bf16.mxu0 0
    %3338 = vmatpush2.bf16.msra.mxu0 0
    %3339 = vmatprep.subr.bf16.mxu0 0
    %3340 = vmatpush2.bf16.msra.mxu0 0
    %3341 = vmatprep.mubr.bf16.mxu0 0
    %3342 = vmatmul.mubr.bf16.gmra.mxu0 %v3307
    %v3343 = vpop.f32.mrf.mxu0
    %v3344 = vadd.f32 0.0, %v3343
    %v3345 = vpop.f32.mrf.mxu0
    %v3346 = vpop.f32.mrf.mxu0
    %v3347 = vadd.f32 0.0, %v3346
    %v3348 = vpop.f32.mrf.mxu0
    %3349 = vdwg.mxu0
    %v3350 = vadd.f32 %v3226, %v3344
    %v3351 = vadd.f32 %v3227, %v3347
    %v3352 = vadd.f32 %v2778, %v3350
    %v3353 = vadd.f32 %v2779, %v3351
    %s3354 = scalar_lea.vmem %s5, 1
    %v3355 = vld [vmem:[%s3354] sm:$0x1]
    %v3357 = vlaneseq
    %v3358 = vshrl.u32 %v3357, 7
    %v3359 = vsub.s32 0, %v3358
    %v3360 = vrot.slane %v3355, %v3359
    %v3362 = vadd.f32 %v3352, %v3360
    %v3363 = vadd.f32 %v3353, %v3360
    %s3364 = scalar_lea.vmem %s6, 1
    %v3365 = vld [vmem:[%s3364] sm:$0x1]
    %s3366 = scalar_lea.vmem %s7, 1
    %v3367 = vld [vmem:[%s3366] sm:$0x1]
    %v3368 = vsel %vm111, %v3362, 0.0
    %3369 = vadd.xlane.f32.xlu0 %v3368
    %v3370 = vpop.xlane.xlu0 %3369
    %v3371 = vsel %vm111, %v3363, 0.0
    %3372 = vadd.xlane.f32.xlu0 %v3371
    %v3373 = vpop.xlane.xlu0 %3372
    %v3374 = vmul.f32 %v3370, %v666
    %v3375 = vmul.f32 %v3373, %v666
    %v3376 = vsub.f32 %v3362, %v3374
    %v3377 = vsub.f32 %v3363, %v3375
    %v3378 = vmul.f32 %v3376, %v3376
    %v3379 = vmul.f32 %v3377, %v3377
    %v3380 = vsel %vm111, %v3378, 0.0
    %3381 = vadd.xlane.f32.xlu0 %v3380
    %v3382 = vpop.xlane.xlu0 %3381
    %v3383 = vsel %vm111, %v3379, 0.0
    %3384 = vadd.xlane.f32.xlu0 %v3383
    %v3385 = vpop.xlane.xlu0 %3384
    %v3386 = vmul.f32 %v3382, %v666
    %v3387 = vmul.f32 %v3385, %v666
    %v3388 = vadd.f32 %v3386, 1e-05
    %v3389 = vadd.f32 %v3387, 1e-05
    %v3390 = vrsqrt.pop %v3388
    %v3391 = vrsqrt.pop %v3389
    %v3392 = vmul.f32 %v3376, %v3390
    %v3393 = vmul.f32 %v3377, %v3391
    %v3395 = vlaneseq
    %v3396 = vshrl.u32 %v3395, 7
    %v3397 = vsub.s32 0, %v3396
    %v3398 = vrot.slane %v3365, %v3397
    %v3400 = vmul.f32 %v3392, %v3398
    %v3401 = vmul.f32 %v3393, %v3398
    %v3403 = vlaneseq
    %v3404 = vshrl.u32 %v3403, 7
    %v3405 = vsub.s32 0, %v3404
    %v3406 = vrot.slane %v3367, %v3405
    %v3408 = vadd.f32 %v3400, %v3406
    %v3409 = vadd.f32 %v3401, %v3406
    %v3410 = vpack.c.bf16 %v3409, %v3408
    %s3411 = scalar_lea.vmem %s8, 256
    %v3412 = vld [vmem:[%s3411] sm:$0xff]
    %v3413 = vld [vmem:[%s3411 + $0x8] sm:$0xff]
    %v3414 = vld [vmem:[%s3411 + $0x10] sm:$0xff]
    %v3415 = vld [vmem:[%s3411 + $0x18] sm:$0xff]
    %v3416 = vld [vmem:[%s3411 + $0x20] sm:$0xff]
    %v3417 = vld [vmem:[%s3411 + $0x28] sm:$0xff]
    %v3418 = vld [vmem:[%s3411 + $0x30] sm:$0xff]
    %v3419 = vld [vmem:[%s3411 + $0x38] sm:$0xff]
    %v3420 = vld [vmem:[%s3411 + $0x40] sm:$0xff]
    %v3421 = vld [vmem:[%s3411 + $0x48] sm:$0xff]
    %v3422 = vld [vmem:[%s3411 + $0x50] sm:$0xff]
    %v3423 = vld [vmem:[%s3411 + $0x58] sm:$0xff]
    %v3424 = vld [vmem:[%s3411 + $0x60] sm:$0xff]
    %v3425 = vld [vmem:[%s3411 + $0x68] sm:$0xff]
    %v3426 = vld [vmem:[%s3411 + $0x70] sm:$0xff]
    %v3427 = vld [vmem:[%s3411 + $0x78] sm:$0xff]
    %v3428 = vld [vmem:[%s3411 + $0x80] sm:$0xff]
    %v3429 = vld [vmem:[%s3411 + $0x88] sm:$0xff]
    %v3430 = vld [vmem:[%s3411 + $0x90] sm:$0xff]
    %v3431 = vld [vmem:[%s3411 + $0x98] sm:$0xff]
    %v3432 = vld [vmem:[%s3411 + $0xa0] sm:$0xff]
    %v3433 = vld [vmem:[%s3411 + $0xa8] sm:$0xff]
    %v3434 = vld [vmem:[%s3411 + $0xb0] sm:$0xff]
    %v3435 = vld [vmem:[%s3411 + $0xb8] sm:$0xff]
    %v3436 = vld [vmem:[%s3411 + $0xc0] sm:$0xff]
    %v3437 = vld [vmem:[%s3411 + $0xc8] sm:$0xff]
    %v3438 = vld [vmem:[%s3411 + $0xd0] sm:$0xff]
    %v3439 = vld [vmem:[%s3411 + $0xd8] sm:$0xff]
    %v3440 = vld [vmem:[%s3411 + $0xe0] sm:$0xff]
    %v3441 = vld [vmem:[%s3411 + $0xe8] sm:$0xff]
    %v3442 = vld [vmem:[%s3411 + $0xf0] sm:$0xff]
    %v3443 = vld [vmem:[%s3411 + $0xf8] sm:$0xff]
    %s3444 = scalar_lea.vmem %s9, 16
    %v3445 = vld [vmem:[%s3444] sm:$0xff]
    %v3446 = vld [vmem:[%s3444 + $0x8] sm:$0xff]
    %v3449 = vlaneseq
    %v3450 = vshrl.u32 %v3449, 7
    %v3451 = vsub.s32 0, %v3450
    %v3452 = vrot.slane %v3445, %v3451
    %v3453 = vlaneseq
    %v3454 = vshrl.u32 %v3453, 7
    %v3455 = vsub.s32 1, %v3454
    %v3456 = vrot.slane %v3445, %v3455
    %v3457 = vlaneseq
    %v3458 = vshrl.u32 %v3457, 7
    %v3459 = vsub.s32 2, %v3458
    %v3460 = vrot.slane %v3445, %v3459
    %v3461 = vlaneseq
    %v3462 = vshrl.u32 %v3461, 7
    %v3463 = vsub.s32 3, %v3462
    %v3464 = vrot.slane %v3445, %v3463
    %v3465 = vlaneseq
    %v3466 = vshrl.u32 %v3465, 7
    %v3467 = vsub.s32 4, %v3466
    %v3468 = vrot.slane %v3445, %v3467
    %v3469 = vlaneseq
    %v3470 = vshrl.u32 %v3469, 7
    %v3471 = vsub.s32 5, %v3470
    %v3472 = vrot.slane %v3445, %v3471
    %v3473 = vlaneseq
    %v3474 = vshrl.u32 %v3473, 7
    %v3475 = vsub.s32 6, %v3474
    %v3476 = vrot.slane %v3445, %v3475
    %v3477 = vlaneseq
    %v3478 = vshrl.u32 %v3477, 7
    %v3479 = vsub.s32 7, %v3478
    %v3480 = vrot.slane %v3445, %v3479
    %v3481 = vlaneseq
    %v3482 = vshrl.u32 %v3481, 7
    %v3483 = vsub.s32 0, %v3482
    %v3484 = vrot.slane %v3446, %v3483
    %v3485 = vlaneseq
    %v3486 = vshrl.u32 %v3485, 7
    %v3487 = vsub.s32 1, %v3486
    %v3488 = vrot.slane %v3446, %v3487
    %v3489 = vlaneseq
    %v3490 = vshrl.u32 %v3489, 7
    %v3491 = vsub.s32 2, %v3490
    %v3492 = vrot.slane %v3446, %v3491
    %v3493 = vlaneseq
    %v3494 = vshrl.u32 %v3493, 7
    %v3495 = vsub.s32 3, %v3494
    %v3496 = vrot.slane %v3446, %v3495
    %v3497 = vlaneseq
    %v3498 = vshrl.u32 %v3497, 7
    %v3499 = vsub.s32 4, %v3498
    %v3500 = vrot.slane %v3446, %v3499
    %v3501 = vlaneseq
    %v3502 = vshrl.u32 %v3501, 7
    %v3503 = vsub.s32 5, %v3502
    %v3504 = vrot.slane %v3446, %v3503
    %v3505 = vlaneseq
    %v3506 = vshrl.u32 %v3505, 7
    %v3507 = vsub.s32 6, %v3506
    %v3508 = vrot.slane %v3446, %v3507
    %v3509 = vlaneseq
    %v3510 = vshrl.u32 %v3509, 7
    %v3511 = vsub.s32 7, %v3510
    %v3512 = vrot.slane %v3446, %v3511
    %v3561 = vunpack.c.l.b16 %v3412
    %v3562 = vunpack.c.h.b16 %v3412
    %v3563 = vunpack.c.l.b16 %v3413
    %v3564 = vunpack.c.h.b16 %v3413
    %v3565 = vunpack.c.l.b16 %v3414
    %v3566 = vunpack.c.h.b16 %v3414
    %v3567 = vunpack.c.l.b16 %v3415
    %v3568 = vunpack.c.h.b16 %v3415
    %v3569 = vunpack.c.l.b16 %v3416
    %v3570 = vunpack.c.h.b16 %v3416
    %v3571 = vunpack.c.l.b16 %v3417
    %v3572 = vunpack.c.h.b16 %v3417
    %v3573 = vunpack.c.l.b16 %v3418
    %v3574 = vunpack.c.h.b16 %v3418
    %v3575 = vunpack.c.l.b16 %v3419
    %v3576 = vunpack.c.h.b16 %v3419
    %v3577 = vunpack.c.l.b16 %v3420
    %v3578 = vunpack.c.h.b16 %v3420
    %v3579 = vunpack.c.l.b16 %v3421
    %v3580 = vunpack.c.h.b16 %v3421
    %v3581 = vunpack.c.l.b16 %v3422
    %v3582 = vunpack.c.h.b16 %v3422
    %v3583 = vunpack.c.l.b16 %v3423
    %v3584 = vunpack.c.h.b16 %v3423
    %v3585 = vunpack.c.l.b16 %v3424
    %v3586 = vunpack.c.h.b16 %v3424
    %v3587 = vunpack.c.l.b16 %v3425
    %v3588 = vunpack.c.h.b16 %v3425
    %v3589 = vunpack.c.l.b16 %v3426
    %v3590 = vunpack.c.h.b16 %v3426
    %v3591 = vunpack.c.l.b16 %v3427
    %v3592 = vunpack.c.h.b16 %v3427
    %v3593 = vunpack.c.l.b16 %v3428
    %v3594 = vunpack.c.h.b16 %v3428
    %v3595 = vunpack.c.l.b16 %v3429
    %v3596 = vunpack.c.h.b16 %v3429
    %v3597 = vunpack.c.l.b16 %v3430
    %v3598 = vunpack.c.h.b16 %v3430
    %v3599 = vunpack.c.l.b16 %v3431
    %v3600 = vunpack.c.h.b16 %v3431
    %v3601 = vunpack.c.l.b16 %v3432
    %v3602 = vunpack.c.h.b16 %v3432
    %v3603 = vunpack.c.l.b16 %v3433
    %v3604 = vunpack.c.h.b16 %v3433
    %v3605 = vunpack.c.l.b16 %v3434
    %v3606 = vunpack.c.h.b16 %v3434
    %v3607 = vunpack.c.l.b16 %v3435
    %v3608 = vunpack.c.h.b16 %v3435
    %v3609 = vunpack.c.l.b16 %v3436
    %v3610 = vunpack.c.h.b16 %v3436
    %v3611 = vunpack.c.l.b16 %v3437
    %v3612 = vunpack.c.h.b16 %v3437
    %v3613 = vunpack.c.l.b16 %v3438
    %v3614 = vunpack.c.h.b16 %v3438
    %v3615 = vunpack.c.l.b16 %v3439
    %v3616 = vunpack.c.h.b16 %v3439
    %v3617 = vunpack.c.l.b16 %v3440
    %v3618 = vunpack.c.h.b16 %v3440
    %v3619 = vunpack.c.l.b16 %v3441
    %v3620 = vunpack.c.h.b16 %v3441
    %v3621 = vunpack.c.l.b16 %v3442
    %v3622 = vunpack.c.h.b16 %v3442
    %v3623 = vunpack.c.l.b16 %v3443
    %v3624 = vunpack.c.h.b16 %v3443
    %v3625 = vpack.c.b16 %v3577, %v3561
    %v3626 = vpack.c.b16 %v3578, %v3562
    %v3627 = vpack.c.b16 %v3579, %v3563
    %v3628 = vpack.c.b16 %v3580, %v3564
    %v3629 = vpack.c.b16 %v3581, %v3565
    %v3630 = vpack.c.b16 %v3582, %v3566
    %v3631 = vpack.c.b16 %v3583, %v3567
    %v3632 = vpack.c.b16 %v3584, %v3568
    %v3633 = vpack.c.b16 %v3585, %v3569
    %v3634 = vpack.c.b16 %v3586, %v3570
    %v3635 = vpack.c.b16 %v3587, %v3571
    %v3636 = vpack.c.b16 %v3588, %v3572
    %v3637 = vpack.c.b16 %v3589, %v3573
    %v3638 = vpack.c.b16 %v3590, %v3574
    %v3639 = vpack.c.b16 %v3591, %v3575
    %v3640 = vpack.c.b16 %v3592, %v3576
    %v3641 = vpack.c.b16 %v3609, %v3593
    %v3642 = vpack.c.b16 %v3610, %v3594
    %v3643 = vpack.c.b16 %v3611, %v3595
    %v3644 = vpack.c.b16 %v3612, %v3596
    %v3645 = vpack.c.b16 %v3613, %v3597
    %v3646 = vpack.c.b16 %v3614, %v3598
    %v3647 = vpack.c.b16 %v3615, %v3599
    %v3648 = vpack.c.b16 %v3616, %v3600
    %v3649 = vpack.c.b16 %v3617, %v3601
    %v3650 = vpack.c.b16 %v3618, %v3602
    %v3651 = vpack.c.b16 %v3619, %v3603
    %v3652 = vpack.c.b16 %v3620, %v3604
    %v3653 = vpack.c.b16 %v3621, %v3605
    %v3654 = vpack.c.b16 %v3622, %v3606
    %v3655 = vpack.c.b16 %v3623, %v3607
    %v3656 = vpack.c.b16 %v3624, %v3608
    %v3690 = vsel %vm111, %v3410, 0
    %3692 = vmatprep.subr.bf16.mxu0 0
    %3693 = vmatpush1.bf16.msra.mxu0 0
    %3694 = vmatprep.subr.bf16.mxu0 0
    %3695 = vmatpush1.bf16.msra.mxu0 0
    %3696 = vmatprep.subr.bf16.mxu0 0
    %3697 = vmatpush1.bf16.msra.mxu0 0
    %3698 = vmatprep.subr.bf16.mxu0 0
    %3699 = vmatpush1.bf16.msra.mxu0 0
    %3700 = vmatprep.subr.bf16.mxu0 0
    %3701 = vmatpush1.bf16.msra.mxu0 0
    %3702 = vmatprep.subr.bf16.mxu0 0
    %3703 = vmatpush1.bf16.msra.mxu0 0
    %3704 = vmatprep.subr.bf16.mxu0 %v3642
    %3705 = vmatpush1.bf16.msra.mxu0 %v3641
    %3706 = vmatprep.subr.bf16.mxu0 %v3626
    %3707 = vmatpush1.bf16.msra.mxu0 %v3625
    %3708 = vmatprep.subr.bf16.mxu0 0
    %3709 = vmatpush2.bf16.msra.mxu0 0
    %3710 = vmatprep.subr.bf16.mxu0 0
    %3711 = vmatpush2.bf16.msra.mxu0 0
    %3712 = vmatprep.subr.bf16.mxu0 0
    %3713 = vmatpush2.bf16.msra.mxu0 0
    %3714 = vmatprep.subr.bf16.mxu0 0
    %3715 = vmatpush2.bf16.msra.mxu0 0
    %3716 = vmatprep.subr.bf16.mxu0 0
    %3717 = vmatpush2.bf16.msra.mxu0 0
    %3718 = vmatprep.subr.bf16.mxu0 0
    %3719 = vmatpush2.bf16.msra.mxu0 0
    %3720 = vmatprep.subr.bf16.mxu0 0
    %3721 = vmatpush2.bf16.msra.mxu0 0
    %3722 = vmatprep.subr.bf16.mxu0 0
    %3723 = vmatpush2.bf16.msra.mxu0 0
    %3724 = vmatprep.mubr.bf16.mxu0 0
    %3725 = vmatmul.mubr.bf16.gmra.mxu0 %v3690
    %v3726 = vpop.f32.mrf.mxu0
    %v3727 = vadd.f32 %v3452, %v3726
    %v3728 = vpop.f32.mrf.mxu0
    %v3729 = vadd.f32 %v3456, %v3728
    %v3730 = vpop.f32.mrf.mxu0
    %v3731 = vadd.f32 %v3452, %v3730
    %v3732 = vpop.f32.mrf.mxu0
    %v3733 = vadd.f32 %v3456, %v3732
    %3734 = vdwg.mxu0
    %3735 = vmatprep.subr.bf16.mxu0 0
    %3736 = vmatpush1.bf16.msra.mxu0 0
    %3737 = vmatprep.subr.bf16.mxu0 0
    %3738 = vmatpush1.bf16.msra.mxu0 0
    %3739 = vmatprep.subr.bf16.mxu0 0
    %3740 = vmatpush1.bf16.msra.mxu0 0
    %3741 = vmatprep.subr.bf16.mxu0 0
    %3742 = vmatpush1.bf16.msra.mxu0 0
    %3743 = vmatprep.subr.bf16.mxu0 0
    %3744 = vmatpush1.bf16.msra.mxu0 0
    %3745 = vmatprep.subr.bf16.mxu0 0
    %3746 = vmatpush1.bf16.msra.mxu0 0
    %3747 = vmatprep.subr.bf16.mxu0 %v3644
    %3748 = vmatpush1.bf16.msra.mxu0 %v3643
    %3749 = vmatprep.subr.bf16.mxu0 %v3628
    %3750 = vmatpush1.bf16.msra.mxu0 %v3627
    %3751 = vmatprep.subr.bf16.mxu0 0
    %3752 = vmatpush2.bf16.msra.mxu0 0
    %3753 = vmatprep.subr.bf16.mxu0 0
    %3754 = vmatpush2.bf16.msra.mxu0 0
    %3755 = vmatprep.subr.bf16.mxu0 0
    %3756 = vmatpush2.bf16.msra.mxu0 0
    %3757 = vmatprep.subr.bf16.mxu0 0
    %3758 = vmatpush2.bf16.msra.mxu0 0
    %3759 = vmatprep.subr.bf16.mxu0 0
    %3760 = vmatpush2.bf16.msra.mxu0 0
    %3761 = vmatprep.subr.bf16.mxu0 0
    %3762 = vmatpush2.bf16.msra.mxu0 0
    %3763 = vmatprep.subr.bf16.mxu0 0
    %3764 = vmatpush2.bf16.msra.mxu0 0
    %3765 = vmatprep.subr.bf16.mxu0 0
    %3766 = vmatpush2.bf16.msra.mxu0 0
    %3767 = vmatprep.mubr.bf16.mxu0 0
    %3768 = vmatmul.mubr.bf16.gmra.mxu0 %v3690
    %v3769 = vpop.f32.mrf.mxu0
    %v3770 = vadd.f32 %v3460, %v3769
    %v3771 = vpop.f32.mrf.mxu0
    %v3772 = vadd.f32 %v3464, %v3771
    %v3773 = vpop.f32.mrf.mxu0
    %v3774 = vadd.f32 %v3460, %v3773
    %v3775 = vpop.f32.mrf.mxu0
    %v3776 = vadd.f32 %v3464, %v3775
    %3777 = vdwg.mxu0
    %3778 = vmatprep.subr.bf16.mxu0 0
    %3779 = vmatpush1.bf16.msra.mxu0 0
    %3780 = vmatprep.subr.bf16.mxu0 0
    %3781 = vmatpush1.bf16.msra.mxu0 0
    %3782 = vmatprep.subr.bf16.mxu0 0
    %3783 = vmatpush1.bf16.msra.mxu0 0
    %3784 = vmatprep.subr.bf16.mxu0 0
    %3785 = vmatpush1.bf16.msra.mxu0 0
    %3786 = vmatprep.subr.bf16.mxu0 0
    %3787 = vmatpush1.bf16.msra.mxu0 0
    %3788 = vmatprep.subr.bf16.mxu0 0
    %3789 = vmatpush1.bf16.msra.mxu0 0
    %3790 = vmatprep.subr.bf16.mxu0 %v3646
    %3791 = vmatpush1.bf16.msra.mxu0 %v3645
    %3792 = vmatprep.subr.bf16.mxu0 %v3630
    %3793 = vmatpush1.bf16.msra.mxu0 %v3629
    %3794 = vmatprep.subr.bf16.mxu0 0
    %3795 = vmatpush2.bf16.msra.mxu0 0
    %3796 = vmatprep.subr.bf16.mxu0 0
    %3797 = vmatpush2.bf16.msra.mxu0 0
    %3798 = vmatprep.subr.bf16.mxu0 0
    %3799 = vmatpush2.bf16.msra.mxu0 0
    %3800 = vmatprep.subr.bf16.mxu0 0
    %3801 = vmatpush2.bf16.msra.mxu0 0
    %3802 = vmatprep.subr.bf16.mxu0 0
    %3803 = vmatpush2.bf16.msra.mxu0 0
    %3804 = vmatprep.subr.bf16.mxu0 0
    %3805 = vmatpush2.bf16.msra.mxu0 0
    %3806 = vmatprep.subr.bf16.mxu0 0
    %3807 = vmatpush2.bf16.msra.mxu0 0
    %3808 = vmatprep.subr.bf16.mxu0 0
    %3809 = vmatpush2.bf16.msra.mxu0 0
    %3810 = vmatprep.mubr.bf16.mxu0 0
    %3811 = vmatmul.mubr.bf16.gmra.mxu0 %v3690
    %v3812 = vpop.f32.mrf.mxu0
    %v3813 = vadd.f32 %v3468, %v3812
    %v3814 = vpop.f32.mrf.mxu0
    %v3815 = vadd.f32 %v3472, %v3814
    %v3816 = vpop.f32.mrf.mxu0
    %v3817 = vadd.f32 %v3468, %v3816
    %v3818 = vpop.f32.mrf.mxu0
    %v3819 = vadd.f32 %v3472, %v3818
    %3820 = vdwg.mxu0
    %3821 = vmatprep.subr.bf16.mxu0 0
    %3822 = vmatpush1.bf16.msra.mxu0 0
    %3823 = vmatprep.subr.bf16.mxu0 0
    %3824 = vmatpush1.bf16.msra.mxu0 0
    %3825 = vmatprep.subr.bf16.mxu0 0
    %3826 = vmatpush1.bf16.msra.mxu0 0
    %3827 = vmatprep.subr.bf16.mxu0 0
    %3828 = vmatpush1.bf16.msra.mxu0 0
    %3829 = vmatprep.subr.bf16.mxu0 0
    %3830 = vmatpush1.bf16.msra.mxu0 0
    %3831 = vmatprep.subr.bf16.mxu0 0
    %3832 = vmatpush1.bf16.msra.mxu0 0
    %3833 = vmatprep.subr.bf16.mxu0 %v3648
    %3834 = vmatpush1.bf16.msra.mxu0 %v3647
    %3835 = vmatprep.subr.bf16.mxu0 %v3632
    %3836 = vmatpush1.bf16.msra.mxu0 %v3631
    %3837 = vmatprep.subr.bf16.mxu0 0
    %3838 = vmatpush2.bf16.msra.mxu0 0
    %3839 = vmatprep.subr.bf16.mxu0 0
    %3840 = vmatpush2.bf16.msra.mxu0 0
    %3841 = vmatprep.subr.bf16.mxu0 0
    %3842 = vmatpush2.bf16.msra.mxu0 0
    %3843 = vmatprep.subr.bf16.mxu0 0
    %3844 = vmatpush2.bf16.msra.mxu0 0
    %3845 = vmatprep.subr.bf16.mxu0 0
    %3846 = vmatpush2.bf16.msra.mxu0 0
    %3847 = vmatprep.subr.bf16.mxu0 0
    %3848 = vmatpush2.bf16.msra.mxu0 0
    %3849 = vmatprep.subr.bf16.mxu0 0
    %3850 = vmatpush2.bf16.msra.mxu0 0
    %3851 = vmatprep.subr.bf16.mxu0 0
    %3852 = vmatpush2.bf16.msra.mxu0 0
    %3853 = vmatprep.mubr.bf16.mxu0 0
    %3854 = vmatmul.mubr.bf16.gmra.mxu0 %v3690
    %v3855 = vpop.f32.mrf.mxu0
    %v3856 = vadd.f32 %v3476, %v3855
    %v3857 = vpop.f32.mrf.mxu0
    %v3858 = vadd.f32 %v3480, %v3857
    %v3859 = vpop.f32.mrf.mxu0
    %v3860 = vadd.f32 %v3476, %v3859
    %v3861 = vpop.f32.mrf.mxu0
    %v3862 = vadd.f32 %v3480, %v3861
    %3863 = vdwg.mxu0
    %3864 = vmatprep.subr.bf16.mxu0 0
    %3865 = vmatpush1.bf16.msra.mxu0 0
    %3866 = vmatprep.subr.bf16.mxu0 0
    %3867 = vmatpush1.bf16.msra.mxu0 0
    %3868 = vmatprep.subr.bf16.mxu0 0
    %3869 = vmatpush1.bf16.msra.mxu0 0
    %3870 = vmatprep.subr.bf16.mxu0 0
    %3871 = vmatpush1.bf16.msra.mxu0 0
    %3872 = vmatprep.subr.bf16.mxu0 0
    %3873 = vmatpush1.bf16.msra.mxu0 0
    %3874 = vmatprep.subr.bf16.mxu0 0
    %3875 = vmatpush1.bf16.msra.mxu0 0
    %3876 = vmatprep.subr.bf16.mxu0 %v3650
    %3877 = vmatpush1.bf16.msra.mxu0 %v3649
    %3878 = vmatprep.subr.bf16.mxu0 %v3634
    %3879 = vmatpush1.bf16.msra.mxu0 %v3633
    %3880 = vmatprep.subr.bf16.mxu0 0
    %3881 = vmatpush2.bf16.msra.mxu0 0
    %3882 = vmatprep.subr.bf16.mxu0 0
    %3883 = vmatpush2.bf16.msra.mxu0 0
    %3884 = vmatprep.subr.bf16.mxu0 0
    %3885 = vmatpush2.bf16.msra.mxu0 0
    %3886 = vmatprep.subr.bf16.mxu0 0
    %3887 = vmatpush2.bf16.msra.mxu0 0
    %3888 = vmatprep.subr.bf16.mxu0 0
    %3889 = vmatpush2.bf16.msra.mxu0 0
    %3890 = vmatprep.subr.bf16.mxu0 0
    %3891 = vmatpush2.bf16.msra.mxu0 0
    %3892 = vmatprep.subr.bf16.mxu0 0
    %3893 = vmatpush2.bf16.msra.mxu0 0
    %3894 = vmatprep.subr.bf16.mxu0 0
    %3895 = vmatpush2.bf16.msra.mxu0 0
    %3896 = vmatprep.mubr.bf16.mxu0 0
    %3897 = vmatmul.mubr.bf16.gmra.mxu0 %v3690
    %v3898 = vpop.f32.mrf.mxu0
    %v3899 = vadd.f32 %v3484, %v3898
    %v3900 = vpop.f32.mrf.mxu0
    %v3901 = vadd.f32 %v3488, %v3900
    %v3902 = vpop.f32.mrf.mxu0
    %v3903 = vadd.f32 %v3484, %v3902
    %v3904 = vpop.f32.mrf.mxu0
    %v3905 = vadd.f32 %v3488, %v3904
    %3906 = vdwg.mxu0
    %3907 = vmatprep.subr.bf16.mxu0 0
    %3908 = vmatpush1.bf16.msra.mxu0 0
    %3909 = vmatprep.subr.bf16.mxu0 0
    %3910 = vmatpush1.bf16.msra.mxu0 0
    %3911 = vmatprep.subr.bf16.mxu0 0
    %3912 = vmatpush1.bf16.msra.mxu0 0
    %3913 = vmatprep.subr.bf16.mxu0 0
    %3914 = vmatpush1.bf16.msra.mxu0 0
    %3915 = vmatprep.subr.bf16.mxu0 0
    %3916 = vmatpush1.bf16.msra.mxu0 0
    %3917 = vmatprep.subr.bf16.mxu0 0
    %3918 = vmatpush1.bf16.msra.mxu0 0
    %3919 = vmatprep.subr.bf16.mxu0 %v3652
    %3920 = vmatpush1.bf16.msra.mxu0 %v3651
    %3921 = vmatprep.subr.bf16.mxu0 %v3636
    %3922 = vmatpush1.bf16.msra.mxu0 %v3635
    %3923 = vmatprep.subr.bf16.mxu0 0
    %3924 = vmatpush2.bf16.msra.mxu0 0
    %3925 = vmatprep.subr.bf16.mxu0 0
    %3926 = vmatpush2.bf16.msra.mxu0 0
    %3927 = vmatprep.subr.bf16.mxu0 0
    %3928 = vmatpush2.bf16.msra.mxu0 0
    %3929 = vmatprep.subr.bf16.mxu0 0
    %3930 = vmatpush2.bf16.msra.mxu0 0
    %3931 = vmatprep.subr.bf16.mxu0 0
    %3932 = vmatpush2.bf16.msra.mxu0 0
    %3933 = vmatprep.subr.bf16.mxu0 0
    %3934 = vmatpush2.bf16.msra.mxu0 0
    %3935 = vmatprep.subr.bf16.mxu0 0
    %3936 = vmatpush2.bf16.msra.mxu0 0
    %3937 = vmatprep.subr.bf16.mxu0 0
    %3938 = vmatpush2.bf16.msra.mxu0 0
    %3939 = vmatprep.mubr.bf16.mxu0 0
    %3940 = vmatmul.mubr.bf16.gmra.mxu0 %v3690
    %v3941 = vpop.f32.mrf.mxu0
    %v3942 = vadd.f32 %v3492, %v3941
    %v3943 = vpop.f32.mrf.mxu0
    %v3944 = vadd.f32 %v3496, %v3943
    %v3945 = vpop.f32.mrf.mxu0
    %v3946 = vadd.f32 %v3492, %v3945
    %v3947 = vpop.f32.mrf.mxu0
    %v3948 = vadd.f32 %v3496, %v3947
    %3949 = vdwg.mxu0
    %3950 = vmatprep.subr.bf16.mxu0 0
    %3951 = vmatpush1.bf16.msra.mxu0 0
    %3952 = vmatprep.subr.bf16.mxu0 0
    %3953 = vmatpush1.bf16.msra.mxu0 0
    %3954 = vmatprep.subr.bf16.mxu0 0
    %3955 = vmatpush1.bf16.msra.mxu0 0
    %3956 = vmatprep.subr.bf16.mxu0 0
    %3957 = vmatpush1.bf16.msra.mxu0 0
    %3958 = vmatprep.subr.bf16.mxu0 0
    %3959 = vmatpush1.bf16.msra.mxu0 0
    %3960 = vmatprep.subr.bf16.mxu0 0
    %3961 = vmatpush1.bf16.msra.mxu0 0
    %3962 = vmatprep.subr.bf16.mxu0 %v3654
    %3963 = vmatpush1.bf16.msra.mxu0 %v3653
    %3964 = vmatprep.subr.bf16.mxu0 %v3638
    %3965 = vmatpush1.bf16.msra.mxu0 %v3637
    %3966 = vmatprep.subr.bf16.mxu0 0
    %3967 = vmatpush2.bf16.msra.mxu0 0
    %3968 = vmatprep.subr.bf16.mxu0 0
    %3969 = vmatpush2.bf16.msra.mxu0 0
    %3970 = vmatprep.subr.bf16.mxu0 0
    %3971 = vmatpush2.bf16.msra.mxu0 0
    %3972 = vmatprep.subr.bf16.mxu0 0
    %3973 = vmatpush2.bf16.msra.mxu0 0
    %3974 = vmatprep.subr.bf16.mxu0 0
    %3975 = vmatpush2.bf16.msra.mxu0 0
    %3976 = vmatprep.subr.bf16.mxu0 0
    %3977 = vmatpush2.bf16.msra.mxu0 0
    %3978 = vmatprep.subr.bf16.mxu0 0
    %3979 = vmatpush2.bf16.msra.mxu0 0
    %3980 = vmatprep.subr.bf16.mxu0 0
    %3981 = vmatpush2.bf16.msra.mxu0 0
    %3982 = vmatprep.mubr.bf16.mxu0 0
    %3983 = vmatmul.mubr.bf16.gmra.mxu0 %v3690
    %v3984 = vpop.f32.mrf.mxu0
    %v3985 = vadd.f32 %v3500, %v3984
    %v3986 = vpop.f32.mrf.mxu0
    %v3987 = vadd.f32 %v3504, %v3986
    %v3988 = vpop.f32.mrf.mxu0
    %v3989 = vadd.f32 %v3500, %v3988
    %v3990 = vpop.f32.mrf.mxu0
    %v3991 = vadd.f32 %v3504, %v3990
    %3992 = vdwg.mxu0
    %3993 = vmatprep.subr.bf16.mxu0 0
    %3994 = vmatpush1.bf16.msra.mxu0 0
    %3995 = vmatprep.subr.bf16.mxu0 0
    %3996 = vmatpush1.bf16.msra.mxu0 0
    %3997 = vmatprep.subr.bf16.mxu0 0
    %3998 = vmatpush1.bf16.msra.mxu0 0
    %3999 = vmatprep.subr.bf16.mxu0 0
    %4000 = vmatpush1.bf16.msra.mxu0 0
    %4001 = vmatprep.subr.bf16.mxu0 0
    %4002 = vmatpush1.bf16.msra.mxu0 0
    %4003 = vmatprep.subr.bf16.mxu0 0
    %4004 = vmatpush1.bf16.msra.mxu0 0
    %4005 = vmatprep.subr.bf16.mxu0 %v3656
    %4006 = vmatpush1.bf16.msra.mxu0 %v3655
    %4007 = vmatprep.subr.bf16.mxu0 %v3640
    %4008 = vmatpush1.bf16.msra.mxu0 %v3639
    %4009 = vmatprep.subr.bf16.mxu0 0
    %4010 = vmatpush2.bf16.msra.mxu0 0
    %4011 = vmatprep.subr.bf16.mxu0 0
    %4012 = vmatpush2.bf16.msra.mxu0 0
    %4013 = vmatprep.subr.bf16.mxu0 0
    %4014 = vmatpush2.bf16.msra.mxu0 0
    %4015 = vmatprep.subr.bf16.mxu0 0
    %4016 = vmatpush2.bf16.msra.mxu0 0
    %4017 = vmatprep.subr.bf16.mxu0 0
    %4018 = vmatpush2.bf16.msra.mxu0 0
    %4019 = vmatprep.subr.bf16.mxu0 0
    %4020 = vmatpush2.bf16.msra.mxu0 0
    %4021 = vmatprep.subr.bf16.mxu0 0
    %4022 = vmatpush2.bf16.msra.mxu0 0
    %4023 = vmatprep.subr.bf16.mxu0 0
    %4024 = vmatpush2.bf16.msra.mxu0 0
    %4025 = vmatprep.mubr.bf16.mxu0 0
    %4026 = vmatmul.mubr.bf16.gmra.mxu0 %v3690
    %v4027 = vpop.f32.mrf.mxu0
    %v4028 = vadd.f32 %v3508, %v4027
    %v4029 = vpop.f32.mrf.mxu0
    %v4030 = vadd.f32 %v3512, %v4029
    %v4031 = vpop.f32.mrf.mxu0
    %v4032 = vadd.f32 %v3508, %v4031
    %v4033 = vpop.f32.mrf.mxu0
    %v4034 = vadd.f32 %v3512, %v4033
    %4035 = vdwg.mxu0
    %v4036 = vmax.f32 %v3727, 0.0
    %v4037 = vmax.f32 %v3729, 0.0
    %v4038 = vmax.f32 %v3770, 0.0
    %v4039 = vmax.f32 %v3772, 0.0
    %v4040 = vmax.f32 %v3813, 0.0
    %v4041 = vmax.f32 %v3815, 0.0
    %v4042 = vmax.f32 %v3856, 0.0
    %v4043 = vmax.f32 %v3858, 0.0
    %v4044 = vmax.f32 %v3899, 0.0
    %v4045 = vmax.f32 %v3901, 0.0
    %v4046 = vmax.f32 %v3942, 0.0
    %v4047 = vmax.f32 %v3944, 0.0
    %v4048 = vmax.f32 %v3985, 0.0
    %v4049 = vmax.f32 %v3987, 0.0
    %v4050 = vmax.f32 %v4028, 0.0
    %v4051 = vmax.f32 %v4030, 0.0
    %v4052 = vmax.f32 %v3731, 0.0
    %v4053 = vmax.f32 %v3733, 0.0
    %v4054 = vmax.f32 %v3774, 0.0
    %v4055 = vmax.f32 %v3776, 0.0
    %v4056 = vmax.f32 %v3817, 0.0
    %v4057 = vmax.f32 %v3819, 0.0
    %v4058 = vmax.f32 %v3860, 0.0
    %v4059 = vmax.f32 %v3862, 0.0
    %v4060 = vmax.f32 %v3903, 0.0
    %v4061 = vmax.f32 %v3905, 0.0
    %v4062 = vmax.f32 %v3946, 0.0
    %v4063 = vmax.f32 %v3948, 0.0
    %v4064 = vmax.f32 %v3989, 0.0
    %v4065 = vmax.f32 %v3991, 0.0
    %v4066 = vmax.f32 %v4032, 0.0
    %v4067 = vmax.f32 %v4034, 0.0
    %v4068 = vpack.c.bf16 %v4052, %v4036
    %v4069 = vpack.c.bf16 %v4053, %v4037
    %v4070 = vpack.c.bf16 %v4054, %v4038
    %v4071 = vpack.c.bf16 %v4055, %v4039
    %v4072 = vpack.c.bf16 %v4056, %v4040
    %v4073 = vpack.c.bf16 %v4057, %v4041
    %v4074 = vpack.c.bf16 %v4058, %v4042
    %v4075 = vpack.c.bf16 %v4059, %v4043
    %v4076 = vpack.c.bf16 %v4060, %v4044
    %v4077 = vpack.c.bf16 %v4061, %v4045
    %v4078 = vpack.c.bf16 %v4062, %v4046
    %v4079 = vpack.c.bf16 %v4063, %v4047
    %v4080 = vpack.c.bf16 %v4064, %v4048
    %v4081 = vpack.c.bf16 %v4065, %v4049
    %v4082 = vpack.c.bf16 %v4066, %v4050
    %v4083 = vpack.c.bf16 %v4067, %v4051
    %s4084 = scalar_lea.vmem %s10, 1024
    %v4085 = vld [vmem:[%s4084] sm:$0xf]
    %v4086 = vld [vmem:[%s4084 + $0x4] sm:$0xf]
    %v4087 = vld [vmem:[%s4084 + $0x8] sm:$0xf]
    %v4088 = vld [vmem:[%s4084 + $0xc] sm:$0xf]
    %v4089 = vld [vmem:[%s4084 + $0x10] sm:$0xf]
    %v4090 = vld [vmem:[%s4084 + $0x14] sm:$0xf]
    %v4091 = vld [vmem:[%s4084 + $0x18] sm:$0xf]
    %v4092 = vld [vmem:[%s4084 + $0x1c] sm:$0xf]
    %v4093 = vld [vmem:[%s4084 + $0x20] sm:$0xf]
    %v4094 = vld [vmem:[%s4084 + $0x24] sm:$0xf]
    %v4095 = vld [vmem:[%s4084 + $0x28] sm:$0xf]
    %v4096 = vld [vmem:[%s4084 + $0x2c] sm:$0xf]
    %v4097 = vld [vmem:[%s4084 + $0x30] sm:$0xf]
    %v4098 = vld [vmem:[%s4084 + $0x34] sm:$0xf]
    %v4099 = vld [vmem:[%s4084 + $0x38] sm:$0xf]
    %v4100 = vld [vmem:[%s4084 + $0x3c] sm:$0xf]
    %v4101 = vld [vmem:[%s4084 + $0x40] sm:$0xf]
    %v4102 = vld [vmem:[%s4084 + $0x44] sm:$0xf]
    %v4103 = vld [vmem:[%s4084 + $0x48] sm:$0xf]
    %v4104 = vld [vmem:[%s4084 + $0x4c] sm:$0xf]
    %v4105 = vld [vmem:[%s4084 + $0x50] sm:$0xf]
    %v4106 = vld [vmem:[%s4084 + $0x54] sm:$0xf]
    %v4107 = vld [vmem:[%s4084 + $0x58] sm:$0xf]
    %v4108 = vld [vmem:[%s4084 + $0x5c] sm:$0xf]
    %v4109 = vld [vmem:[%s4084 + $0x60] sm:$0xf]
    %v4110 = vld [vmem:[%s4084 + $0x64] sm:$0xf]
    %v4111 = vld [vmem:[%s4084 + $0x68] sm:$0xf]
    %v4112 = vld [vmem:[%s4084 + $0x6c] sm:$0xf]
    %v4113 = vld [vmem:[%s4084 + $0x70] sm:$0xf]
    %v4114 = vld [vmem:[%s4084 + $0x74] sm:$0xf]
    %v4115 = vld [vmem:[%s4084 + $0x78] sm:$0xf]
    %v4116 = vld [vmem:[%s4084 + $0x7c] sm:$0xf]
    %v4117 = vld [vmem:[%s4084 + $0x80] sm:$0xf]
    %v4118 = vld [vmem:[%s4084 + $0x84] sm:$0xf]
    %v4119 = vld [vmem:[%s4084 + $0x88] sm:$0xf]
    %v4120 = vld [vmem:[%s4084 + $0x8c] sm:$0xf]
    %v4121 = vld [vmem:[%s4084 + $0x90] sm:$0xf]
    %v4122 = vld [vmem:[%s4084 + $0x94] sm:$0xf]
    %v4123 = vld [vmem:[%s4084 + $0x98] sm:$0xf]
    %v4124 = vld [vmem:[%s4084 + $0x9c] sm:$0xf]
    %v4125 = vld [vmem:[%s4084 + $0xa0] sm:$0xf]
    %v4126 = vld [vmem:[%s4084 + $0xa4] sm:$0xf]
    %v4127 = vld [vmem:[%s4084 + $0xa8] sm:$0xf]
    %v4128 = vld [vmem:[%s4084 + $0xac] sm:$0xf]
    %v4129 = vld [vmem:[%s4084 + $0xb0] sm:$0xf]
    %v4130 = vld [vmem:[%s4084 + $0xb4] sm:$0xf]
    %v4131 = vld [vmem:[%s4084 + $0xb8] sm:$0xf]
    %v4132 = vld [vmem:[%s4084 + $0xbc] sm:$0xf]
    %v4133 = vld [vmem:[%s4084 + $0xc0] sm:$0xf]
    %v4134 = vld [vmem:[%s4084 + $0xc4] sm:$0xf]
    %v4135 = vld [vmem:[%s4084 + $0xc8] sm:$0xf]
    %v4136 = vld [vmem:[%s4084 + $0xcc] sm:$0xf]
    %v4137 = vld [vmem:[%s4084 + $0xd0] sm:$0xf]
    %v4138 = vld [vmem:[%s4084 + $0xd4] sm:$0xf]
    %v4139 = vld [vmem:[%s4084 + $0xd8] sm:$0xf]
    %v4140 = vld [vmem:[%s4084 + $0xdc] sm:$0xf]
    %v4141 = vld [vmem:[%s4084 + $0xe0] sm:$0xf]
    %v4142 = vld [vmem:[%s4084 + $0xe4] sm:$0xf]
    %v4143 = vld [vmem:[%s4084 + $0xe8] sm:$0xf]
    %v4144 = vld [vmem:[%s4084 + $0xec] sm:$0xf]
    %v4145 = vld [vmem:[%s4084 + $0xf0] sm:$0xf]
    %v4146 = vld [vmem:[%s4084 + $0xf4] sm:$0xf]
    %v4147 = vld [vmem:[%s4084 + $0xf8] sm:$0xf]
    %v4148 = vld [vmem:[%s4084 + $0xfc] sm:$0xf]
    %v4149 = vld [vmem:[%s4084 + $0x100] sm:$0xf]
    %v4150 = vld [vmem:[%s4084 + $0x104] sm:$0xf]
    %v4151 = vld [vmem:[%s4084 + $0x108] sm:$0xf]
    %v4152 = vld [vmem:[%s4084 + $0x10c] sm:$0xf]
    %v4153 = vld [vmem:[%s4084 + $0x110] sm:$0xf]
    %v4154 = vld [vmem:[%s4084 + $0x114] sm:$0xf]
    %v4155 = vld [vmem:[%s4084 + $0x118] sm:$0xf]
    %v4156 = vld [vmem:[%s4084 + $0x11c] sm:$0xf]
    %v4157 = vld [vmem:[%s4084 + $0x120] sm:$0xf]
    %v4158 = vld [vmem:[%s4084 + $0x124] sm:$0xf]
    %v4159 = vld [vmem:[%s4084 + $0x128] sm:$0xf]
    %v4160 = vld [vmem:[%s4084 + $0x12c] sm:$0xf]
    %v4161 = vld [vmem:[%s4084 + $0x130] sm:$0xf]
    %v4162 = vld [vmem:[%s4084 + $0x134] sm:$0xf]
    %v4163 = vld [vmem:[%s4084 + $0x138] sm:$0xf]
    %v4164 = vld [vmem:[%s4084 + $0x13c] sm:$0xf]
    %v4165 = vld [vmem:[%s4084 + $0x140] sm:$0xf]
    %v4166 = vld [vmem:[%s4084 + $0x144] sm:$0xf]
    %v4167 = vld [vmem:[%s4084 + $0x148] sm:$0xf]
    %v4168 = vld [vmem:[%s4084 + $0x14c] sm:$0xf]
    %v4169 = vld [vmem:[%s4084 + $0x150] sm:$0xf]
    %v4170 = vld [vmem:[%s4084 + $0x154] sm:$0xf]
    %v4171 = vld [vmem:[%s4084 + $0x158] sm:$0xf]
    %v4172 = vld [vmem:[%s4084 + $0x15c] sm:$0xf]
    %v4173 = vld [vmem:[%s4084 + $0x160] sm:$0xf]
    %v4174 = vld [vmem:[%s4084 + $0x164] sm:$0xf]
    %v4175 = vld [vmem:[%s4084 + $0x168] sm:$0xf]
    %v4176 = vld [vmem:[%s4084 + $0x16c] sm:$0xf]
    %v4177 = vld [vmem:[%s4084 + $0x170] sm:$0xf]
    %v4178 = vld [vmem:[%s4084 + $0x174] sm:$0xf]
    %v4179 = vld [vmem:[%s4084 + $0x178] sm:$0xf]
    %v4180 = vld [vmem:[%s4084 + $0x17c] sm:$0xf]
    %v4181 = vld [vmem:[%s4084 + $0x180] sm:$0xf]
    %v4182 = vld [vmem:[%s4084 + $0x184] sm:$0xf]
    %v4183 = vld [vmem:[%s4084 + $0x188] sm:$0xf]
    %v4184 = vld [vmem:[%s4084 + $0x18c] sm:$0xf]
    %v4185 = vld [vmem:[%s4084 + $0x190] sm:$0xf]
    %v4186 = vld [vmem:[%s4084 + $0x194] sm:$0xf]
    %v4187 = vld [vmem:[%s4084 + $0x198] sm:$0xf]
    %v4188 = vld [vmem:[%s4084 + $0x19c] sm:$0xf]
    %v4189 = vld [vmem:[%s4084 + $0x1a0] sm:$0xf]
    %v4190 = vld [vmem:[%s4084 + $0x1a4] sm:$0xf]
    %v4191 = vld [vmem:[%s4084 + $0x1a8] sm:$0xf]
    %v4192 = vld [vmem:[%s4084 + $0x1ac] sm:$0xf]
    %v4193 = vld [vmem:[%s4084 + $0x1b0] sm:$0xf]
    %v4194 = vld [vmem:[%s4084 + $0x1b4] sm:$0xf]
    %v4195 = vld [vmem:[%s4084 + $0x1b8] sm:$0xf]
    %v4196 = vld [vmem:[%s4084 + $0x1bc] sm:$0xf]
    %v4197 = vld [vmem:[%s4084 + $0x1c0] sm:$0xf]
    %v4198 = vld [vmem:[%s4084 + $0x1c4] sm:$0xf]
    %v4199 = vld [vmem:[%s4084 + $0x1c8] sm:$0xf]
    %v4200 = vld [vmem:[%s4084 + $0x1cc] sm:$0xf]
    %v4201 = vld [vmem:[%s4084 + $0x1d0] sm:$0xf]
    %v4202 = vld [vmem:[%s4084 + $0x1d4] sm:$0xf]
    %v4203 = vld [vmem:[%s4084 + $0x1d8] sm:$0xf]
    %v4204 = vld [vmem:[%s4084 + $0x1dc] sm:$0xf]
    %v4205 = vld [vmem:[%s4084 + $0x1e0] sm:$0xf]
    %v4206 = vld [vmem:[%s4084 + $0x1e4] sm:$0xf]
    %v4207 = vld [vmem:[%s4084 + $0x1e8] sm:$0xf]
    %v4208 = vld [vmem:[%s4084 + $0x1ec] sm:$0xf]
    %v4209 = vld [vmem:[%s4084 + $0x1f0] sm:$0xf]
    %v4210 = vld [vmem:[%s4084 + $0x1f4] sm:$0xf]
    %v4211 = vld [vmem:[%s4084 + $0x1f8] sm:$0xf]
    %v4212 = vld [vmem:[%s4084 + $0x1fc] sm:$0xf]
    %v4213 = vld [vmem:[%s4084 + $0x200] sm:$0xf]
    %v4214 = vld [vmem:[%s4084 + $0x204] sm:$0xf]
    %v4215 = vld [vmem:[%s4084 + $0x208] sm:$0xf]
    %v4216 = vld [vmem:[%s4084 + $0x20c] sm:$0xf]
    %v4217 = vld [vmem:[%s4084 + $0x210] sm:$0xf]
    %v4218 = vld [vmem:[%s4084 + $0x214] sm:$0xf]
    %v4219 = vld [vmem:[%s4084 + $0x218] sm:$0xf]
    %v4220 = vld [vmem:[%s4084 + $0x21c] sm:$0xf]
    %v4221 = vld [vmem:[%s4084 + $0x220] sm:$0xf]
    %v4222 = vld [vmem:[%s4084 + $0x224] sm:$0xf]
    %v4223 = vld [vmem:[%s4084 + $0x228] sm:$0xf]
    %v4224 = vld [vmem:[%s4084 + $0x22c] sm:$0xf]
    %v4225 = vld [vmem:[%s4084 + $0x230] sm:$0xf]
    %v4226 = vld [vmem:[%s4084 + $0x234] sm:$0xf]
    %v4227 = vld [vmem:[%s4084 + $0x238] sm:$0xf]
    %v4228 = vld [vmem:[%s4084 + $0x23c] sm:$0xf]
    %v4229 = vld [vmem:[%s4084 + $0x240] sm:$0xf]
    %v4230 = vld [vmem:[%s4084 + $0x244] sm:$0xf]
    %v4231 = vld [vmem:[%s4084 + $0x248] sm:$0xf]
    %v4232 = vld [vmem:[%s4084 + $0x24c] sm:$0xf]
    %v4233 = vld [vmem:[%s4084 + $0x250] sm:$0xf]
    %v4234 = vld [vmem:[%s4084 + $0x254] sm:$0xf]
    %v4235 = vld [vmem:[%s4084 + $0x258] sm:$0xf]
    %v4236 = vld [vmem:[%s4084 + $0x25c] sm:$0xf]
    %v4237 = vld [vmem:[%s4084 + $0x260] sm:$0xf]
    %v4238 = vld [vmem:[%s4084 + $0x264] sm:$0xf]
    %v4239 = vld [vmem:[%s4084 + $0x268] sm:$0xf]
    %v4240 = vld [vmem:[%s4084 + $0x26c] sm:$0xf]
    %v4241 = vld [vmem:[%s4084 + $0x270] sm:$0xf]
    %v4242 = vld [vmem:[%s4084 + $0x274] sm:$0xf]
    %v4243 = vld [vmem:[%s4084 + $0x278] sm:$0xf]
    %v4244 = vld [vmem:[%s4084 + $0x27c] sm:$0xf]
    %v4245 = vld [vmem:[%s4084 + $0x280] sm:$0xf]
    %v4246 = vld [vmem:[%s4084 + $0x284] sm:$0xf]
    %v4247 = vld [vmem:[%s4084 + $0x288] sm:$0xf]
    %v4248 = vld [vmem:[%s4084 + $0x28c] sm:$0xf]
    %v4249 = vld [vmem:[%s4084 + $0x290] sm:$0xf]
    %v4250 = vld [vmem:[%s4084 + $0x294] sm:$0xf]
    %v4251 = vld [vmem:[%s4084 + $0x298] sm:$0xf]
    %v4252 = vld [vmem:[%s4084 + $0x29c] sm:$0xf]
    %v4253 = vld [vmem:[%s4084 + $0x2a0] sm:$0xf]
    %v4254 = vld [vmem:[%s4084 + $0x2a4] sm:$0xf]
    %v4255 = vld [vmem:[%s4084 + $0x2a8] sm:$0xf]
    %v4256 = vld [vmem:[%s4084 + $0x2ac] sm:$0xf]
    %v4257 = vld [vmem:[%s4084 + $0x2b0] sm:$0xf]
    %v4258 = vld [vmem:[%s4084 + $0x2b4] sm:$0xf]
    %v4259 = vld [vmem:[%s4084 + $0x2b8] sm:$0xf]
    %v4260 = vld [vmem:[%s4084 + $0x2bc] sm:$0xf]
    %v4261 = vld [vmem:[%s4084 + $0x2c0] sm:$0xf]
    %v4262 = vld [vmem:[%s4084 + $0x2c4] sm:$0xf]
    %v4263 = vld [vmem:[%s4084 + $0x2c8] sm:$0xf]
    %v4264 = vld [vmem:[%s4084 + $0x2cc] sm:$0xf]
    %v4265 = vld [vmem:[%s4084 + $0x2d0] sm:$0xf]
    %v4266 = vld [vmem:[%s4084 + $0x2d4] sm:$0xf]
    %v4267 = vld [vmem:[%s4084 + $0x2d8] sm:$0xf]
    %v4268 = vld [vmem:[%s4084 + $0x2dc] sm:$0xf]
    %v4269 = vld [vmem:[%s4084 + $0x2e0] sm:$0xf]
    %v4270 = vld [vmem:[%s4084 + $0x2e4] sm:$0xf]
    %v4271 = vld [vmem:[%s4084 + $0x2e8] sm:$0xf]
    %v4272 = vld [vmem:[%s4084 + $0x2ec] sm:$0xf]
    %v4273 = vld [vmem:[%s4084 + $0x2f0] sm:$0xf]
    %v4274 = vld [vmem:[%s4084 + $0x2f4] sm:$0xf]
    %v4275 = vld [vmem:[%s4084 + $0x2f8] sm:$0xf]
    %v4276 = vld [vmem:[%s4084 + $0x2fc] sm:$0xf]
    %v4277 = vld [vmem:[%s4084 + $0x300] sm:$0xf]
    %v4278 = vld [vmem:[%s4084 + $0x304] sm:$0xf]
    %v4279 = vld [vmem:[%s4084 + $0x308] sm:$0xf]
    %v4280 = vld [vmem:[%s4084 + $0x30c] sm:$0xf]
    %v4281 = vld [vmem:[%s4084 + $0x310] sm:$0xf]
    %v4282 = vld [vmem:[%s4084 + $0x314] sm:$0xf]
    %v4283 = vld [vmem:[%s4084 + $0x318] sm:$0xf]
    %v4284 = vld [vmem:[%s4084 + $0x31c] sm:$0xf]
    %v4285 = vld [vmem:[%s4084 + $0x320] sm:$0xf]
    %v4286 = vld [vmem:[%s4084 + $0x324] sm:$0xf]
    %v4287 = vld [vmem:[%s4084 + $0x328] sm:$0xf]
    %v4288 = vld [vmem:[%s4084 + $0x32c] sm:$0xf]
    %v4289 = vld [vmem:[%s4084 + $0x330] sm:$0xf]
    %v4290 = vld [vmem:[%s4084 + $0x334] sm:$0xf]
    %v4291 = vld [vmem:[%s4084 + $0x338] sm:$0xf]
    %v4292 = vld [vmem:[%s4084 + $0x33c] sm:$0xf]
    %v4293 = vld [vmem:[%s4084 + $0x340] sm:$0xf]
    %v4294 = vld [vmem:[%s4084 + $0x344] sm:$0xf]
    %v4295 = vld [vmem:[%s4084 + $0x348] sm:$0xf]
    %v4296 = vld [vmem:[%s4084 + $0x34c] sm:$0xf]
    %v4297 = vld [vmem:[%s4084 + $0x350] sm:$0xf]
    %v4298 = vld [vmem:[%s4084 + $0x354] sm:$0xf]
    %v4299 = vld [vmem:[%s4084 + $0x358] sm:$0xf]
    %v4300 = vld [vmem:[%s4084 + $0x35c] sm:$0xf]
    %v4301 = vld [vmem:[%s4084 + $0x360] sm:$0xf]
    %v4302 = vld [vmem:[%s4084 + $0x364] sm:$0xf]
    %v4303 = vld [vmem:[%s4084 + $0x368] sm:$0xf]
    %v4304 = vld [vmem:[%s4084 + $0x36c] sm:$0xf]
    %v4305 = vld [vmem:[%s4084 + $0x370] sm:$0xf]
    %v4306 = vld [vmem:[%s4084 + $0x374] sm:$0xf]
    %v4307 = vld [vmem:[%s4084 + $0x378] sm:$0xf]
    %v4308 = vld [vmem:[%s4084 + $0x37c] sm:$0xf]
    %v4309 = vld [vmem:[%s4084 + $0x380] sm:$0xf]
    %v4310 = vld [vmem:[%s4084 + $0x384] sm:$0xf]
    %v4311 = vld [vmem:[%s4084 + $0x388] sm:$0xf]
    %v4312 = vld [vmem:[%s4084 + $0x38c] sm:$0xf]
    %v4313 = vld [vmem:[%s4084 + $0x390] sm:$0xf]
    %v4314 = vld [vmem:[%s4084 + $0x394] sm:$0xf]
    %v4315 = vld [vmem:[%s4084 + $0x398] sm:$0xf]
    %v4316 = vld [vmem:[%s4084 + $0x39c] sm:$0xf]
    %v4317 = vld [vmem:[%s4084 + $0x3a0] sm:$0xf]
    %v4318 = vld [vmem:[%s4084 + $0x3a4] sm:$0xf]
    %v4319 = vld [vmem:[%s4084 + $0x3a8] sm:$0xf]
    %v4320 = vld [vmem:[%s4084 + $0x3ac] sm:$0xf]
    %v4321 = vld [vmem:[%s4084 + $0x3b0] sm:$0xf]
    %v4322 = vld [vmem:[%s4084 + $0x3b4] sm:$0xf]
    %v4323 = vld [vmem:[%s4084 + $0x3b8] sm:$0xf]
    %v4324 = vld [vmem:[%s4084 + $0x3bc] sm:$0xf]
    %v4325 = vld [vmem:[%s4084 + $0x3c0] sm:$0xf]
    %v4326 = vld [vmem:[%s4084 + $0x3c4] sm:$0xf]
    %v4327 = vld [vmem:[%s4084 + $0x3c8] sm:$0xf]
    %v4328 = vld [vmem:[%s4084 + $0x3cc] sm:$0xf]
    %v4329 = vld [vmem:[%s4084 + $0x3d0] sm:$0xf]
    %v4330 = vld [vmem:[%s4084 + $0x3d4] sm:$0xf]
    %v4331 = vld [vmem:[%s4084 + $0x3d8] sm:$0xf]
    %v4332 = vld [vmem:[%s4084 + $0x3dc] sm:$0xf]
    %v4333 = vld [vmem:[%s4084 + $0x3e0] sm:$0xf]
    %v4334 = vld [vmem:[%s4084 + $0x3e4] sm:$0xf]
    %v4335 = vld [vmem:[%s4084 + $0x3e8] sm:$0xf]
    %v4336 = vld [vmem:[%s4084 + $0x3ec] sm:$0xf]
    %v4337 = vld [vmem:[%s4084 + $0x3f0] sm:$0xf]
    %v4338 = vld [vmem:[%s4084 + $0x3f4] sm:$0xf]
    %v4339 = vld [vmem:[%s4084 + $0x3f8] sm:$0xf]
    %v4340 = vld [vmem:[%s4084 + $0x3fc] sm:$0xf]
    %s4341 = scalar_lea.vmem %s11, 1
    %v4342 = vld [vmem:[%s4341] sm:$0x1]
    %v4344 = vlaneseq
    %v4345 = vshrl.u32 %v4344, 7
    %v4346 = vsub.s32 0, %v4345
    %v4347 = vrot.slane %v4342, %v4346
    %v4605 = vunpack.c.l.b16 %v4085
    %v4606 = vunpack.c.l.b16 %v4086
    %v4607 = vunpack.c.l.b16 %v4087
    %v4608 = vunpack.c.l.b16 %v4088
    %v4609 = vunpack.c.l.b16 %v4089
    %v4610 = vunpack.c.l.b16 %v4090
    %v4611 = vunpack.c.l.b16 %v4091
    %v4612 = vunpack.c.l.b16 %v4092
    %v4613 = vunpack.c.l.b16 %v4093
    %v4614 = vunpack.c.l.b16 %v4094
    %v4615 = vunpack.c.l.b16 %v4095
    %v4616 = vunpack.c.l.b16 %v4096
    %v4617 = vunpack.c.l.b16 %v4097
    %v4618 = vunpack.c.l.b16 %v4098
    %v4619 = vunpack.c.l.b16 %v4099
    %v4620 = vunpack.c.l.b16 %v4100
    %v4621 = vunpack.c.l.b16 %v4101
    %v4622 = vunpack.c.l.b16 %v4102
    %v4623 = vunpack.c.l.b16 %v4103
    %v4624 = vunpack.c.l.b16 %v4104
    %v4625 = vunpack.c.l.b16 %v4105
    %v4626 = vunpack.c.l.b16 %v4106
    %v4627 = vunpack.c.l.b16 %v4107
    %v4628 = vunpack.c.l.b16 %v4108
    %v4629 = vunpack.c.l.b16 %v4109
    %v4630 = vunpack.c.l.b16 %v4110
    %v4631 = vunpack.c.l.b16 %v4111
    %v4632 = vunpack.c.l.b16 %v4112
    %v4633 = vunpack.c.l.b16 %v4113
    %v4634 = vunpack.c.l.b16 %v4114
    %v4635 = vunpack.c.l.b16 %v4115
    %v4636 = vunpack.c.l.b16 %v4116
    %v4637 = vunpack.c.l.b16 %v4117
    %v4638 = vunpack.c.l.b16 %v4118
    %v4639 = vunpack.c.l.b16 %v4119
    %v4640 = vunpack.c.l.b16 %v4120
    %v4641 = vunpack.c.l.b16 %v4121
    %v4642 = vunpack.c.l.b16 %v4122
    %v4643 = vunpack.c.l.b16 %v4123
    %v4644 = vunpack.c.l.b16 %v4124
    %v4645 = vunpack.c.l.b16 %v4125
    %v4646 = vunpack.c.l.b16 %v4126
    %v4647 = vunpack.c.l.b16 %v4127
    %v4648 = vunpack.c.l.b16 %v4128
    %v4649 = vunpack.c.l.b16 %v4129
    %v4650 = vunpack.c.l.b16 %v4130
    %v4651 = vunpack.c.l.b16 %v4131
    %v4652 = vunpack.c.l.b16 %v4132
    %v4653 = vunpack.c.l.b16 %v4133
    %v4654 = vunpack.c.l.b16 %v4134
    %v4655 = vunpack.c.l.b16 %v4135
    %v4656 = vunpack.c.l.b16 %v4136
    %v4657 = vunpack.c.l.b16 %v4137
    %v4658 = vunpack.c.l.b16 %v4138
    %v4659 = vunpack.c.l.b16 %v4139
    %v4660 = vunpack.c.l.b16 %v4140
    %v4661 = vunpack.c.l.b16 %v4141
    %v4662 = vunpack.c.l.b16 %v4142
    %v4663 = vunpack.c.l.b16 %v4143
    %v4664 = vunpack.c.l.b16 %v4144
    %v4665 = vunpack.c.l.b16 %v4145
    %v4666 = vunpack.c.l.b16 %v4146
    %v4667 = vunpack.c.l.b16 %v4147
    %v4668 = vunpack.c.l.b16 %v4148
    %v4669 = vunpack.c.l.b16 %v4149
    %v4670 = vunpack.c.l.b16 %v4150
    %v4671 = vunpack.c.l.b16 %v4151
    %v4672 = vunpack.c.l.b16 %v4152
    %v4673 = vunpack.c.l.b16 %v4153
    %v4674 = vunpack.c.l.b16 %v4154
    %v4675 = vunpack.c.l.b16 %v4155
    %v4676 = vunpack.c.l.b16 %v4156
    %v4677 = vunpack.c.l.b16 %v4157
    %v4678 = vunpack.c.l.b16 %v4158
    %v4679 = vunpack.c.l.b16 %v4159
    %v4680 = vunpack.c.l.b16 %v4160
    %v4681 = vunpack.c.l.b16 %v4161
    %v4682 = vunpack.c.l.b16 %v4162
    %v4683 = vunpack.c.l.b16 %v4163
    %v4684 = vunpack.c.l.b16 %v4164
    %v4685 = vunpack.c.l.b16 %v4165
    %v4686 = vunpack.c.l.b16 %v4166
    %v4687 = vunpack.c.l.b16 %v4167
    %v4688 = vunpack.c.l.b16 %v4168
    %v4689 = vunpack.c.l.b16 %v4169
    %v4690 = vunpack.c.l.b16 %v4170
    %v4691 = vunpack.c.l.b16 %v4171
    %v4692 = vunpack.c.l.b16 %v4172
    %v4693 = vunpack.c.l.b16 %v4173
    %v4694 = vunpack.c.l.b16 %v4174
    %v4695 = vunpack.c.l.b16 %v4175
    %v4696 = vunpack.c.l.b16 %v4176
    %v4697 = vunpack.c.l.b16 %v4177
    %v4698 = vunpack.c.l.b16 %v4178
    %v4699 = vunpack.c.l.b16 %v4179
    %v4700 = vunpack.c.l.b16 %v4180
    %v4701 = vunpack.c.l.b16 %v4181
    %v4702 = vunpack.c.l.b16 %v4182
    %v4703 = vunpack.c.l.b16 %v4183
    %v4704 = vunpack.c.l.b16 %v4184
    %v4705 = vunpack.c.l.b16 %v4185
    %v4706 = vunpack.c.l.b16 %v4186
    %v4707 = vunpack.c.l.b16 %v4187
    %v4708 = vunpack.c.l.b16 %v4188
    %v4709 = vunpack.c.l.b16 %v4189
    %v4710 = vunpack.c.l.b16 %v4190
    %v4711 = vunpack.c.l.b16 %v4191
    %v4712 = vunpack.c.l.b16 %v4192
    %v4713 = vunpack.c.l.b16 %v4193
    %v4714 = vunpack.c.l.b16 %v4194
    %v4715 = vunpack.c.l.b16 %v4195
    %v4716 = vunpack.c.l.b16 %v4196
    %v4717 = vunpack.c.l.b16 %v4197
    %v4718 = vunpack.c.l.b16 %v4198
    %v4719 = vunpack.c.l.b16 %v4199
    %v4720 = vunpack.c.l.b16 %v4200
    %v4721 = vunpack.c.l.b16 %v4201
    %v4722 = vunpack.c.l.b16 %v4202
    %v4723 = vunpack.c.l.b16 %v4203
    %v4724 = vunpack.c.l.b16 %v4204
    %v4725 = vunpack.c.l.b16 %v4205
    %v4726 = vunpack.c.l.b16 %v4206
    %v4727 = vunpack.c.l.b16 %v4207
    %v4728 = vunpack.c.l.b16 %v4208
    %v4729 = vunpack.c.l.b16 %v4209
    %v4730 = vunpack.c.l.b16 %v4210
    %v4731 = vunpack.c.l.b16 %v4211
    %v4732 = vunpack.c.l.b16 %v4212
    %v4733 = vunpack.c.l.b16 %v4213
    %v4734 = vunpack.c.l.b16 %v4214
    %v4735 = vunpack.c.l.b16 %v4215
    %v4736 = vunpack.c.l.b16 %v4216
    %v4737 = vunpack.c.l.b16 %v4217
    %v4738 = vunpack.c.l.b16 %v4218
    %v4739 = vunpack.c.l.b16 %v4219
    %v4740 = vunpack.c.l.b16 %v4220
    %v4741 = vunpack.c.l.b16 %v4221
    %v4742 = vunpack.c.l.b16 %v4222
    %v4743 = vunpack.c.l.b16 %v4223
    %v4744 = vunpack.c.l.b16 %v4224
    %v4745 = vunpack.c.l.b16 %v4225
    %v4746 = vunpack.c.l.b16 %v4226
    %v4747 = vunpack.c.l.b16 %v4227
    %v4748 = vunpack.c.l.b16 %v4228
    %v4749 = vunpack.c.l.b16 %v4229
    %v4750 = vunpack.c.l.b16 %v4230
    %v4751 = vunpack.c.l.b16 %v4231
    %v4752 = vunpack.c.l.b16 %v4232
    %v4753 = vunpack.c.l.b16 %v4233
    %v4754 = vunpack.c.l.b16 %v4234
    %v4755 = vunpack.c.l.b16 %v4235
    %v4756 = vunpack.c.l.b16 %v4236
    %v4757 = vunpack.c.l.b16 %v4237
    %v4758 = vunpack.c.l.b16 %v4238
    %v4759 = vunpack.c.l.b16 %v4239
    %v4760 = vunpack.c.l.b16 %v4240
    %v4761 = vunpack.c.l.b16 %v4241
    %v4762 = vunpack.c.l.b16 %v4242
    %v4763 = vunpack.c.l.b16 %v4243
    %v4764 = vunpack.c.l.b16 %v4244
    %v4765 = vunpack.c.l.b16 %v4245
    %v4766 = vunpack.c.l.b16 %v4246
    %v4767 = vunpack.c.l.b16 %v4247
    %v4768 = vunpack.c.l.b16 %v4248
    %v4769 = vunpack.c.l.b16 %v4249
    %v4770 = vunpack.c.l.b16 %v4250
    %v4771 = vunpack.c.l.b16 %v4251
    %v4772 = vunpack.c.l.b16 %v4252
    %v4773 = vunpack.c.l.b16 %v4253
    %v4774 = vunpack.c.l.b16 %v4254
    %v4775 = vunpack.c.l.b16 %v4255
    %v4776 = vunpack.c.l.b16 %v4256
    %v4777 = vunpack.c.l.b16 %v4257
    %v4778 = vunpack.c.l.b16 %v4258
    %v4779 = vunpack.c.l.b16 %v4259
    %v4780 = vunpack.c.l.b16 %v4260
    %v4781 = vunpack.c.l.b16 %v4261
    %v4782 = vunpack.c.l.b16 %v4262
    %v4783 = vunpack.c.l.b16 %v4263
    %v4784 = vunpack.c.l.b16 %v4264
    %v4785 = vunpack.c.l.b16 %v4265
    %v4786 = vunpack.c.l.b16 %v4266
    %v4787 = vunpack.c.l.b16 %v4267
    %v4788 = vunpack.c.l.b16 %v4268
    %v4789 = vunpack.c.l.b16 %v4269
    %v4790 = vunpack.c.l.b16 %v4270
    %v4791 = vunpack.c.l.b16 %v4271
    %v4792 = vunpack.c.l.b16 %v4272
    %v4793 = vunpack.c.l.b16 %v4273
    %v4794 = vunpack.c.l.b16 %v4274
    %v4795 = vunpack.c.l.b16 %v4275
    %v4796 = vunpack.c.l.b16 %v4276
    %v4797 = vunpack.c.l.b16 %v4277
    %v4798 = vunpack.c.l.b16 %v4278
    %v4799 = vunpack.c.l.b16 %v4279
    %v4800 = vunpack.c.l.b16 %v4280
    %v4801 = vunpack.c.l.b16 %v4281
    %v4802 = vunpack.c.l.b16 %v4282
    %v4803 = vunpack.c.l.b16 %v4283
    %v4804 = vunpack.c.l.b16 %v4284
    %v4805 = vunpack.c.l.b16 %v4285
    %v4806 = vunpack.c.l.b16 %v4286
    %v4807 = vunpack.c.l.b16 %v4287
    %v4808 = vunpack.c.l.b16 %v4288
    %v4809 = vunpack.c.l.b16 %v4289
    %v4810 = vunpack.c.l.b16 %v4290
    %v4811 = vunpack.c.l.b16 %v4291
    %v4812 = vunpack.c.l.b16 %v4292
    %v4813 = vunpack.c.l.b16 %v4293
    %v4814 = vunpack.c.l.b16 %v4294
    %v4815 = vunpack.c.l.b16 %v4295
    %v4816 = vunpack.c.l.b16 %v4296
    %v4817 = vunpack.c.l.b16 %v4297
    %v4818 = vunpack.c.l.b16 %v4298
    %v4819 = vunpack.c.l.b16 %v4299
    %v4820 = vunpack.c.l.b16 %v4300
    %v4821 = vunpack.c.l.b16 %v4301
    %v4822 = vunpack.c.l.b16 %v4302
    %v4823 = vunpack.c.l.b16 %v4303
    %v4824 = vunpack.c.l.b16 %v4304
    %v4825 = vunpack.c.l.b16 %v4305
    %v4826 = vunpack.c.l.b16 %v4306
    %v4827 = vunpack.c.l.b16 %v4307
    %v4828 = vunpack.c.l.b16 %v4308
    %v4829 = vunpack.c.l.b16 %v4309
    %v4830 = vunpack.c.l.b16 %v4310
    %v4831 = vunpack.c.l.b16 %v4311
    %v4832 = vunpack.c.l.b16 %v4312
    %v4833 = vunpack.c.l.b16 %v4313
    %v4834 = vunpack.c.l.b16 %v4314
    %v4835 = vunpack.c.l.b16 %v4315
    %v4836 = vunpack.c.l.b16 %v4316
    %v4837 = vunpack.c.l.b16 %v4317
    %v4838 = vunpack.c.l.b16 %v4318
    %v4839 = vunpack.c.l.b16 %v4319
    %v4840 = vunpack.c.l.b16 %v4320
    %v4841 = vunpack.c.l.b16 %v4321
    %v4842 = vunpack.c.l.b16 %v4322
    %v4843 = vunpack.c.l.b16 %v4323
    %v4844 = vunpack.c.l.b16 %v4324
    %v4845 = vunpack.c.l.b16 %v4325
    %v4846 = vunpack.c.l.b16 %v4326
    %v4847 = vunpack.c.l.b16 %v4327
    %v4848 = vunpack.c.l.b16 %v4328
    %v4849 = vunpack.c.l.b16 %v4329
    %v4850 = vunpack.c.l.b16 %v4330
    %v4851 = vunpack.c.l.b16 %v4331
    %v4852 = vunpack.c.l.b16 %v4332
    %v4853 = vunpack.c.l.b16 %v4333
    %v4854 = vunpack.c.l.b16 %v4334
    %v4855 = vunpack.c.l.b16 %v4335
    %v4856 = vunpack.c.l.b16 %v4336
    %v4857 = vunpack.c.l.b16 %v4337
    %v4858 = vunpack.c.l.b16 %v4338
    %v4859 = vunpack.c.l.b16 %v4339
    %v4860 = vunpack.c.l.b16 %v4340
    %v4861 = vpack.c.b16 %v4606, %v4605
    %v4862 = vpack.c.b16 %v4608, %v4607
    %v4863 = vpack.c.b16 %v4610, %v4609
    %v4864 = vpack.c.b16 %v4612, %v4611
    %v4865 = vpack.c.b16 %v4614, %v4613
    %v4866 = vpack.c.b16 %v4616, %v4615
    %v4867 = vpack.c.b16 %v4618, %v4617
    %v4868 = vpack.c.b16 %v4620, %v4619
    %v4869 = vpack.c.b16 %v4622, %v4621
    %v4870 = vpack.c.b16 %v4624, %v4623
    %v4871 = vpack.c.b16 %v4626, %v4625
    %v4872 = vpack.c.b16 %v4628, %v4627
    %v4873 = vpack.c.b16 %v4630, %v4629
    %v4874 = vpack.c.b16 %v4632, %v4631
    %v4875 = vpack.c.b16 %v4634, %v4633
    %v4876 = vpack.c.b16 %v4636, %v4635
    %v4877 = vpack.c.b16 %v4638, %v4637
    %v4878 = vpack.c.b16 %v4640, %v4639
    %v4879 = vpack.c.b16 %v4642, %v4641
    %v4880 = vpack.c.b16 %v4644, %v4643
    %v4881 = vpack.c.b16 %v4646, %v4645
    %v4882 = vpack.c.b16 %v4648, %v4647
    %v4883 = vpack.c.b16 %v4650, %v4649
    %v4884 = vpack.c.b16 %v4652, %v4651
    %v4885 = vpack.c.b16 %v4654, %v4653
    %v4886 = vpack.c.b16 %v4656, %v4655
    %v4887 = vpack.c.b16 %v4658, %v4657
    %v4888 = vpack.c.b16 %v4660, %v4659
    %v4889 = vpack.c.b16 %v4662, %v4661
    %v4890 = vpack.c.b16 %v4664, %v4663
    %v4891 = vpack.c.b16 %v4666, %v4665
    %v4892 = vpack.c.b16 %v4668, %v4667
    %v4893 = vpack.c.b16 %v4670, %v4669
    %v4894 = vpack.c.b16 %v4672, %v4671
    %v4895 = vpack.c.b16 %v4674, %v4673
    %v4896 = vpack.c.b16 %v4676, %v4675
    %v4897 = vpack.c.b16 %v4678, %v4677
    %v4898 = vpack.c.b16 %v4680, %v4679
    %v4899 = vpack.c.b16 %v4682, %v4681
    %v4900 = vpack.c.b16 %v4684, %v4683
    %v4901 = vpack.c.b16 %v4686, %v4685
    %v4902 = vpack.c.b16 %v4688, %v4687
    %v4903 = vpack.c.b16 %v4690, %v4689
    %v4904 = vpack.c.b16 %v4692, %v4691
    %v4905 = vpack.c.b16 %v4694, %v4693
    %v4906 = vpack.c.b16 %v4696, %v4695
    %v4907 = vpack.c.b16 %v4698, %v4697
    %v4908 = vpack.c.b16 %v4700, %v4699
    %v4909 = vpack.c.b16 %v4702, %v4701
    %v4910 = vpack.c.b16 %v4704, %v4703
    %v4911 = vpack.c.b16 %v4706, %v4705
    %v4912 = vpack.c.b16 %v4708, %v4707
    %v4913 = vpack.c.b16 %v4710, %v4709
    %v4914 = vpack.c.b16 %v4712, %v4711
    %v4915 = vpack.c.b16 %v4714, %v4713
    %v4916 = vpack.c.b16 %v4716, %v4715
    %v4917 = vpack.c.b16 %v4718, %v4717
    %v4918 = vpack.c.b16 %v4720, %v4719
    %v4919 = vpack.c.b16 %v4722, %v4721
    %v4920 = vpack.c.b16 %v4724, %v4723
    %v4921 = vpack.c.b16 %v4726, %v4725
    %v4922 = vpack.c.b16 %v4728, %v4727
    %v4923 = vpack.c.b16 %v4730, %v4729
    %v4924 = vpack.c.b16 %v4732, %v4731
    %v4925 = vpack.c.b16 %v4734, %v4733
    %v4926 = vpack.c.b16 %v4736, %v4735
    %v4927 = vpack.c.b16 %v4738, %v4737
    %v4928 = vpack.c.b16 %v4740, %v4739
    %v4929 = vpack.c.b16 %v4742, %v4741
    %v4930 = vpack.c.b16 %v4744, %v4743
    %v4931 = vpack.c.b16 %v4746, %v4745
    %v4932 = vpack.c.b16 %v4748, %v4747
    %v4933 = vpack.c.b16 %v4750, %v4749
    %v4934 = vpack.c.b16 %v4752, %v4751
    %v4935 = vpack.c.b16 %v4754, %v4753
    %v4936 = vpack.c.b16 %v4756, %v4755
    %v4937 = vpack.c.b16 %v4758, %v4757
    %v4938 = vpack.c.b16 %v4760, %v4759
    %v4939 = vpack.c.b16 %v4762, %v4761
    %v4940 = vpack.c.b16 %v4764, %v4763
    %v4941 = vpack.c.b16 %v4766, %v4765
    %v4942 = vpack.c.b16 %v4768, %v4767
    %v4943 = vpack.c.b16 %v4770, %v4769
    %v4944 = vpack.c.b16 %v4772, %v4771
    %v4945 = vpack.c.b16 %v4774, %v4773
    %v4946 = vpack.c.b16 %v4776, %v4775
    %v4947 = vpack.c.b16 %v4778, %v4777
    %v4948 = vpack.c.b16 %v4780, %v4779
    %v4949 = vpack.c.b16 %v4782, %v4781
    %v4950 = vpack.c.b16 %v4784, %v4783
    %v4951 = vpack.c.b16 %v4786, %v4785
    %v4952 = vpack.c.b16 %v4788, %v4787
    %v4953 = vpack.c.b16 %v4790, %v4789
    %v4954 = vpack.c.b16 %v4792, %v4791
    %v4955 = vpack.c.b16 %v4794, %v4793
    %v4956 = vpack.c.b16 %v4796, %v4795
    %v4957 = vpack.c.b16 %v4798, %v4797
    %v4958 = vpack.c.b16 %v4800, %v4799
    %v4959 = vpack.c.b16 %v4802, %v4801
    %v4960 = vpack.c.b16 %v4804, %v4803
    %v4961 = vpack.c.b16 %v4806, %v4805
    %v4962 = vpack.c.b16 %v4808, %v4807
    %v4963 = vpack.c.b16 %v4810, %v4809
    %v4964 = vpack.c.b16 %v4812, %v4811
    %v4965 = vpack.c.b16 %v4814, %v4813
    %v4966 = vpack.c.b16 %v4816, %v4815
    %v4967 = vpack.c.b16 %v4818, %v4817
    %v4968 = vpack.c.b16 %v4820, %v4819
    %v4969 = vpack.c.b16 %v4822, %v4821
    %v4970 = vpack.c.b16 %v4824, %v4823
    %v4971 = vpack.c.b16 %v4826, %v4825
    %v4972 = vpack.c.b16 %v4828, %v4827
    %v4973 = vpack.c.b16 %v4830, %v4829
    %v4974 = vpack.c.b16 %v4832, %v4831
    %v4975 = vpack.c.b16 %v4834, %v4833
    %v4976 = vpack.c.b16 %v4836, %v4835
    %v4977 = vpack.c.b16 %v4838, %v4837
    %v4978 = vpack.c.b16 %v4840, %v4839
    %v4979 = vpack.c.b16 %v4842, %v4841
    %v4980 = vpack.c.b16 %v4844, %v4843
    %v4981 = vpack.c.b16 %v4846, %v4845
    %v4982 = vpack.c.b16 %v4848, %v4847
    %v4983 = vpack.c.b16 %v4850, %v4849
    %v4984 = vpack.c.b16 %v4852, %v4851
    %v4985 = vpack.c.b16 %v4854, %v4853
    %v4986 = vpack.c.b16 %v4856, %v4855
    %v4987 = vpack.c.b16 %v4858, %v4857
    %v4988 = vpack.c.b16 %v4860, %v4859
    %5117 = vmatprep.subr.bf16.mxu0 0
    %5118 = vmatpush1.bf16.msra.mxu0 %v4868
    %5119 = vmatprep.subr.bf16.mxu0 0
    %5120 = vmatpush1.bf16.msra.mxu0 %v4867
    %5121 = vmatprep.subr.bf16.mxu0 0
    %5122 = vmatpush1.bf16.msra.mxu0 %v4866
    %5123 = vmatprep.subr.bf16.mxu0 0
    %5124 = vmatpush1.bf16.msra.mxu0 %v4865
    %5125 = vmatprep.subr.bf16.mxu0 0
    %5126 = vmatpush1.bf16.msra.mxu0 %v4864
    %5127 = vmatprep.subr.bf16.mxu0 0
    %5128 = vmatpush1.bf16.msra.mxu0 %v4863
    %5129 = vmatprep.subr.bf16.mxu0 0
    %5130 = vmatpush1.bf16.msra.mxu0 %v4862
    %5131 = vmatprep.subr.bf16.mxu0 0
    %5132 = vmatpush1.bf16.msra.mxu0 %v4861
    %5133 = vmatprep.subr.bf16.mxu0 0
    %5134 = vmatpush2.bf16.msra.mxu0 %v4876
    %5135 = vmatprep.subr.bf16.mxu0 0
    %5136 = vmatpush2.bf16.msra.mxu0 %v4875
    %5137 = vmatprep.subr.bf16.mxu0 0
    %5138 = vmatpush2.bf16.msra.mxu0 %v4874
    %5139 = vmatprep.subr.bf16.mxu0 0
    %5140 = vmatpush2.bf16.msra.mxu0 %v4873
    %5141 = vmatprep.subr.bf16.mxu0 0
    %5142 = vmatpush2.bf16.msra.mxu0 %v4872
    %5143 = vmatprep.subr.bf16.mxu0 0
    %5144 = vmatpush2.bf16.msra.mxu0 %v4871
    %5145 = vmatprep.subr.bf16.mxu0 0
    %5146 = vmatpush2.bf16.msra.mxu0 %v4870
    %5147 = vmatprep.subr.bf16.mxu0 0
    %5148 = vmatpush2.bf16.msra.mxu0 %v4869
    %5149 = vmatprep.mubr.bf16.mxu0 %v4069
    %5150 = vmatmul.mubr.bf16.gmra.mxu0 %v4068
    %v5151 = vpop.f32.mrf.mxu0
    %v5152 = vpop.f32.mrf.mxu0
    %v5153 = vpop.f32.mrf.mxu0
    %v5154 = vadd.f32 %v4347, %v5153
    %v5155 = vpop.f32.mrf.mxu0
    %5156 = vdwg.mxu0
    %5157 = vmatprep.subr.bf16.mxu0 0
    %5158 = vmatpush1.bf16.msra.mxu0 %v4884
    %5159 = vmatprep.subr.bf16.mxu0 0
    %5160 = vmatpush1.bf16.msra.mxu0 %v4883
    %5161 = vmatprep.subr.bf16.mxu0 0
    %5162 = vmatpush1.bf16.msra.mxu0 %v4882
    %5163 = vmatprep.subr.bf16.mxu0 0
    %5164 = vmatpush1.bf16.msra.mxu0 %v4881
    %5165 = vmatprep.subr.bf16.mxu0 0
    %5166 = vmatpush1.bf16.msra.mxu0 %v4880
    %5167 = vmatprep.subr.bf16.mxu0 0
    %5168 = vmatpush1.bf16.msra.mxu0 %v4879
    %5169 = vmatprep.subr.bf16.mxu0 0
    %5170 = vmatpush1.bf16.msra.mxu0 %v4878
    %5171 = vmatprep.subr.bf16.mxu0 0
    %5172 = vmatpush1.bf16.msra.mxu0 %v4877
    %5173 = vmatprep.subr.bf16.mxu0 0
    %5174 = vmatpush2.bf16.msra.mxu0 %v4892
    %5175 = vmatprep.subr.bf16.mxu0 0
    %5176 = vmatpush2.bf16.msra.mxu0 %v4891
    %5177 = vmatprep.subr.bf16.mxu0 0
    %5178 = vmatpush2.bf16.msra.mxu0 %v4890
    %5179 = vmatprep.subr.bf16.mxu0 0
    %5180 = vmatpush2.bf16.msra.mxu0 %v4889
    %5181 = vmatprep.subr.bf16.mxu0 0
    %5182 = vmatpush2.bf16.msra.mxu0 %v4888
    %5183 = vmatprep.subr.bf16.mxu0 0
    %5184 = vmatpush2.bf16.msra.mxu0 %v4887
    %5185 = vmatprep.subr.bf16.mxu0 0
    %5186 = vmatpush2.bf16.msra.mxu0 %v4886
    %5187 = vmatprep.subr.bf16.mxu0 0
    %5188 = vmatpush2.bf16.msra.mxu0 %v4885
    %5189 = vmatprep.mubr.bf16.mxu0 %v4071
    %5190 = vmatmul.mubr.bf16.gmra.mxu0 %v4070
    %v5191 = vpop.f32.mrf.mxu0
    %v5192 = vpop.f32.mrf.mxu0
    %v5193 = vpop.f32.mrf.mxu0
    %v5194 = vadd.f32 %v5154, %v5193
    %v5195 = vpop.f32.mrf.mxu0
    %5196 = vdwg.mxu0
    %5197 = vmatprep.subr.bf16.mxu0 0
    %5198 = vmatpush1.bf16.msra.mxu0 %v4900
    %5199 = vmatprep.subr.bf16.mxu0 0
    %5200 = vmatpush1.bf16.msra.mxu0 %v4899
    %5201 = vmatprep.subr.bf16.mxu0 0
    %5202 = vmatpush1.bf16.msra.mxu0 %v4898
    %5203 = vmatprep.subr.bf16.mxu0 0
    %5204 = vmatpush1.bf16.msra.mxu0 %v4897
    %5205 = vmatprep.subr.bf16.mxu0 0
    %5206 = vmatpush1.bf16.msra.mxu0 %v4896
    %5207 = vmatprep.subr.bf16.mxu0 0
    %5208 = vmatpush1.bf16.msra.mxu0 %v4895
    %5209 = vmatprep.subr.bf16.mxu0 0
    %5210 = vmatpush1.bf16.msra.mxu0 %v4894
    %5211 = vmatprep.subr.bf16.mxu0 0
    %5212 = vmatpush1.bf16.msra.mxu0 %v4893
    %5213 = vmatprep.subr.bf16.mxu0 0
    %5214 = vmatpush2.bf16.msra.mxu0 %v4908
    %5215 = vmatprep.subr.bf16.mxu0 0
    %5216 = vmatpush2.bf16.msra.mxu0 %v4907
    %5217 = vmatprep.subr.bf16.mxu0 0
    %5218 = vmatpush2.bf16.msra.mxu0 %v4906
    %5219 = vmatprep.subr.bf16.mxu0 0
    %5220 = vmatpush2.bf16.msra.mxu0 %v4905
    %5221 = vmatprep.subr.bf16.mxu0 0
    %5222 = vmatpush2.bf16.msra.mxu0 %v4904
    %5223 = vmatprep.subr.bf16.mxu0 0
    %5224 = vmatpush2.bf16.msra.mxu0 %v4903
    %5225 = vmatprep.subr.bf16.mxu0 0
    %5226 = vmatpush2.bf16.msra.mxu0 %v4902
    %5227 = vmatprep.subr.bf16.mxu0 0
    %5228 = vmatpush2.bf16.msra.mxu0 %v4901
    %5229 = vmatprep.mubr.bf16.mxu0 %v4073
    %5230 = vmatmul.mubr.bf16.gmra.mxu0 %v4072
    %v5231 = vpop.f32.mrf.mxu0
    %v5232 = vpop.f32.mrf.mxu0
    %v5233 = vpop.f32.mrf.mxu0
    %v5234 = vadd.f32 %v5194, %v5233
    %v5235 = vpop.f32.mrf.mxu0
    %5236 = vdwg.mxu0
    %5237 = vmatprep.subr.bf16.mxu0 0
    %5238 = vmatpush1.bf16.msra.mxu0 %v4916
    %5239 = vmatprep.subr.bf16.mxu0 0
    %5240 = vmatpush1.bf16.msra.mxu0 %v4915
    %5241 = vmatprep.subr.bf16.mxu0 0
    %5242 = vmatpush1.bf16.msra.mxu0 %v4914
    %5243 = vmatprep.subr.bf16.mxu0 0
    %5244 = vmatpush1.bf16.msra.mxu0 %v4913
    %5245 = vmatprep.subr.bf16.mxu0 0
    %5246 = vmatpush1.bf16.msra.mxu0 %v4912
    %5247 = vmatprep.subr.bf16.mxu0 0
    %5248 = vmatpush1.bf16.msra.mxu0 %v4911
    %5249 = vmatprep.subr.bf16.mxu0 0
    %5250 = vmatpush1.bf16.msra.mxu0 %v4910
    %5251 = vmatprep.subr.bf16.mxu0 0
    %5252 = vmatpush1.bf16.msra.mxu0 %v4909
    %5253 = vmatprep.subr.bf16.mxu0 0
    %5254 = vmatpush2.bf16.msra.mxu0 %v4924
    %5255 = vmatprep.subr.bf16.mxu0 0
    %5256 = vmatpush2.bf16.msra.mxu0 %v4923
    %5257 = vmatprep.subr.bf16.mxu0 0
    %5258 = vmatpush2.bf16.msra.mxu0 %v4922
    %5259 = vmatprep.subr.bf16.mxu0 0
    %5260 = vmatpush2.bf16.msra.mxu0 %v4921
    %5261 = vmatprep.subr.bf16.mxu0 0
    %5262 = vmatpush2.bf16.msra.mxu0 %v4920
    %5263 = vmatprep.subr.bf16.mxu0 0
    %5264 = vmatpush2.bf16.msra.mxu0 %v4919
    %5265 = vmatprep.subr.bf16.mxu0 0
    %5266 = vmatpush2.bf16.msra.mxu0 %v4918
    %5267 = vmatprep.subr.bf16.mxu0 0
    %5268 = vmatpush2.bf16.msra.mxu0 %v4917
    %5269 = vmatprep.mubr.bf16.mxu0 %v4075
    %5270 = vmatmul.mubr.bf16.gmra.mxu0 %v4074
    %v5271 = vpop.f32.mrf.mxu0
    %v5272 = vpop.f32.mrf.mxu0
    %v5273 = vpop.f32.mrf.mxu0
    %v5274 = vadd.f32 %v5234, %v5273
    %v5275 = vpop.f32.mrf.mxu0
    %5276 = vdwg.mxu0
    %5277 = vmatprep.subr.bf16.mxu0 0
    %5278 = vmatpush1.bf16.msra.mxu0 %v4932
    %5279 = vmatprep.subr.bf16.mxu0 0
    %5280 = vmatpush1.bf16.msra.mxu0 %v4931
    %5281 = vmatprep.subr.bf16.mxu0 0
    %5282 = vmatpush1.bf16.msra.mxu0 %v4930
    %5283 = vmatprep.subr.bf16.mxu0 0
    %5284 = vmatpush1.bf16.msra.mxu0 %v4929
    %5285 = vmatprep.subr.bf16.mxu0 0
    %5286 = vmatpush1.bf16.msra.mxu0 %v4928
    %5287 = vmatprep.subr.bf16.mxu0 0
    %5288 = vmatpush1.bf16.msra.mxu0 %v4927
    %5289 = vmatprep.subr.bf16.mxu0 0
    %5290 = vmatpush1.bf16.msra.mxu0 %v4926
    %5291 = vmatprep.subr.bf16.mxu0 0
    %5292 = vmatpush1.bf16.msra.mxu0 %v4925
    %5293 = vmatprep.subr.bf16.mxu0 0
    %5294 = vmatpush2.bf16.msra.mxu0 %v4940
    %5295 = vmatprep.subr.bf16.mxu0 0
    %5296 = vmatpush2.bf16.msra.mxu0 %v4939
    %5297 = vmatprep.subr.bf16.mxu0 0
    %5298 = vmatpush2.bf16.msra.mxu0 %v4938
    %5299 = vmatprep.subr.bf16.mxu0 0
    %5300 = vmatpush2.bf16.msra.mxu0 %v4937
    %5301 = vmatprep.subr.bf16.mxu0 0
    %5302 = vmatpush2.bf16.msra.mxu0 %v4936
    %5303 = vmatprep.subr.bf16.mxu0 0
    %5304 = vmatpush2.bf16.msra.mxu0 %v4935
    %5305 = vmatprep.subr.bf16.mxu0 0
    %5306 = vmatpush2.bf16.msra.mxu0 %v4934
    %5307 = vmatprep.subr.bf16.mxu0 0
    %5308 = vmatpush2.bf16.msra.mxu0 %v4933
    %5309 = vmatprep.mubr.bf16.mxu0 %v4077
    %5310 = vmatmul.mubr.bf16.gmra.mxu0 %v4076
    %v5311 = vpop.f32.mrf.mxu0
    %v5312 = vpop.f32.mrf.mxu0
    %v5313 = vpop.f32.mrf.mxu0
    %v5314 = vadd.f32 %v5274, %v5313
    %v5315 = vpop.f32.mrf.mxu0
    %5316 = vdwg.mxu0
    %5317 = vmatprep.subr.bf16.mxu0 0
    %5318 = vmatpush1.bf16.msra.mxu0 %v4948
    %5319 = vmatprep.subr.bf16.mxu0 0
    %5320 = vmatpush1.bf16.msra.mxu0 %v4947
    %5321 = vmatprep.subr.bf16.mxu0 0
    %5322 = vmatpush1.bf16.msra.mxu0 %v4946
    %5323 = vmatprep.subr.bf16.mxu0 0
    %5324 = vmatpush1.bf16.msra.mxu0 %v4945
    %5325 = vmatprep.subr.bf16.mxu0 0
    %5326 = vmatpush1.bf16.msra.mxu0 %v4944
    %5327 = vmatprep.subr.bf16.mxu0 0
    %5328 = vmatpush1.bf16.msra.mxu0 %v4943
    %5329 = vmatprep.subr.bf16.mxu0 0
    %5330 = vmatpush1.bf16.msra.mxu0 %v4942
    %5331 = vmatprep.subr.bf16.mxu0 0
    %5332 = vmatpush1.bf16.msra.mxu0 %v4941
    %5333 = vmatprep.subr.bf16.mxu0 0
    %5334 = vmatpush2.bf16.msra.mxu0 %v4956
    %5335 = vmatprep.subr.bf16.mxu0 0
    %5336 = vmatpush2.bf16.msra.mxu0 %v4955
    %5337 = vmatprep.subr.bf16.mxu0 0
    %5338 = vmatpush2.bf16.msra.mxu0 %v4954
    %5339 = vmatprep.subr.bf16.mxu0 0
    %5340 = vmatpush2.bf16.msra.mxu0 %v4953
    %5341 = vmatprep.subr.bf16.mxu0 0
    %5342 = vmatpush2.bf16.msra.mxu0 %v4952
    %5343 = vmatprep.subr.bf16.mxu0 0
    %5344 = vmatpush2.bf16.msra.mxu0 %v4951
    %5345 = vmatprep.subr.bf16.mxu0 0
    %5346 = vmatpush2.bf16.msra.mxu0 %v4950
    %5347 = vmatprep.subr.bf16.mxu0 0
    %5348 = vmatpush2.bf16.msra.mxu0 %v4949
    %5349 = vmatprep.mubr.bf16.mxu0 %v4079
    %5350 = vmatmul.mubr.bf16.gmra.mxu0 %v4078
    %v5351 = vpop.f32.mrf.mxu0
    %v5352 = vpop.f32.mrf.mxu0
    %v5353 = vpop.f32.mrf.mxu0
    %v5354 = vadd.f32 %v5314, %v5353
    %v5355 = vpop.f32.mrf.mxu0
    %5356 = vdwg.mxu0
    %5357 = vmatprep.subr.bf16.mxu0 0
    %5358 = vmatpush1.bf16.msra.mxu0 %v4964
    %5359 = vmatprep.subr.bf16.mxu0 0
    %5360 = vmatpush1.bf16.msra.mxu0 %v4963
    %5361 = vmatprep.subr.bf16.mxu0 0
    %5362 = vmatpush1.bf16.msra.mxu0 %v4962
    %5363 = vmatprep.subr.bf16.mxu0 0
    %5364 = vmatpush1.bf16.msra.mxu0 %v4961
    %5365 = vmatprep.subr.bf16.mxu0 0
    %5366 = vmatpush1.bf16.msra.mxu0 %v4960
    %5367 = vmatprep.subr.bf16.mxu0 0
    %5368 = vmatpush1.bf16.msra.mxu0 %v4959
    %5369 = vmatprep.subr.bf16.mxu0 0
    %5370 = vmatpush1.bf16.msra.mxu0 %v4958
    %5371 = vmatprep.subr.bf16.mxu0 0
    %5372 = vmatpush1.bf16.msra.mxu0 %v4957
    %5373 = vmatprep.subr.bf16.mxu0 0
    %5374 = vmatpush2.bf16.msra.mxu0 %v4972
    %5375 = vmatprep.subr.bf16.mxu0 0
    %5376 = vmatpush2.bf16.msra.mxu0 %v4971
    %5377 = vmatprep.subr.bf16.mxu0 0
    %5378 = vmatpush2.bf16.msra.mxu0 %v4970
    %5379 = vmatprep.subr.bf16.mxu0 0
    %5380 = vmatpush2.bf16.msra.mxu0 %v4969
    %5381 = vmatprep.subr.bf16.mxu0 0
    %5382 = vmatpush2.bf16.msra.mxu0 %v4968
    %5383 = vmatprep.subr.bf16.mxu0 0
    %5384 = vmatpush2.bf16.msra.mxu0 %v4967
    %5385 = vmatprep.subr.bf16.mxu0 0
    %5386 = vmatpush2.bf16.msra.mxu0 %v4966
    %5387 = vmatprep.subr.bf16.mxu0 0
    %5388 = vmatpush2.bf16.msra.mxu0 %v4965
    %5389 = vmatprep.mubr.bf16.mxu0 %v4081
    %5390 = vmatmul.mubr.bf16.gmra.mxu0 %v4080
    %v5391 = vpop.f32.mrf.mxu0
    %v5392 = vpop.f32.mrf.mxu0
    %v5393 = vpop.f32.mrf.mxu0
    %v5394 = vadd.f32 %v5354, %v5393
    %v5395 = vpop.f32.mrf.mxu0
    %5396 = vdwg.mxu0
    %5397 = vmatprep.subr.bf16.mxu0 0
    %5398 = vmatpush1.bf16.msra.mxu0 %v4980
    %5399 = vmatprep.subr.bf16.mxu0 0
    %5400 = vmatpush1.bf16.msra.mxu0 %v4979
    %5401 = vmatprep.subr.bf16.mxu0 0
    %5402 = vmatpush1.bf16.msra.mxu0 %v4978
    %5403 = vmatprep.subr.bf16.mxu0 0
    %5404 = vmatpush1.bf16.msra.mxu0 %v4977
    %5405 = vmatprep.subr.bf16.mxu0 0
    %5406 = vmatpush1.bf16.msra.mxu0 %v4976
    %5407 = vmatprep.subr.bf16.mxu0 0
    %5408 = vmatpush1.bf16.msra.mxu0 %v4975
    %5409 = vmatprep.subr.bf16.mxu0 0
    %5410 = vmatpush1.bf16.msra.mxu0 %v4974
    %5411 = vmatprep.subr.bf16.mxu0 0
    %5412 = vmatpush1.bf16.msra.mxu0 %v4973
    %5413 = vmatprep.subr.bf16.mxu0 0
    %5414 = vmatpush2.bf16.msra.mxu0 %v4988
    %5415 = vmatprep.subr.bf16.mxu0 0
    %5416 = vmatpush2.bf16.msra.mxu0 %v4987
    %5417 = vmatprep.subr.bf16.mxu0 0
    %5418 = vmatpush2.bf16.msra.mxu0 %v4986
    %5419 = vmatprep.subr.bf16.mxu0 0
    %5420 = vmatpush2.bf16.msra.mxu0 %v4985
    %5421 = vmatprep.subr.bf16.mxu0 0
    %5422 = vmatpush2.bf16.msra.mxu0 %v4984
    %5423 = vmatprep.subr.bf16.mxu0 0
    %5424 = vmatpush2.bf16.msra.mxu0 %v4983
    %5425 = vmatprep.subr.bf16.mxu0 0
    %5426 = vmatpush2.bf16.msra.mxu0 %v4982
    %5427 = vmatprep.subr.bf16.mxu0 0
    %5428 = vmatpush2.bf16.msra.mxu0 %v4981
    %5429 = vmatprep.mubr.bf16.mxu0 %v4083
    %5430 = vmatmul.mubr.bf16.gmra.mxu0 %v4082
    %v5431 = vpop.f32.mrf.mxu0
    %v5432 = vpop.f32.mrf.mxu0
    %v5433 = vpop.f32.mrf.mxu0
    %v5434 = vadd.f32 %v5394, %v5433
    %v5435 = vpop.f32.mrf.mxu0
    %5436 = vdwg.mxu0
    %v5437 = vadd.f32 %v3409, %v5434
    %s5438 = scalar_lea.vmem %s12, 1
    %v5439 = vld [vmem:[%s5438] sm:$0x1]
    %s5440 = scalar_lea.vmem %s13, 1
    %v5441 = vld [vmem:[%s5440] sm:$0x1]
    %v5442 = vsel %vm111, %v5437, 0.0
    %5443 = vadd.xlane.f32.xlu0 %v5442
    %v5444 = vpop.xlane.xlu0 %5443
    %v5445 = vmul.f32 %v5444, %v666
    %v5446 = vsub.f32 %v5437, %v5445
    %v5447 = vmul.f32 %v5446, %v5446
    %v5448 = vsel %vm111, %v5447, 0.0
    %5449 = vadd.xlane.f32.xlu0 %v5448
    %v5450 = vpop.xlane.xlu0 %5449
    %v5451 = vmul.f32 %v5450, %v666
    %v5452 = vadd.f32 %v5451, 1e-05
    %v5453 = vrsqrt.pop %v5452
    %v5454 = vmul.f32 %v5446, %v5453
    %v5456 = vlaneseq
    %v5457 = vshrl.u32 %v5456, 7
    %v5458 = vsub.s32 0, %v5457
    %v5459 = vrot.slane %v5439, %v5458
    %v5461 = vmul.f32 %v5454, %v5459
    %v5463 = vlaneseq
    %v5464 = vshrl.u32 %v5463, 7
    %v5465 = vsub.s32 0, %v5464
    %v5466 = vrot.slane %v5441, %v5465
    %v5468 = vadd.f32 %v5461, %v5466
    %v5469 = vld [vmem:[%s14] sm:$0xff]
    %v5470 = vld [vmem:[%s14 + $0x8] sm:$0xff]
    %v5471 = vld [vmem:[%s14 + $0x10] sm:$0xff]
    %v5472 = vld [vmem:[%s14 + $0x18] sm:$0xff]
    %v5473 = vld [vmem:[%s15] sm:$0x1]
    %v5475 = vlaneseq
    %v5476 = vshrl.u32 %v5475, 7
    %v5477 = vsub.s32 0, %v5476
    %v5478 = vrot.slane %v5473, %v5477
    %v5481 = vrot.slane %v5468, 6
    %v5482 = vsel %vm111, %v5481, 0
    %5484 = vmatprep.subr.mxu0 0.0
    %5485 = vmatpush1.msra.mxu0 0.0
    %5486 = vmatprep.subr.mxu0 0.0
    %5487 = vmatpush1.msra.mxu0 0.0
    %5488 = vmatprep.subr.mxu0 0.0
    %5489 = vmatpush1.msra.mxu0 0.0
    %5490 = vmatprep.subr.mxu0 0.0
    %5491 = vmatpush1.msra.mxu0 0.0
    %5492 = vmatprep.subr.mxu0 0.0
    %5493 = vmatpush1.msra.mxu0 0.0
    %5494 = vmatprep.subr.mxu0 0.0
    %5495 = vmatpush1.msra.mxu0 0.0
    %5496 = vmatprep.subr.mxu0 0.0
    %5497 = vmatpush1.msra.mxu0 0.0
    %5498 = vmatprep.subr.mxu0 0.0
    %5499 = vmatpush1.msra.mxu0 0.0
    %5500 = vmatprep.subr.mxu0 0.0
    %5501 = vmatpush1.msra.mxu0 0.0
    %5502 = vmatprep.subr.mxu0 0.0
    %5503 = vmatpush1.msra.mxu0 0.0
    %5504 = vmatprep.subr.mxu0 0.0
    %5505 = vmatpush1.msra.mxu0 0.0
    %5506 = vmatprep.subr.mxu0 0.0
    %5507 = vmatpush1.msra.mxu0 0.0
    %5508 = vmatprep.subr.mxu0 0.0
    %5509 = vmatpush1.msra.mxu0 %v5472
    %5510 = vmatprep.subr.mxu0 0.0
    %5511 = vmatpush1.msra.mxu0 %v5471
    %5512 = vmatprep.subr.mxu0 0.0
    %5513 = vmatpush1.msra.mxu0 %v5470
    %5514 = vmatprep.subr.mxu0 0.0
    %5515 = vmatpush1.msra.mxu0 %v5469
    %5516 = vmatprep.subr.mxu0 0.0
    %5517 = vmatpush2.msra.mxu0 0.0
    %5518 = vmatprep.subr.mxu0 0.0
    %5519 = vmatpush2.msra.mxu0 0.0
    %5520 = vmatprep.subr.mxu0 0.0
    %5521 = vmatpush2.msra.mxu0 0.0
    %5522 = vmatprep.subr.mxu0 0.0
    %5523 = vmatpush2.msra.mxu0 0.0
    %5524 = vmatprep.subr.mxu0 0.0
    %5525 = vmatpush2.msra.mxu0 0.0
    %5526 = vmatprep.subr.mxu0 0.0
    %5527 = vmatpush2.msra.mxu0 0.0
    %5528 = vmatprep.subr.mxu0 0.0
    %5529 = vmatpush2.msra.mxu0 0.0
    %5530 = vmatprep.subr.mxu0 0.0
    %5531 = vmatpush2.msra.mxu0 0.0
    %5532 = vmatprep.subr.mxu0 0.0
    %5533 = vmatpush2.msra.mxu0 0.0
    %5534 = vmatprep.subr.mxu0 0.0
    %5535 = vmatpush2.msra.mxu0 0.0
    %5536 = vmatprep.subr.mxu0 0.0
    %5537 = vmatpush2.msra.mxu0 0.0
    %5538 = vmatprep.subr.mxu0 0.0
    %5539 = vmatpush2.msra.mxu0 0.0
    %5540 = vmatprep.subr.mxu0 0.0
    %5541 = vmatpush2.msra.mxu0 0.0
    %5542 = vmatprep.subr.mxu0 0.0
    %5543 = vmatpush2.msra.mxu0 0.0
    %5544 = vmatprep.subr.mxu0 0.0
    %5545 = vmatpush2.msra.mxu0 0.0
    %5546 = vmatprep.subr.mxu0 0.0
    %5547 = vmatpush2.msra.mxu0 0.0
    %5548 = vmatprep.mubr.f32.mxu0 0.0
    %5549 = vmatmul.mubr.f32.gmra.mxu0 %v5482
    %v5550 = vpop.f32.mrf.mxu0
    %v5551 = vadd.f32 %v5478, %v5550
    %v5552 = vpop.f32.mrf.mxu0
    %5553 = vdwg.mxu0
    %vm5554 = vcmask 123904
    %5555 = vst.msk [vmem:[#allocation2] sm:$0x3] %vm5554, %v5551
    // Predicated region
    $region66: #{char_transformer_forward.1} parent=1 // pred_check
      _
    $region67: #{char_transformer_forward.1} parent=1 // pred_check_branch
      %5557 = sbr.rel (0) target = $region69
    $region68: #{char_transformer_forward.1} parent=1 // pred_region
      %s5559 = ssub.s32 32, 32
      %5560 = vsyncadd [#allocation3], %s5559
      %s5562 = sshll.u32 [#allocation2], 4
      %s5563 = int_to_ptr.vmem [resolvable:$true] %s5562
      %5565 = dma.vmem_to_hbm [thread:$0]  %s5563, 32, %s16, [#allocation3]
    $region69: #{char_transformer_forward.1} parent=1 // pred_fallthru
      _
    // Predicated region
    $region70: #{char_transformer_forward.1} parent=1 // pred_check
      _
    $region71: #{char_transformer_forward.1} parent=1 // pred_check_branch
      %5567 = sbr.rel (0) target = $region73
    $region72: #{char_transformer_forward.1} parent=1 // pred_region
      %5568 = dma.done [#allocation3], 32
    $region73: #{char_transformer_forward.1} parent=1 // pred_fallthru
      _
    %5569 = vsyncpa [#allocation3], 1

</llo_original>
